<compile_context>
chip_gen: v6e
topology: v6e:2x2x1
jax: 0.10.0
libtpu: 0.0.40
codegen_flags: <defaults>
</compile_context>

<pallas_src>
import jax
import jax.numpy as jnp
from jax.experimental import pallas as pl
from jax.experimental.pallas import tpu as pltpu

DIM = 64
EPS = 1e-5
F0 = 4 * 4 * 4 * DIM   # 4096  linear output width
C1 = 4 * DIM           # 256   deconv1 in-channels
C2 = 2 * DIM           # 128   deconv1 out / deconv2 in
C3 = DIM               # 64    deconv2 out / deconv3 in
COUT_PAD = 4           # RGB (3) padded to 4 so deconv_out columns stay dense


# ------------------------------ small helpers -------------------------------

def _lane_tile(x, reps):
    # (1, c) -> (1, reps*c); repetition matches the (kpos, channel) column order.
    return jnp.concatenate([x] * reps, axis=1)


def _lane_fold(x, reps, c):
    # (1, reps*c) -> (1, c): sum the `reps` kernel-position chunks per channel.
    acc = x[:, 0:c]
    for r in range(1, reps):
        acc = acc + x[:, r * c:(r + 1) * c]
    return acc


def _bn_scale_offset(s, ssq, count, gamma, beta):
    # Batch-stat BatchNorm folded to one elementwise pass: y * scale + offset.
    inv = 1.0 / float(count)
    mean = s * inv
    var = jnp.maximum(ssq * inv - mean * mean, 0.0)     # biased variance
    scale = gamma * jax.lax.rsqrt(var + EPS)
    return scale, beta - mean * scale


# -------------------------------- the kernel --------------------------------

def generator_kernel(z_ref, lw_ref, g0_ref, b0_ref,
                     w1_hbm, g1_ref, be1_ref,
                     w2_hbm, g2_ref, be2_ref,
                     w3_hbm, b3_ref,
                     o_ref,
                     w1_v, w2_v, w3_v, sem):
    n = z_ref.shape[0]
    rows1 = 16 * n          # (s0, n) rows         -> 4x4 spatial
    rows2 = 64 * n          # (k1, s0, n) rows     -> 8x8 spatial

    # Prefetch late-stage weights; overlaps HBM traffic with early compute.
    cp1 = pltpu.make_async_copy(w1_hbm, w1_v, sem.at[0])
    cp2 = pltpu.make_async_copy(w2_hbm, w2_v, sem.at[1])
    cp3 = pltpu.make_async_copy(w3_hbm, w3_v, sem.at[2])
    cp1.start()
    cp2.start()
    cp3.start()

    # ---- preprocess: Linear(64 -> 4096) + BatchNorm1d(batch stats) + ReLU.
    # Linear bias cancels exactly under batch-stat BN and is dropped.
    h = jnp.dot(z_ref[...].astype(jnp.bfloat16), lw_ref[...],
                preferred_element_type=jnp.float32)        # (N, 4096), cols (s0, c1)
    sum0 = jnp.sum(h, axis=0, keepdims=True)
    ssq0 = jnp.sum(h * h, axis=0, keepdims=True)
    sc0, of0 = _bn_scale_offset(sum0, ssq0, n, g0_ref[...], b0_ref[...])
    h = jnp.maximum(h * sc0 + of0, 0.0)

    # ---- (N, 16*C1) -> (16N, C1): row = s0*N + nb   (s0 = h0*4 + w0)
    a0 = jnp.concatenate([h[:, s * C1:(s + 1) * C1] for s in range(16)], axis=0)

    # ---- block1: ConvT(256->128, k2 s2) as a matmul, then fold k1 into rows.
    cp1.wait()
    y1 = jnp.dot(a0.astype(jnp.bfloat16), w1_v[...],
                 preferred_element_type=jnp.float32)       # (16N, 4*C2), cols (k1, c2)
    # (16N, 4*C2) -> (64N, C2): row = k1*16N + s0*N + nb  -> BN1 needs no folds.
    b1 = jnp.concatenate([y1[:, k * C2:(k + 1) * C2] for k in range(4)], axis=0)
    sum1 = jnp.sum(b1, axis=0, keepdims=True)
    ssq1 = jnp.sum(b1 * b1, axis=0, keepdims=True)
    sc1, of1 = _bn_scale_offset(sum1, ssq1, rows2, g1_ref[...], be1_ref[...])
    x1 = jnp.maximum(b1 * sc1 + of1, 0.0).astype(jnp.bfloat16)

    # ---- block2: ConvT(128->64, k2 s2) with the *dense* (128, 4*C3) weight.
    cp2.wait()
    y2 = jnp.dot(x1, w2_v[...],
                 preferred_element_type=jnp.float32)       # (64N, 4*C3), cols (k2, c3)
    sum2 = _lane_fold(jnp.sum(y2, axis=0, keepdims=True), 4, C3)       # (1, 64)
    ssq2 = _lane_fold(jnp.sum(y2 * y2, axis=0, keepdims=True), 4, C3)  # (1, 64)
    sc2, of2 = _bn_scale_offset(sum2, ssq2, 4 * rows2, g2_ref[...], be2_ref[...])
    x2 = jnp.maximum(y2 * _lane_tile(sc2, 4) + _lane_tile(of2, 4),
                     0.0).astype(jnp.bfloat16)             # (64N, 256), cols (k2, c3)

    # ---- deconv_out: ConvT(64->3 pad 4) via 4 diagonal (64,16) blocks + bias.
    cp3.wait()
    y3 = jnp.dot(x2, w3_v[...],
                 preferred_element_type=jnp.float32) + b3_ref[...]  # (64N, 64), cols (k2,k3,co)

    # Reassemble the lane-dense (16N, 256) slab (cols (k1,k2,k3,co)) in VMEM
    # before the EUP tanh pass and the single HBM store.
    y3d = jnp.concatenate([y3[k * rows1:(k + 1) * rows1, :] for k in range(4)],
                          axis=1)
    o_ref[...] = jnp.tanh(y3d).astype(o_ref.dtype)


# ------------------------------ parameter packing ----------------------------

def init_params(key):
    # Raw parameters in PyTorch layout (Linear: (in,out); ConvT: (Cin,Cout,2,2)).
    ks = jax.random.split(key, 14)
    p = {}
    p["lin_w"] = 0.05 * jax.random.normal(ks[0], (DIM, F0), jnp.float32)
    p["lin_b"] = 0.05 * jax.random.normal(ks[1], (1, F0), jnp.float32)
    p["bn0_g"] = 1.0 + 0.1 * jax.random.normal(ks[2], (1, F0), jnp.float32)
    p["bn0_b"] = 0.1 * jax.random.normal(ks[3], (1, F0), jnp.float32)
    p["dc1_w"] = 0.05 * jax.random.normal(ks[4], (C1, C2, 2, 2), jnp.float32)
    p["dc1_b"] = 0.05 * jax.random.normal(ks[5], (1, C2), jnp.float32)
    p["bn1_g"] = 1.0 + 0.1 * jax.random.normal(ks[6], (1, C2), jnp.float32)
    p["bn1_b"] = 0.1 * jax.random.normal(ks[7], (1, C2), jnp.float32)
    p["dc2_w"] = 0.05 * jax.random.normal(ks[8], (C2, C3, 2, 2), jnp.float32)
    p["dc2_b"] = 0.05 * jax.random.normal(ks[9], (1, C3), jnp.float32)
    p["bn2_g"] = 1.0 + 0.1 * jax.random.normal(ks[10], (1, C3), jnp.float32)
    p["bn2_b"] = 0.1 * jax.random.normal(ks[11], (1, C3), jnp.float32)
    p["dc3_w"] = 0.05 * jax.random.normal(ks[12], (C3, 3, 2, 2), jnp.float32)
    p["dc3_b"] = 0.05 * jax.random.normal(ks[13], (1, 3), jnp.float32)
    return p


def pack_params(p):
    """One-time reformat of PyTorch-layout params into kernel-ready arrays.

    lin_b / dc1_b / dc2_b are intentionally not packed: a constant per-feature
    bias cancels exactly under batch-statistics BatchNorm, so dropping it does
    not change the forward output.
    """
    def perm_cols(a):
        # old column = c1*16 + s0 (from view(-1, 4*DIM, 4, 4)) -> new = s0*C1 + c1
        return a.reshape(a.shape[0], C1, 16).transpose(0, 2, 1).reshape(a.shape[0], F0)

    def deconv_mat(w):
        # (Cin, Cout, 2, 2) -> (Cin, 4*Cout), columns ordered (kh, kw, co)
        cin, cout = w.shape[0], w.shape[1]
        return jnp.transpose(w, (0, 2, 3, 1)).reshape(cin, 4 * cout)

    q = {}
    q["lin_w"] = perm_cols(p["lin_w"]).astype(jnp.bfloat16)        # (64, 4096)
    q["bn0_g"] = perm_cols(p["bn0_g"])                             # (1, 4096)
    q["bn0_b"] = perm_cols(p["bn0_b"])

    q["w1"] = deconv_mat(p["dc1_w"]).astype(jnp.bfloat16)          # (256, 512)
    q["bn1_g"] = p["bn1_g"]                                        # (1, 128)
    q["bn1_b"] = p["bn1_b"]

    q["w2"] = deconv_mat(p["dc2_w"]).astype(jnp.bfloat16)          # (128, 256) dense
    q["bn2_g"] = p["bn2_g"]                                        # (1, 64)
    q["bn2_b"] = p["bn2_b"]

    # deconv_out: (64,3,2,2) -> (64,2,2,3) -> pad RGB to 4 -> (64,16); one
    # diagonal block per deconv2 kernel position k2 -> (256, 64).
    w3 = jnp.transpose(p["dc3_w"], (0, 2, 3, 1))                   # (64, 2, 2, 3)
    w3 = jnp.pad(w3, ((0, 0), (0, 0), (0, 0), (0, 1))).reshape(C3, 4 * COUT_PAD)
    q["w3"] = jnp.kron(jnp.eye(4, dtype=w3.dtype), w3).astype(jnp.bfloat16)  # (256, 64)
    b3 = jnp.pad(p["dc3_b"], ((0, 0), (0, 1)))                     # (1, 4): [b0,b1,b2,0]
    q["b3"] = _lane_tile(b3, 16)                                   # (1, 64), col = k2*16+k3*4+co
    return q


# --------------------------------- forward ----------------------------------

def generator_forward(q, z):
    n = z.shape[0]
    vmem = pl.BlockSpec(memory_space=pltpu.MemorySpace.VMEM)
    hbm = pl.BlockSpec(memory_space=pl.ANY)          # manual async copy in-kernel

    out2d = pl.pallas_call(
        generator_kernel,
        out_shape=jax.ShapeDtypeStruct((16 * n, 4 * 4 * 4 * COUT_PAD), jnp.bfloat16),
        in_specs=[vmem,          # z
                  vmem,          # lin_w (needed first -> prologue DMA)
                  vmem, vmem,    # bn0 gamma/beta
                  hbm,           # w1  (async prefetch)
                  vmem, vmem,    # bn1 gamma/beta
                  hbm,           # w2  (async prefetch)
                  vmem, vmem,    # bn2 gamma/beta
                  hbm,           # w3  (async prefetch)
                  vmem],         # b3
        out_specs=vmem,
        scratch_shapes=[
            pltpu.VMEM(q["w1"].shape, jnp.bfloat16),
            pltpu.VMEM(q["w2"].shape, jnp.bfloat16),
            pltpu.VMEM(q["w3"].shape, jnp.bfloat16),
            pltpu.SemaphoreType.DMA((3,)),
        ],
    )(z, q["lin_w"], q["bn0_g"], q["bn0_b"],
      q["w1"], q["bn1_g"], q["bn1_b"],
      q["w2"], q["bn2_g"], q["bn2_b"],
      q["w3"], q["b3"])

    # Decode (16N, 256): row = (h0*4 + w0)*N + n,
    # col = kh1*128 + kw1*64 + kh2*32 + kw2*16 + kh3*8 + kw3*4 + co(pad4)
    y = out2d.reshape(4, 4, n, 2, 2, 2, 2, 2, 2, COUT_PAD)[..., :3]
    # axes: h0 w0 n kh1 kw1 kh2 kw2 kh3 kw3 co
    y = jnp.transpose(y, (2, 9, 0, 3, 5, 7, 1, 4, 6, 8))
    # -> (n, co, h0, kh1, kh2, kh3, w0, kw1, kw2, kw3);  H = h0*8+kh1*4+kh2*2+kh3
    return y.reshape(n, 3, 32, 32).astype(jnp.float32)


if __name__ == "__main__":
    key = jax.random.PRNGKey(0)
    pkey, zkey = jax.random.split(key)
    params = pack_params(init_params(pkey))             # hoisted out of the hot path
    z = jax.random.normal(zkey, (8, DIM), jnp.float32)  # latent batch (N=8, DIM=64)

    fwd = jax.jit(generator_forward)
    out = jax.block_until_ready(fwd(params, z))

    assert out.shape == (8, 3, 32, 32), out.shape
    assert out.dtype == jnp.float32, out.dtype
    assert bool(jnp.all(jnp.isfinite(out)))
    assert bool(jnp.all(jnp.abs(out) <= 1.0))  # tanh range
    print("KERNEL_OK")
</pallas_src>

<mosaic_0001>
module attributes {stable_mosaic.version = 11 : i64} {
  func.func @generator_kernel(%arg0: memref<8x64xf32, #tpu.memory_space<vmem>>, %arg1: memref<64x4096xbf16, #tpu.memory_space<vmem>>, %arg2: memref<1x4096xf32, #tpu.memory_space<vmem>>, %arg3: memref<1x4096xf32, #tpu.memory_space<vmem>>, %arg4: memref<256x512xbf16, #tpu.memory_space<any>>, %arg5: memref<1x128xf32, #tpu.memory_space<vmem>>, %arg6: memref<1x128xf32, #tpu.memory_space<vmem>>, %arg7: memref<128x256xbf16, #tpu.memory_space<any>>, %arg8: memref<1x64xf32, #tpu.memory_space<vmem>>, %arg9: memref<1x64xf32, #tpu.memory_space<vmem>>, %arg10: memref<256x64xbf16, #tpu.memory_space<any>>, %arg11: memref<1x64xf32, #tpu.memory_space<vmem>>, %arg12: memref<128x256xbf16, #tpu.memory_space<vmem>>, %arg13: memref<256x512xbf16, #tpu.memory_space<vmem>>, %arg14: memref<128x256xbf16, #tpu.memory_space<vmem>>, %arg15: memref<256x64xbf16, #tpu.memory_space<vmem>>, %arg16: memref<3x!tpu.dma_semaphore, #tpu.memory_space<semaphore_mem>>) attributes {dimension_semantics = [], scalar_prefetch = 0 : i64, scratch_operands = 4 : i64, tpu.core_type = #tpu.core_type<tc>} {
    %c0_i32 = arith.constant 0 : i32
    %0 = tpu.memref_slice %arg16[%c0_i32] : memref<3x!tpu.dma_semaphore, #tpu.memory_space<semaphore_mem>> -> memref<1x!tpu.dma_semaphore, #tpu.memory_space<semaphore_mem>>
    %1 = tpu.memref_squeeze %0 : memref<1x!tpu.dma_semaphore, #tpu.memory_space<semaphore_mem>> -> memref<!tpu.dma_semaphore, #tpu.memory_space<semaphore_mem>>
    tpu.enqueue_dma source(%arg4 : memref<256x512xbf16, #tpu.memory_space<any>>) target(%arg13 : memref<256x512xbf16, #tpu.memory_space<vmem>>) target_semaphore(%1 : memref<!tpu.dma_semaphore, #tpu.memory_space<semaphore_mem>>)
    %c1_i32 = arith.constant 1 : i32
    %2 = tpu.memref_slice %arg16[%c1_i32] : memref<3x!tpu.dma_semaphore, #tpu.memory_space<semaphore_mem>> -> memref<1x!tpu.dma_semaphore, #tpu.memory_space<semaphore_mem>>
    %3 = tpu.memref_squeeze %2 : memref<1x!tpu.dma_semaphore, #tpu.memory_space<semaphore_mem>> -> memref<!tpu.dma_semaphore, #tpu.memory_space<semaphore_mem>>
    tpu.enqueue_dma source(%arg7 : memref<128x256xbf16, #tpu.memory_space<any>>) target(%arg14 : memref<128x256xbf16, #tpu.memory_space<vmem>>) target_semaphore(%3 : memref<!tpu.dma_semaphore, #tpu.memory_space<semaphore_mem>>)
    %c2_i32 = arith.constant 2 : i32
    %4 = tpu.memref_slice %arg16[%c2_i32] : memref<3x!tpu.dma_semaphore, #tpu.memory_space<semaphore_mem>> -> memref<1x!tpu.dma_semaphore, #tpu.memory_space<semaphore_mem>>
    %5 = tpu.memref_squeeze %4 : memref<1x!tpu.dma_semaphore, #tpu.memory_space<semaphore_mem>> -> memref<!tpu.dma_semaphore, #tpu.memory_space<semaphore_mem>>
    tpu.enqueue_dma source(%arg10 : memref<256x64xbf16, #tpu.memory_space<any>>) target(%arg15 : memref<256x64xbf16, #tpu.memory_space<vmem>>) target_semaphore(%5 : memref<!tpu.dma_semaphore, #tpu.memory_space<semaphore_mem>>)
    %c0 = arith.constant 0 : index
    %c0_0 = arith.constant 0 : index
    %6 = vector.load %arg0[%c0, %c0_0] : memref<8x64xf32, #tpu.memory_space<vmem>>, vector<8x64xf32>
    %7 = arith.truncf %6 : vector<8x64xf32> to vector<8x64xbf16>
    %c0_1 = arith.constant 0 : index
    %c0_2 = arith.constant 0 : index
    %8 = vector.load %arg1[%c0_1, %c0_2] : memref<64x4096xbf16, #tpu.memory_space<vmem>>, vector<64x4096xbf16>
    %cst = arith.constant dense<0.000000e+00> : vector<8x4096xf32>
    %9 = tpu.matmul %7, %8, %cst {dimension_numbers = #tpu.dot_dimension_numbers<[1], [0], [0], [1], [0, 0, 1, 1], [], []>} : vector<8x64xbf16>, vector<64x4096xbf16>, vector<8x4096xf32> -> vector<8x4096xf32>
    %cst_3 = arith.constant dense<0.000000e+00> : vector<4096xf32>
    %10 = vector.multi_reduction <add>, %9, %cst_3 [0] : vector<8x4096xf32> to vector<4096xf32>
    %11 = vector.shape_cast %10 : vector<4096xf32> to vector<1x4096xf32>
    %12 = arith.mulf %9, %9 : vector<8x4096xf32>
    %cst_4 = arith.constant dense<0.000000e+00> : vector<4096xf32>
    %13 = vector.multi_reduction <add>, %12, %cst_4 [0] : vector<8x4096xf32> to vector<4096xf32>
    %14 = vector.shape_cast %13 : vector<4096xf32> to vector<1x4096xf32>
    %c0_5 = arith.constant 0 : index
    %c0_6 = arith.constant 0 : index
    %15 = vector.load %arg2[%c0_5, %c0_6] : memref<1x4096xf32, #tpu.memory_space<vmem>>, vector<1x4096xf32>
    %c0_7 = arith.constant 0 : index
    %c0_8 = arith.constant 0 : index
    %16 = vector.load %arg3[%c0_7, %c0_8] : memref<1x4096xf32, #tpu.memory_space<vmem>>, vector<1x4096xf32>
    %cst_9 = arith.constant 1.250000e-01 : f32
    %17 = vector.broadcast %cst_9 : f32 to vector<1x4096xf32>
    %18 = arith.mulf %11, %17 : vector<1x4096xf32>
    %cst_10 = arith.constant 1.250000e-01 : f32
    %19 = vector.broadcast %cst_10 : f32 to vector<1x4096xf32>
    %20 = arith.mulf %14, %19 : vector<1x4096xf32>
    %21 = arith.mulf %18, %18 : vector<1x4096xf32>
    %22 = arith.subf %20, %21 : vector<1x4096xf32>
    %cst_11 = arith.constant 0.000000e+00 : f32
    %23 = vector.broadcast %cst_11 : f32 to vector<1x4096xf32>
    %24 = arith.maximumf %22, %23 : vector<1x4096xf32>
    %cst_12 = arith.constant 9.99999974E-6 : f32
    %25 = vector.broadcast %cst_12 : f32 to vector<1x4096xf32>
    %26 = arith.addf %24, %25 : vector<1x4096xf32>
    %27 = math.rsqrt %26 : vector<1x4096xf32>
    %28 = arith.mulf %15, %27 : vector<1x4096xf32>
    %29 = arith.mulf %18, %28 : vector<1x4096xf32>
    %30 = arith.subf %16, %29 : vector<1x4096xf32>
    %31 = vector.broadcast %28 : vector<1x4096xf32> to vector<8x4096xf32>
    %32 = arith.mulf %9, %31 : vector<8x4096xf32>
    %33 = vector.broadcast %30 : vector<1x4096xf32> to vector<8x4096xf32>
    %34 = arith.addf %32, %33 : vector<8x4096xf32>
    %cst_13 = arith.constant 0.000000e+00 : f32
    %35 = vector.broadcast %cst_13 : f32 to vector<8x4096xf32>
    %36 = arith.maximumf %34, %35 : vector<8x4096xf32>
    %37 = vector.extract_strided_slice %36 {offsets = [0, 0], sizes = [8, 256], strides = [1, 1]} : vector<8x4096xf32> to vector<8x256xf32>
    %38 = vector.extract_strided_slice %36 {offsets = [0, 256], sizes = [8, 256], strides = [1, 1]} : vector<8x4096xf32> to vector<8x256xf32>
    %39 = vector.extract_strided_slice %36 {offsets = [0, 512], sizes = [8, 256], strides = [1, 1]} : vector<8x4096xf32> to vector<8x256xf32>
    %40 = vector.extract_strided_slice %36 {offsets = [0, 768], sizes = [8, 256], strides = [1, 1]} : vector<8x4096xf32> to vector<8x256xf32>
    %41 = vector.extract_strided_slice %36 {offsets = [0, 1024], sizes = [8, 256], strides = [1, 1]} : vector<8x4096xf32> to vector<8x256xf32>
    %42 = vector.extract_strided_slice %36 {offsets = [0, 1280], sizes = [8, 256], strides = [1, 1]} : vector<8x4096xf32> to vector<8x256xf32>
    %43 = vector.extract_strided_slice %36 {offsets = [0, 1536], sizes = [8, 256], strides = [1, 1]} : vector<8x4096xf32> to vector<8x256xf32>
    %44 = vector.extract_strided_slice %36 {offsets = [0, 1792], sizes = [8, 256], strides = [1, 1]} : vector<8x4096xf32> to vector<8x256xf32>
    %45 = vector.extract_strided_slice %36 {offsets = [0, 2048], sizes = [8, 256], strides = [1, 1]} : vector<8x4096xf32> to vector<8x256xf32>
    %46 = vector.extract_strided_slice %36 {offsets = [0, 2304], sizes = [8, 256], strides = [1, 1]} : vector<8x4096xf32> to vector<8x256xf32>
    %47 = vector.extract_strided_slice %36 {offsets = [0, 2560], sizes = [8, 256], strides = [1, 1]} : vector<8x4096xf32> to vector<8x256xf32>
    %48 = vector.extract_strided_slice %36 {offsets = [0, 2816], sizes = [8, 256], strides = [1, 1]} : vector<8x4096xf32> to vector<8x256xf32>
    %49 = vector.extract_strided_slice %36 {offsets = [0, 3072], sizes = [8, 256], strides = [1, 1]} : vector<8x4096xf32> to vector<8x256xf32>
    %50 = vector.extract_strided_slice %36 {offsets = [0, 3328], sizes = [8, 256], strides = [1, 1]} : vector<8x4096xf32> to vector<8x256xf32>
    %51 = vector.extract_strided_slice %36 {offsets = [0, 3584], sizes = [8, 256], strides = [1, 1]} : vector<8x4096xf32> to vector<8x256xf32>
    %52 = vector.extract_strided_slice %36 {offsets = [0, 3840], sizes = [8, 256], strides = [1, 1]} : vector<8x4096xf32> to vector<8x256xf32>
    %53 = tpu.concatenate %37, %38, %39, %40, %41, %42, %43, %44, %45, %46, %47, %48, %49, %50, %51, %52 in 0 : vector<8x256xf32>, vector<8x256xf32>, vector<8x256xf32>, vector<8x256xf32>, vector<8x256xf32>, vector<8x256xf32>, vector<8x256xf32>, vector<8x256xf32>, vector<8x256xf32>, vector<8x256xf32>, vector<8x256xf32>, vector<8x256xf32>, vector<8x256xf32>, vector<8x256xf32>, vector<8x256xf32>, vector<8x256xf32> -> vector<128x256xf32>
    %c0_i32_14 = arith.constant 0 : i32
    %54 = tpu.memref_slice %arg16[%c0_i32_14] : memref<3x!tpu.dma_semaphore, #tpu.memory_space<semaphore_mem>> -> memref<1x!tpu.dma_semaphore, #tpu.memory_space<semaphore_mem>>
    %55 = tpu.memref_squeeze %54 : memref<1x!tpu.dma_semaphore, #tpu.memory_space<semaphore_mem>> -> memref<!tpu.dma_semaphore, #tpu.memory_space<semaphore_mem>>
    tpu.wait_dma2 semaphore(%55 : memref<!tpu.dma_semaphore, #tpu.memory_space<semaphore_mem>>) src(%arg4 : memref<256x512xbf16, #tpu.memory_space<any>>) dst(%arg13 : memref<256x512xbf16, #tpu.memory_space<vmem>>)
    %56 = arith.truncf %53 : vector<128x256xf32> to vector<128x256xbf16>
    %c0_15 = arith.constant 0 : index
    %c0_16 = arith.constant 0 : index
    %57 = vector.load %arg13[%c0_15, %c0_16] : memref<256x512xbf16, #tpu.memory_space<vmem>>, vector<256x512xbf16>
    %cst_17 = arith.constant dense<0.000000e+00> : vector<128x512xf32>
    %58 = tpu.matmul %56, %57, %cst_17 {dimension_numbers = #tpu.dot_dimension_numbers<[1], [0], [0], [1], [0, 0, 1, 1], [], []>} : vector<128x256xbf16>, vector<256x512xbf16>, vector<128x512xf32> -> vector<128x512xf32>
    %59 = vector.extract_strided_slice %58 {offsets = [0, 0], sizes = [128, 128], strides = [1, 1]} : vector<128x512xf32> to vector<128x128xf32>
    %60 = vector.extract_strided_slice %58 {offsets = [0, 128], sizes = [128, 128], strides = [1, 1]} : vector<128x512xf32> to vector<128x128xf32>
    %61 = vector.extract_strided_slice %58 {offsets = [0, 256], sizes = [128, 128], strides = [1, 1]} : vector<128x512xf32> to vector<128x128xf32>
    %62 = vector.extract_strided_slice %58 {offsets = [0, 384], sizes = [128, 128], strides = [1, 1]} : vector<128x512xf32> to vector<128x128xf32>
    %63 = tpu.concatenate %59, %60, %61, %62 in 0 : vector<128x128xf32>, vector<128x128xf32>, vector<128x128xf32>, vector<128x128xf32> -> vector<512x128xf32>
    %cst_18 = arith.constant dense<0.000000e+00> : vector<128xf32>
    %64 = vector.multi_reduction <add>, %63, %cst_18 [0] : vector<512x128xf32> to vector<128xf32>
    %65 = vector.shape_cast %64 : vector<128xf32> to vector<1x128xf32>
    %66 = arith.mulf %63, %63 : vector<512x128xf32>
    %cst_19 = arith.constant dense<0.000000e+00> : vector<128xf32>
    %67 = vector.multi_reduction <add>, %66, %cst_19 [0] : vector<512x128xf32> to vector<128xf32>
    %68 = vector.shape_cast %67 : vector<128xf32> to vector<1x128xf32>
    %c0_20 = arith.constant 0 : index
    %c0_21 = arith.constant 0 : index
    %69 = vector.load %arg5[%c0_20, %c0_21] : memref<1x128xf32, #tpu.memory_space<vmem>>, vector<1x128xf32>
    %c0_22 = arith.constant 0 : index
    %c0_23 = arith.constant 0 : index
    %70 = vector.load %arg6[%c0_22, %c0_23] : memref<1x128xf32, #tpu.memory_space<vmem>>, vector<1x128xf32>
    %cst_24 = arith.constant 0.001953125 : f32
    %71 = vector.broadcast %cst_24 : f32 to vector<1x128xf32>
    %72 = arith.mulf %65, %71 : vector<1x128xf32>
    %cst_25 = arith.constant 0.001953125 : f32
    %73 = vector.broadcast %cst_25 : f32 to vector<1x128xf32>
    %74 = arith.mulf %68, %73 : vector<1x128xf32>
    %75 = arith.mulf %72, %72 : vector<1x128xf32>
    %76 = arith.subf %74, %75 : vector<1x128xf32>
    %cst_26 = arith.constant 0.000000e+00 : f32
    %77 = vector.broadcast %cst_26 : f32 to vector<1x128xf32>
    %78 = arith.maximumf %76, %77 : vector<1x128xf32>
    %cst_27 = arith.constant 9.99999974E-6 : f32
    %79 = vector.broadcast %cst_27 : f32 to vector<1x128xf32>
    %80 = arith.addf %78, %79 : vector<1x128xf32>
    %81 = math.rsqrt %80 : vector<1x128xf32>
    %82 = arith.mulf %69, %81 : vector<1x128xf32>
    %83 = arith.mulf %72, %82 : vector<1x128xf32>
    %84 = arith.subf %70, %83 : vector<1x128xf32>
    %85 = vector.broadcast %82 : vector<1x128xf32> to vector<512x128xf32>
    %86 = arith.mulf %63, %85 : vector<512x128xf32>
    %87 = vector.broadcast %84 : vector<1x128xf32> to vector<512x128xf32>
    %88 = arith.addf %86, %87 : vector<512x128xf32>
    %cst_28 = arith.constant 0.000000e+00 : f32
    %89 = vector.broadcast %cst_28 : f32 to vector<512x128xf32>
    %90 = arith.maximumf %88, %89 : vector<512x128xf32>
    %91 = arith.truncf %90 : vector<512x128xf32> to vector<512x128xbf16>
    %c1_i32_29 = arith.constant 1 : i32
    %92 = tpu.memref_slice %arg16[%c1_i32_29] : memref<3x!tpu.dma_semaphore, #tpu.memory_space<semaphore_mem>> -> memref<1x!tpu.dma_semaphore, #tpu.memory_space<semaphore_mem>>
    %93 = tpu.memref_squeeze %92 : memref<1x!tpu.dma_semaphore, #tpu.memory_space<semaphore_mem>> -> memref<!tpu.dma_semaphore, #tpu.memory_space<semaphore_mem>>
    tpu.wait_dma2 semaphore(%93 : memref<!tpu.dma_semaphore, #tpu.memory_space<semaphore_mem>>) src(%arg7 : memref<128x256xbf16, #tpu.memory_space<any>>) dst(%arg14 : memref<128x256xbf16, #tpu.memory_space<vmem>>)
    %c0_30 = arith.constant 0 : index
    %c0_31 = arith.constant 0 : index
    %94 = vector.load %arg14[%c0_30, %c0_31] : memref<128x256xbf16, #tpu.memory_space<vmem>>, vector<128x256xbf16>
    %cst_32 = arith.constant dense<0.000000e+00> : vector<512x256xf32>
    %95 = tpu.matmul %91, %94, %cst_32 {dimension_numbers = #tpu.dot_dimension_numbers<[1], [0], [0], [1], [0, 0, 1, 1], [], []>} : vector<512x128xbf16>, vector<128x256xbf16>, vector<512x256xf32> -> vector<512x256xf32>
    %cst_33 = arith.constant dense<0.000000e+00> : vector<256xf32>
    %96 = vector.multi_reduction <add>, %95, %cst_33 [0] : vector<512x256xf32> to vector<256xf32>
    %97 = vector.shape_cast %96 : vector<256xf32> to vector<1x256xf32>
    %98 = vector.extract_strided_slice %97 {offsets = [0, 0], sizes = [1, 64], strides = [1, 1]} : vector<1x256xf32> to vector<1x64xf32>
    %99 = vector.extract_strided_slice %97 {offsets = [0, 64], sizes = [1, 64], strides = [1, 1]} : vector<1x256xf32> to vector<1x64xf32>
    %100 = arith.addf %98, %99 : vector<1x64xf32>
    %101 = vector.extract_strided_slice %97 {offsets = [0, 128], sizes = [1, 64], strides = [1, 1]} : vector<1x256xf32> to vector<1x64xf32>
    %102 = arith.addf %100, %101 : vector<1x64xf32>
    %103 = vector.extract_strided_slice %97 {offsets = [0, 192], sizes = [1, 64], strides = [1, 1]} : vector<1x256xf32> to vector<1x64xf32>
    %104 = arith.addf %102, %103 : vector<1x64xf32>
    %105 = arith.mulf %95, %95 : vector<512x256xf32>
    %cst_34 = arith.constant dense<0.000000e+00> : vector<256xf32>
    %106 = vector.multi_reduction <add>, %105, %cst_34 [0] : vector<512x256xf32> to vector<256xf32>
    %107 = vector.shape_cast %106 : vector<256xf32> to vector<1x256xf32>
    %108 = vector.extract_strided_slice %107 {offsets = [0, 0], sizes = [1, 64], strides = [1, 1]} : vector<1x256xf32> to vector<1x64xf32>
    %109 = vector.extract_strided_slice %107 {offsets = [0, 64], sizes = [1, 64], strides = [1, 1]} : vector<1x256xf32> to vector<1x64xf32>
    %110 = arith.addf %108, %109 : vector<1x64xf32>
    %111 = vector.extract_strided_slice %107 {offsets = [0, 128], sizes = [1, 64], strides = [1, 1]} : vector<1x256xf32> to vector<1x64xf32>
    %112 = arith.addf %110, %111 : vector<1x64xf32>
    %113 = vector.extract_strided_slice %107 {offsets = [0, 192], sizes = [1, 64], strides = [1, 1]} : vector<1x256xf32> to vector<1x64xf32>
    %114 = arith.addf %112, %113 : vector<1x64xf32>
    %c0_35 = arith.constant 0 : index
    %c0_36 = arith.constant 0 : index
    %115 = vector.load %arg8[%c0_35, %c0_36] : memref<1x64xf32, #tpu.memory_space<vmem>>, vector<1x64xf32>
    %c0_37 = arith.constant 0 : index
    %c0_38 = arith.constant 0 : index
    %116 = vector.load %arg9[%c0_37, %c0_38] : memref<1x64xf32, #tpu.memory_space<vmem>>, vector<1x64xf32>
    %cst_39 = arith.constant 4.8828125E-4 : f32
    %117 = vector.broadcast %cst_39 : f32 to vector<1x64xf32>
    %118 = arith.mulf %104, %117 : vector<1x64xf32>
    %cst_40 = arith.constant 4.8828125E-4 : f32
    %119 = vector.broadcast %cst_40 : f32 to vector<1x64xf32>
    %120 = arith.mulf %114, %119 : vector<1x64xf32>
    %121 = arith.mulf %118, %118 : vector<1x64xf32>
    %122 = arith.subf %120, %121 : vector<1x64xf32>
    %cst_41 = arith.constant 0.000000e+00 : f32
    %123 = vector.broadcast %cst_41 : f32 to vector<1x64xf32>
    %124 = arith.maximumf %122, %123 : vector<1x64xf32>
    %cst_42 = arith.constant 9.99999974E-6 : f32
    %125 = vector.broadcast %cst_42 : f32 to vector<1x64xf32>
    %126 = arith.addf %124, %125 : vector<1x64xf32>
    %127 = math.rsqrt %126 : vector<1x64xf32>
    %128 = arith.mulf %115, %127 : vector<1x64xf32>
    %129 = arith.mulf %118, %128 : vector<1x64xf32>
    %130 = arith.subf %116, %129 : vector<1x64xf32>
    %131 = tpu.concatenate %128, %128, %128, %128 in 1 : vector<1x64xf32>, vector<1x64xf32>, vector<1x64xf32>, vector<1x64xf32> -> vector<1x256xf32>
    %132 = vector.broadcast %131 : vector<1x256xf32> to vector<512x256xf32>
    %133 = arith.mulf %95, %132 : vector<512x256xf32>
    %134 = tpu.concatenate %130, %130, %130, %130 in 1 : vector<1x64xf32>, vector<1x64xf32>, vector<1x64xf32>, vector<1x64xf32> -> vector<1x256xf32>
    %135 = vector.broadcast %134 : vector<1x256xf32> to vector<512x256xf32>
    %136 = arith.addf %133, %135 : vector<512x256xf32>
    %cst_43 = arith.constant 0.000000e+00 : f32
    %137 = vector.broadcast %cst_43 : f32 to vector<512x256xf32>
    %138 = arith.maximumf %136, %137 : vector<512x256xf32>
    %139 = arith.truncf %138 : vector<512x256xf32> to vector<512x256xbf16>
    %c2_i32_44 = arith.constant 2 : i32
    %140 = tpu.memref_slice %arg16[%c2_i32_44] : memref<3x!tpu.dma_semaphore, #tpu.memory_space<semaphore_mem>> -> memref<1x!tpu.dma_semaphore, #tpu.memory_space<semaphore_mem>>
    %141 = tpu.memref_squeeze %140 : memref<1x!tpu.dma_semaphore, #tpu.memory_space<semaphore_mem>> -> memref<!tpu.dma_semaphore, #tpu.memory_space<semaphore_mem>>
    tpu.wait_dma2 semaphore(%141 : memref<!tpu.dma_semaphore, #tpu.memory_space<semaphore_mem>>) src(%arg10 : memref<256x64xbf16, #tpu.memory_space<any>>) dst(%arg15 : memref<256x64xbf16, #tpu.memory_space<vmem>>)
    %c0_45 = arith.constant 0 : index
    %c0_46 = arith.constant 0 : index
    %142 = vector.load %arg15[%c0_45, %c0_46] : memref<256x64xbf16, #tpu.memory_space<vmem>>, vector<256x64xbf16>
    %cst_47 = arith.constant dense<0.000000e+00> : vector<512x64xf32>
    %143 = tpu.matmul %139, %142, %cst_47 {dimension_numbers = #tpu.dot_dimension_numbers<[1], [0], [0], [1], [0, 0, 1, 1], [], []>} : vector<512x256xbf16>, vector<256x64xbf16>, vector<512x64xf32> -> vector<512x64xf32>
    %c0_48 = arith.constant 0 : index
    %c0_49 = arith.constant 0 : index
    %144 = vector.load %arg11[%c0_48, %c0_49] : memref<1x64xf32, #tpu.memory_space<vmem>>, vector<1x64xf32>
    %145 = vector.broadcast %144 : vector<1x64xf32> to vector<512x64xf32>
    %146 = arith.addf %143, %145 : vector<512x64xf32>
    %147 = vector.extract_strided_slice %146 {offsets = [0, 0], sizes = [128, 64], strides = [1, 1]} : vector<512x64xf32> to vector<128x64xf32>
    %148 = vector.extract_strided_slice %146 {offsets = [128, 0], sizes = [128, 64], strides = [1, 1]} : vector<512x64xf32> to vector<128x64xf32>
    %149 = vector.extract_strided_slice %146 {offsets = [256, 0], sizes = [128, 64], strides = [1, 1]} : vector<512x64xf32> to vector<128x64xf32>
    %150 = vector.extract_strided_slice %146 {offsets = [384, 0], sizes = [128, 64], strides = [1, 1]} : vector<512x64xf32> to vector<128x64xf32>
    %151 = tpu.concatenate %147, %148, %149, %150 in 1 : vector<128x64xf32>, vector<128x64xf32>, vector<128x64xf32>, vector<128x64xf32> -> vector<128x256xf32>
    %152 = math.tanh %151 : vector<128x256xf32>
    %153 = arith.truncf %152 : vector<128x256xf32> to vector<128x256xbf16>
    %c0_50 = arith.constant 0 : index
    %c0_51 = arith.constant 0 : index
    %154 = vector.load %arg12[%c0_50, %c0_51] : memref<128x256xbf16, #tpu.memory_space<vmem>>, vector<128x256xbf16>
    tpu.vector_store %arg12[%c0_50, %c0_51], %153 {strides = array<i32>} : memref<128x256xbf16, #tpu.memory_space<vmem>>, vector<128x256xbf16>,
    return
  }
}

</mosaic_0001>

<llo_original>
// kernel: generator_forward.1
$region0: #{generator_forward.1}
  #allocation0 [shape = 'u32[]', space=smem, size = 0x4, offset = 0x4, fixed_abs, tag = 'smem constant byte address 0x4 - core index']
  #allocation1 [shape = 'u32[144,128]{1,0:T(1,128)}', space=vmem, size = 0x12000, scoped, tag = 'internal scratch']
  #allocation2 [shape = 'bf16[256,512]{1,0:T(8,128)(2,1)}', space=vmem, size = 0x40000, scoped, tag = 'scratch operand']
  #allocation3 [shape = 'bf16[128,256]{1,0:T(8,128)(2,1)}', space=vmem, size = 0x10000, scoped, tag = 'scratch operand']
  #allocation4 [shape = 'bf16[256,64]{1,0:T(8,128)(2,1)}', space=vmem, size = 0x10000, scoped, tag = 'scratch operand']
  #allocation5 [shape = 's32[3]{0}', space=sflag, size = 0xc, scoped, tag = 'scratch operand']
  #allocation20 [shape = 's32[]', space=sflag, size = 0x4, offset = 0, fixed_abs, tag = 'sflag constant byte address 0x0 - dummy sync flag']
  #allocation21 [shape = 's32[]', space=sflag, size = 0x4, offset = 0, fixed_abs, tag = 'sflag constant byte address 0x0 - dummy sync flag']
  #allocation22 [shape = 'u32[]', space=smem, size = 0x4, offset = 0x44, fixed_abs, tag = 'smem constant byte address 0x44 - assertion arg 0']
  #allocation23 [shape = 'u32[]', space=smem, size = 0x4, offset = 0x48, fixed_abs, tag = 'smem constant byte address 0x48 - assertion arg 1']
  #allocation24 [shape = 's32[]', space=sflag, size = 0x4, offset = 0, fixed_abs, tag = 'sflag constant byte address 0x0 - dummy sync flag']
  #allocation25 [shape = 's32[]', space=sflag, size = 0x4, offset = 0, fixed_abs, tag = 'sflag constant byte address 0x0 - dummy sync flag']
  #allocation26 [shape = 's32[]', space=sflag, size = 0x4, offset = 0, fixed_abs, tag = 'sflag constant byte address 0x0 - dummy sync flag']
  %s0 = inlined_call_operand.hbm [shape: f32[8,64], index: 0, kind: input, shape index: {}]
  %s1 = inlined_call_operand.hbm [shape: bf16[64,4096], index: 1, kind: input, shape index: {}]
  %s2 = inlined_call_operand.hbm [shape: f32[1,4096], index: 2, kind: input, shape index: {}]
  %s3 = inlined_call_operand.hbm [shape: f32[1,4096], index: 3, kind: input, shape index: {}]
  %s4 = inlined_call_operand.hbm [shape: bf16[256,512], index: 4, kind: input, shape index: {}]
  %s5 = inlined_call_operand.hbm [shape: f32[1,128], index: 5, kind: input, shape index: {}]
  %s6 = inlined_call_operand.hbm [shape: f32[1,128], index: 6, kind: input, shape index: {}]
  %s7 = inlined_call_operand.hbm [shape: bf16[128,256], index: 7, kind: input, shape index: {}]
  %s8 = inlined_call_operand.hbm [shape: f32[1,64], index: 8, kind: input, shape index: {}]
  %s9 = inlined_call_operand.hbm [shape: f32[1,64], index: 9, kind: input, shape index: {}]
  %s10 = inlined_call_operand.vmem [shape: bf16[256,64], index: 10, kind: input, shape index: {}]
  %s11 = inlined_call_operand.hbm [shape: f32[1,64], index: 11, kind: input, shape index: {}]
  %s12 = inlined_call_operand.vmem [shape: bf16[128,256], index: 12, kind: output, shape index: {}]
  %s13 = sld [smem:[#allocation0]]
  $region124: #{generator_forward.1} parent=0
    _
  %s15 = ssub.s32 1, %s13
  %s16 = scalar_select 0, %s15, %s13
  $region1: #{generator_forward.1} parent=0
    #allocation6 [shape = 'u8[4096]{0}', space=vmem, size = 0x1000, scoped, tag = 'input window, operand 0, single buffered']
    #allocation7 [shape = 's32[1]{0}', space=sflag, size = 0x4, scoped, tag = 'scoped memory for generator_forward.1']
    #allocation8 [shape = 'u8[524288]{0}', space=vmem, size = 0x80000, scoped, tag = 'input window, operand 1, single buffered']
    #allocation9 [shape = 's32[1]{0}', space=sflag, size = 0x4, scoped, tag = 'scoped memory for generator_forward.1']
    #allocation10 [shape = 'u8[16384]{0}', space=vmem, size = 0x4000, scoped, tag = 'input window, operand 2, single buffered']
    #allocation11 [shape = 'u8[16384]{0}', space=vmem, size = 0x4000, scoped, tag = 'input window, operand 3, single buffered']
    #allocation12 [shape = 's32[1]{0}', space=sflag, size = 0x4, scoped, tag = 'scoped memory for generator_forward.1']
    #allocation13 [shape = 'u8[512]{0}', space=vmem, size = 0x400, scoped, tag = 'input window, operand 5, single buffered']
    #allocation14 [shape = 'u8[512]{0}', space=vmem, size = 0x400, scoped, tag = 'input window, operand 6, single buffered']
    #allocation15 [shape = 's32[1]{0}', space=sflag, size = 0x4, scoped, tag = 'scoped memory for generator_forward.1']
    #allocation16 [shape = 'u8[512]{0}', space=vmem, size = 0x400, scoped, tag = 'input window, operand 8, single buffered']
    #allocation17 [shape = 'u8[512]{0}', space=vmem, size = 0x400, scoped, tag = 'input window, operand 9, single buffered']
    #allocation18 [shape = 's32[1]{0}', space=sflag, size = 0x4, scoped, tag = 'scoped memory for generator_forward.1']
    #allocation19 [shape = 'u8[512]{0}', space=vmem, size = 0x400, scoped, tag = 'input window, operand 11, single buffered']
    %17 = vsyncpa [#allocation7], 0
    %18 = vsyncpa [#allocation9], 0
    %19 = vsyncpa [#allocation12], 0
    %20 = vsyncpa [#allocation15], 0
    %21 = vsyncpa [#allocation18], 0
    // Predicated region
    $region2: #{generator_forward.1} parent=1 // pred_check
      _
    $region3: #{generator_forward.1} parent=1 // pred_check_branch
      %23 = sbr.rel (0) target = $region5
    $region4: #{generator_forward.1} parent=1 // pred_region
      %s25 = ssub.s32 128, 128
      %26 = vsyncadd [#allocation7], %s25
      %s28 = sshll.u32 [#allocation6], 4
      %s29 = int_to_ptr.vmem [resolvable:$true] %s28
      %31 = dma.hbm_to_vmem [thread:$0]  %s0, 128, %s29, [#allocation7]
    $region5: #{generator_forward.1} parent=1 // pred_fallthru
      _
    // Predicated region
    $region6: #{generator_forward.1} parent=1 // pred_check
      _
    $region7: #{generator_forward.1} parent=1 // pred_check_branch
      %33 = sbr.rel (0) target = $region9
    $region8: #{generator_forward.1} parent=1 // pred_region
      %s35 = ssub.s32 16384, 16384
      %36 = vsyncadd [#allocation9], %s35
      %s37 = sshll.u32 [#allocation8], 4
      %s38 = int_to_ptr.vmem [resolvable:$true] %s37
      %43 = dma.hbm_to_vmem [thread:$0]  %s1, 16384, %s38, [#allocation9], 2048, 2048, 128
    $region9: #{generator_forward.1} parent=1 // pred_fallthru
      _
    // Predicated region
    $region10: #{generator_forward.1} parent=1 // pred_check
      _
    $region11: #{generator_forward.1} parent=1 // pred_check_branch
      %45 = sbr.rel (0) target = $region13
    $region12: #{generator_forward.1} parent=1 // pred_region
      %s47 = ssub.s32 512, 512
      %48 = vsyncadd [#allocation9], %s47
      %s50 = sshll.u32 [#allocation10], 4
      %s51 = int_to_ptr.vmem [resolvable:$true] %s50
      %53 = dma.hbm_to_vmem [thread:$0]  %s2, 512, %s51, [#allocation9]
    $region13: #{generator_forward.1} parent=1 // pred_fallthru
      _
    // Predicated region
    $region14: #{generator_forward.1} parent=1 // pred_check
      _
    $region15: #{generator_forward.1} parent=1 // pred_check_branch
      %55 = sbr.rel (0) target = $region17
    $region16: #{generator_forward.1} parent=1 // pred_region
      %s57 = ssub.s32 512, 512
      %58 = vsyncadd [#allocation12], %s57
      %s60 = sshll.u32 [#allocation11], 4
      %s61 = int_to_ptr.vmem [resolvable:$true] %s60
      %63 = dma.hbm_to_vmem [thread:$0]  %s3, 512, %s61, [#allocation12]
    $region17: #{generator_forward.1} parent=1 // pred_fallthru
      _
    // Predicated region
    $region18: #{generator_forward.1} parent=1 // pred_check
      _
    $region19: #{generator_forward.1} parent=1 // pred_check_branch
      %65 = sbr.rel (0) target = $region21
    $region20: #{generator_forward.1} parent=1 // pred_region
      %s67 = ssub.s32 16, 16
      %68 = vsyncadd [#allocation12], %s67
      %s70 = sshll.u32 [#allocation13], 4
      %s71 = int_to_ptr.vmem [resolvable:$true] %s70
      %73 = dma.hbm_to_vmem [thread:$0]  %s5, 16, %s71, [#allocation12]
    $region21: #{generator_forward.1} parent=1 // pred_fallthru
      _
    // Predicated region
    $region22: #{generator_forward.1} parent=1 // pred_check
      _
    $region23: #{generator_forward.1} parent=1 // pred_check_branch
      %75 = sbr.rel (0) target = $region25
    $region24: #{generator_forward.1} parent=1 // pred_region
      %s77 = ssub.s32 16, 16
      %78 = vsyncadd [#allocation15], %s77
      %s80 = sshll.u32 [#allocation14], 4
      %s81 = int_to_ptr.vmem [resolvable:$true] %s80
      %83 = dma.hbm_to_vmem [thread:$0]  %s6, 16, %s81, [#allocation15]
    $region25: #{generator_forward.1} parent=1 // pred_fallthru
      _
    // Predicated region
    $region26: #{generator_forward.1} parent=1 // pred_check
      _
    $region27: #{generator_forward.1} parent=1 // pred_check_branch
      %85 = sbr.rel (0) target = $region29
    $region28: #{generator_forward.1} parent=1 // pred_region
      %s87 = ssub.s32 16, 16
      %88 = vsyncadd [#allocation15], %s87
      %s90 = sshll.u32 [#allocation16], 4
      %s91 = int_to_ptr.vmem [resolvable:$true] %s90
      %93 = dma.hbm_to_vmem [thread:$0]  %s8, 16, %s91, [#allocation15]
    $region29: #{generator_forward.1} parent=1 // pred_fallthru
      _
    // Predicated region
    $region30: #{generator_forward.1} parent=1 // pred_check
      _
    $region31: #{generator_forward.1} parent=1 // pred_check_branch
      %95 = sbr.rel (0) target = $region33
    $region32: #{generator_forward.1} parent=1 // pred_region
      %s97 = ssub.s32 16, 16
      %98 = vsyncadd [#allocation18], %s97
      %s100 = sshll.u32 [#allocation17], 4
      %s101 = int_to_ptr.vmem [resolvable:$true] %s100
      %103 = dma.hbm_to_vmem [thread:$0]  %s9, 16, %s101, [#allocation18]
    $region33: #{generator_forward.1} parent=1 // pred_fallthru
      _
    // Predicated region
    $region34: #{generator_forward.1} parent=1 // pred_check
      _
    $region35: #{generator_forward.1} parent=1 // pred_check_branch
      %105 = sbr.rel (0) target = $region37
    $region36: #{generator_forward.1} parent=1 // pred_region
      %s107 = ssub.s32 16, 16
      %108 = vsyncadd [#allocation18], %s107
      %s110 = sshll.u32 [#allocation19], 4
      %s111 = int_to_ptr.vmem [resolvable:$true] %s110
      %113 = dma.hbm_to_vmem [thread:$0]  %s11, 16, %s111, [#allocation18]
    $region37: #{generator_forward.1} parent=1 // pred_fallthru
      _
    // Predicated region
    $region38: #{generator_forward.1} parent=1 // pred_check
      _
    $region39: #{generator_forward.1} parent=1 // pred_check_branch
      %115 = sbr.rel (0) target = $region41
    $region40: #{generator_forward.1} parent=1 // pred_region
      %116 = dma.done [#allocation7], 128
    $region41: #{generator_forward.1} parent=1 // pred_fallthru
      _
    // Predicated region
    $region42: #{generator_forward.1} parent=1 // pred_check
      _
    $region43: #{generator_forward.1} parent=1 // pred_check_branch
      %118 = sbr.rel (0) target = $region45
    $region44: #{generator_forward.1} parent=1 // pred_region
      %119 = dma.done [#allocation9], 16384
    $region45: #{generator_forward.1} parent=1 // pred_fallthru
      _
    // Predicated region
    $region46: #{generator_forward.1} parent=1 // pred_check
      _
    $region47: #{generator_forward.1} parent=1 // pred_check_branch
      %121 = sbr.rel (0) target = $region49
    $region48: #{generator_forward.1} parent=1 // pred_region
      %122 = dma.done [#allocation9], 512
    $region49: #{generator_forward.1} parent=1 // pred_fallthru
      _
    // Predicated region
    $region50: #{generator_forward.1} parent=1 // pred_check
      _
    $region51: #{generator_forward.1} parent=1 // pred_check_branch
      %124 = sbr.rel (0) target = $region53
    $region52: #{generator_forward.1} parent=1 // pred_region
      %125 = dma.done [#allocation12], 512
    $region53: #{generator_forward.1} parent=1 // pred_fallthru
      _
    // Predicated region
    $region54: #{generator_forward.1} parent=1 // pred_check
      _
    $region55: #{generator_forward.1} parent=1 // pred_check_branch
      %127 = sbr.rel (0) target = $region57
    $region56: #{generator_forward.1} parent=1 // pred_region
      %128 = dma.done [#allocation12], 16
    $region57: #{generator_forward.1} parent=1 // pred_fallthru
      _
    // Predicated region
    $region58: #{generator_forward.1} parent=1 // pred_check
      _
    $region59: #{generator_forward.1} parent=1 // pred_check_branch
      %130 = sbr.rel (0) target = $region61
    $region60: #{generator_forward.1} parent=1 // pred_region
      %131 = dma.done [#allocation15], 16
    $region61: #{generator_forward.1} parent=1 // pred_fallthru
      _
    // Predicated region
    $region62: #{generator_forward.1} parent=1 // pred_check
      _
    $region63: #{generator_forward.1} parent=1 // pred_check_branch
      %133 = sbr.rel (0) target = $region65
    $region64: #{generator_forward.1} parent=1 // pred_region
      %134 = dma.done [#allocation15], 16
    $region65: #{generator_forward.1} parent=1 // pred_fallthru
      _
    // Predicated region
    $region66: #{generator_forward.1} parent=1 // pred_check
      _
    $region67: #{generator_forward.1} parent=1 // pred_check_branch
      %136 = sbr.rel (0) target = $region69
    $region68: #{generator_forward.1} parent=1 // pred_region
      %137 = dma.done [#allocation18], 16
    $region69: #{generator_forward.1} parent=1 // pred_fallthru
      _
    // Predicated region
    $region70: #{generator_forward.1} parent=1 // pred_check
      _
    $region71: #{generator_forward.1} parent=1 // pred_check_branch
      %139 = sbr.rel (0) target = $region73
    $region72: #{generator_forward.1} parent=1 // pred_region
      %140 = dma.done [#allocation18], 16
    $region73: #{generator_forward.1} parent=1 // pred_fallthru
      _
    // Predicated region
    $region74: #{generator_forward.1} parent=1 // pred_check
      _
    $region75: #{generator_forward.1} parent=1 // pred_check_branch
      %143 = sbr.rel target = $region77
    $region76: #{generator_forward.1} parent=1 // pred_region
      %144 = sst [smem:[#allocation22]] [#allocation21]
      %145 = sst [smem:[#allocation23]] [#allocation20]
    $region77: #{generator_forward.1} parent=1 // pred_fallthru
      _
    %147 = shalt.err (0)
    %s149 = sshll.u32 [#allocation2], 4
    %s150 = int_to_ptr.vmem [resolvable:$true] %s149
    %152 = dma.hbm_to_vmem [thread:$0]  %s4, 8192, %s150, [#allocation5]
    %s153 = scalar_lea.sflag [#allocation5], 1
    // Predicated region
    $region78: #{generator_forward.1} parent=1 // pred_check
      _
    $region79: #{generator_forward.1} parent=1 // pred_check_branch
      %155 = sbr.rel target = $region81
    $region80: #{generator_forward.1} parent=1 // pred_region
      %156 = sst [smem:[#allocation22]] [#allocation25]
      %157 = sst [smem:[#allocation23]] [#allocation24]
    $region81: #{generator_forward.1} parent=1 // pred_fallthru
      _
    %159 = shalt.err (0)
    %s161 = sshll.u32 [#allocation3], 4
    %s162 = int_to_ptr.vmem [resolvable:$true] %s161
    %164 = dma.hbm_to_vmem [thread:$0]  %s7, 2048, %s162, %s153
    %s165 = scalar_lea.sflag [#allocation5], 2
    %p167 = scmp.lt.u32.totalorder 128, 8
    %p168 = pneg %p167
    // Predicated region
    $region82: #{generator_forward.1} parent=1 // pred_check
      _
    $region83: #{generator_forward.1} parent=1 // pred_check_branch
      %170 = sbr.rel (%p167) target = $region85
    $region84: #{generator_forward.1} parent=1 // pred_region
      %s186 = sand.u32 128, 7
      %p187 = scmp.eq.s32.totalorder %s186, 0
      // Predicated region
      $region97: #{generator_forward.1} parent=84 // pred_check
        %p188 = pneg %p187
      $region98: #{generator_forward.1} parent=84 // pred_check_branch
        %190 = sbr.rel (%p188) target = $region100
      $region99: #{generator_forward.1} parent=84 // pred_region
        loop: start=0, step=1, limit=1
        $region101: #{generator_forward.1} parent=99 // loop_pre_header
          _
        $region102: #{generator_forward.1} parent=99 // loop_header
          %s192 = sphi 0, %s196
          %p193 = scmp.ge.s32.totalorder %s192, 1
          %s197 = sphi %s10, %s10
          %s198 = sphi [#allocation4], [#allocation4]
        $region103: #{generator_forward.1} parent=99 // loop_header_branch
          %195 = sbr.rel (%p193) target = $region107
        $region104: #{generator_forward.1} parent=99 // loop_body
          %v199 = vld [vmem:[%s197] sm:$0xff]
          %200 = vst [vmem:[%s198] sm:$0xff] %v199
          %v201 = vld [vmem:[%s197 + $0x8] sm:$0xff]
          %202 = vst [vmem:[%s198 + $0x8] sm:$0xff] %v201
          %v203 = vld [vmem:[%s197 + $0x10] sm:$0xff]
          %204 = vst [vmem:[%s198 + $0x10] sm:$0xff] %v203
          %v205 = vld [vmem:[%s197 + $0x18] sm:$0xff]
          %206 = vst [vmem:[%s198 + $0x18] sm:$0xff] %v205
          %v207 = vld [vmem:[%s197 + $0x20] sm:$0xff]
          %208 = vst [vmem:[%s198 + $0x20] sm:$0xff] %v207
          %v209 = vld [vmem:[%s197 + $0x28] sm:$0xff]
          %210 = vst [vmem:[%s198 + $0x28] sm:$0xff] %v209
          %v211 = vld [vmem:[%s197 + $0x30] sm:$0xff]
          %212 = vst [vmem:[%s198 + $0x30] sm:$0xff] %v211
          %v213 = vld [vmem:[%s197 + $0x38] sm:$0xff]
          %214 = vst [vmem:[%s198 + $0x38] sm:$0xff] %v213
          %v215 = vld [vmem:[%s197 + $0x40] sm:$0xff]
          %216 = vst [vmem:[%s198 + $0x40] sm:$0xff] %v215
          %v217 = vld [vmem:[%s197 + $0x48] sm:$0xff]
          %218 = vst [vmem:[%s198 + $0x48] sm:$0xff] %v217
          %v219 = vld [vmem:[%s197 + $0x50] sm:$0xff]
          %220 = vst [vmem:[%s198 + $0x50] sm:$0xff] %v219
          %v221 = vld [vmem:[%s197 + $0x58] sm:$0xff]
          %222 = vst [vmem:[%s198 + $0x58] sm:$0xff] %v221
          %v223 = vld [vmem:[%s197 + $0x60] sm:$0xff]
          %224 = vst [vmem:[%s198 + $0x60] sm:$0xff] %v223
          %v225 = vld [vmem:[%s197 + $0x68] sm:$0xff]
          %226 = vst [vmem:[%s198 + $0x68] sm:$0xff] %v225
          %v227 = vld [vmem:[%s197 + $0x70] sm:$0xff]
          %228 = vst [vmem:[%s198 + $0x70] sm:$0xff] %v227
          %v229 = vld [vmem:[%s197 + $0x78] sm:$0xff]
          %230 = vst [vmem:[%s198 + $0x78] sm:$0xff] %v229
        $region105: #{generator_forward.1} parent=99 // loop_footer
          %s196 = sadd.s32 1, %s192
        $region106: #{generator_forward.1} parent=99 // loop_footer_branch
          %191 = sbr.rel target = $region102
        $region107: #{generator_forward.1} parent=99 // loop_exit
          _
      $region100: #{generator_forward.1} parent=84 // pred_fallthru
        _
      %p231 = pneg %p187
      // Predicated region
      $region108: #{generator_forward.1} parent=84 // pred_check
        _
      $region109: #{generator_forward.1} parent=84 // pred_check_branch
        %233 = sbr.rel (%p187) target = $region111
      $region110: #{generator_forward.1} parent=84 // pred_region
        %s234 = sand.u32 128, 7
      $region111: #{generator_forward.1} parent=84 // pred_fallthru
        _
    $region85: #{generator_forward.1} parent=1 // pred_fallthru
      _
    // Predicated region
    $region86: #{generator_forward.1} parent=1 // pred_check
      %p171 = pneg %p167
    $region87: #{generator_forward.1} parent=1 // pred_check_branch
      %173 = sbr.rel (%p171) target = $region89
    $region88: #{generator_forward.1} parent=1 // pred_region
      %s174 = sshll.u32 1, 128
      %s175 = ssub.s32 %s174, 1
      loop: start=0, step=1, limit=1
      $region90: #{generator_forward.1} parent=88 // loop_pre_header
        _
      $region91: #{generator_forward.1} parent=88 // loop_header
        %s177 = sphi 0, %s181
        %p178 = scmp.ge.s32.totalorder %s177, 1
        %s182 = sphi %s10, %s10
        %s183 = sphi [#allocation4], [#allocation4]
      $region92: #{generator_forward.1} parent=88 // loop_header_branch
        %180 = sbr.rel (%p178) target = $region96
      $region93: #{generator_forward.1} parent=88 // loop_body
        %v184 = vld [vmem:[%s182] sm:%s175]
        %185 = vst [vmem:[%s183] sm:%s175] %v184
      $region94: #{generator_forward.1} parent=88 // loop_footer
        %s181 = sadd.s32 1, %s177
      $region95: #{generator_forward.1} parent=88 // loop_footer_branch
        %176 = sbr.rel target = $region91
      $region96: #{generator_forward.1} parent=88 // loop_exit
        _
    $region89: #{generator_forward.1} parent=1 // pred_fallthru
      _
    // Predicated region
    $region112: #{generator_forward.1} parent=1 // pred_check
      _
    $region113: #{generator_forward.1} parent=1 // pred_check_branch
      %237 = sbr.rel (0) target = $region115
    $region114: #{generator_forward.1} parent=1 // pred_region
      %238 = vsyncadd %s165, 2048
    $region115: #{generator_forward.1} parent=1 // pred_fallthru
      _
    %v239 = vld [vmem:[#allocation6] sm:$0xff]
    %v240 = vpack.c.bf16 %v239, %v239
    %v241 = vld [vmem:[#allocation8] sm:$0xff]
    %v242 = vld [vmem:[#allocation8 + $0x8] sm:$0xff]
    %v243 = vld [vmem:[#allocation8 + $0x10] sm:$0xff]
    %v244 = vld [vmem:[#allocation8 + $0x18] sm:$0xff]
    %v245 = vld [vmem:[#allocation8 + $0x20] sm:$0xff]
    %v246 = vld [vmem:[#allocation8 + $0x28] sm:$0xff]
    %v247 = vld [vmem:[#allocation8 + $0x30] sm:$0xff]
    %v248 = vld [vmem:[#allocation8 + $0x38] sm:$0xff]
    %v249 = vld [vmem:[#allocation8 + $0x40] sm:$0xff]
    %v250 = vld [vmem:[#allocation8 + $0x48] sm:$0xff]
    %v251 = vld [vmem:[#allocation8 + $0x50] sm:$0xff]
    %v252 = vld [vmem:[#allocation8 + $0x58] sm:$0xff]
    %v253 = vld [vmem:[#allocation8 + $0x60] sm:$0xff]
    %v254 = vld [vmem:[#allocation8 + $0x68] sm:$0xff]
    %v255 = vld [vmem:[#allocation8 + $0x70] sm:$0xff]
    %v256 = vld [vmem:[#allocation8 + $0x78] sm:$0xff]
    %v257 = vld [vmem:[#allocation8 + $0x80] sm:$0xff]
    %v258 = vld [vmem:[#allocation8 + $0x88] sm:$0xff]
    %v259 = vld [vmem:[#allocation8 + $0x90] sm:$0xff]
    %v260 = vld [vmem:[#allocation8 + $0x98] sm:$0xff]
    %v261 = vld [vmem:[#allocation8 + $0xa0] sm:$0xff]
    %v262 = vld [vmem:[#allocation8 + $0xa8] sm:$0xff]
    %v263 = vld [vmem:[#allocation8 + $0xb0] sm:$0xff]
    %v264 = vld [vmem:[#allocation8 + $0xb8] sm:$0xff]
    %v265 = vld [vmem:[#allocation8 + $0xc0] sm:$0xff]
    %v266 = vld [vmem:[#allocation8 + $0xc8] sm:$0xff]
    %v267 = vld [vmem:[#allocation8 + $0xd0] sm:$0xff]
    %v268 = vld [vmem:[#allocation8 + $0xd8] sm:$0xff]
    %v269 = vld [vmem:[#allocation8 + $0xe0] sm:$0xff]
    %v270 = vld [vmem:[#allocation8 + $0xe8] sm:$0xff]
    %v271 = vld [vmem:[#allocation8 + $0xf0] sm:$0xff]
    %v272 = vld [vmem:[#allocation8 + $0xf8] sm:$0xff]
    %v273 = vld [vmem:[#allocation8 + $0x100] sm:$0xff]
    %v274 = vld [vmem:[#allocation8 + $0x108] sm:$0xff]
    %v275 = vld [vmem:[#allocation8 + $0x110] sm:$0xff]
    %v276 = vld [vmem:[#allocation8 + $0x118] sm:$0xff]
    %v277 = vld [vmem:[#allocation8 + $0x120] sm:$0xff]
    %v278 = vld [vmem:[#allocation8 + $0x128] sm:$0xff]
    %v279 = vld [vmem:[#allocation8 + $0x130] sm:$0xff]
    %v280 = vld [vmem:[#allocation8 + $0x138] sm:$0xff]
    %v281 = vld [vmem:[#allocation8 + $0x140] sm:$0xff]
    %v282 = vld [vmem:[#allocation8 + $0x148] sm:$0xff]
    %v283 = vld [vmem:[#allocation8 + $0x150] sm:$0xff]
    %v284 = vld [vmem:[#allocation8 + $0x158] sm:$0xff]
    %v285 = vld [vmem:[#allocation8 + $0x160] sm:$0xff]
    %v286 = vld [vmem:[#allocation8 + $0x168] sm:$0xff]
    %v287 = vld [vmem:[#allocation8 + $0x170] sm:$0xff]
    %v288 = vld [vmem:[#allocation8 + $0x178] sm:$0xff]
    %v289 = vld [vmem:[#allocation8 + $0x180] sm:$0xff]
    %v290 = vld [vmem:[#allocation8 + $0x188] sm:$0xff]
    %v291 = vld [vmem:[#allocation8 + $0x190] sm:$0xff]
    %v292 = vld [vmem:[#allocation8 + $0x198] sm:$0xff]
    %v293 = vld [vmem:[#allocation8 + $0x1a0] sm:$0xff]
    %v294 = vld [vmem:[#allocation8 + $0x1a8] sm:$0xff]
    %v295 = vld [vmem:[#allocation8 + $0x1b0] sm:$0xff]
    %v296 = vld [vmem:[#allocation8 + $0x1b8] sm:$0xff]
    %v297 = vld [vmem:[#allocation8 + $0x1c0] sm:$0xff]
    %v298 = vld [vmem:[#allocation8 + $0x1c8] sm:$0xff]
    %v299 = vld [vmem:[#allocation8 + $0x1d0] sm:$0xff]
    %v300 = vld [vmem:[#allocation8 + $0x1d8] sm:$0xff]
    %v301 = vld [vmem:[#allocation8 + $0x1e0] sm:$0xff]
    %v302 = vld [vmem:[#allocation8 + $0x1e8] sm:$0xff]
    %v303 = vld [vmem:[#allocation8 + $0x1f0] sm:$0xff]
    %v304 = vld [vmem:[#allocation8 + $0x1f8] sm:$0xff]
    %v305 = vld [vmem:[#allocation8 + $0x200] sm:$0xff]
    %v306 = vld [vmem:[#allocation8 + $0x208] sm:$0xff]
    %v307 = vld [vmem:[#allocation8 + $0x210] sm:$0xff]
    %v308 = vld [vmem:[#allocation8 + $0x218] sm:$0xff]
    %v309 = vld [vmem:[#allocation8 + $0x220] sm:$0xff]
    %v310 = vld [vmem:[#allocation8 + $0x228] sm:$0xff]
    %v311 = vld [vmem:[#allocation8 + $0x230] sm:$0xff]
    %v312 = vld [vmem:[#allocation8 + $0x238] sm:$0xff]
    %v313 = vld [vmem:[#allocation8 + $0x240] sm:$0xff]
    %v314 = vld [vmem:[#allocation8 + $0x248] sm:$0xff]
    %v315 = vld [vmem:[#allocation8 + $0x250] sm:$0xff]
    %v316 = vld [vmem:[#allocation8 + $0x258] sm:$0xff]
    %v317 = vld [vmem:[#allocation8 + $0x260] sm:$0xff]
    %v318 = vld [vmem:[#allocation8 + $0x268] sm:$0xff]
    %v319 = vld [vmem:[#allocation8 + $0x270] sm:$0xff]
    %v320 = vld [vmem:[#allocation8 + $0x278] sm:$0xff]
    %v321 = vld [vmem:[#allocation8 + $0x280] sm:$0xff]
    %v322 = vld [vmem:[#allocation8 + $0x288] sm:$0xff]
    %v323 = vld [vmem:[#allocation8 + $0x290] sm:$0xff]
    %v324 = vld [vmem:[#allocation8 + $0x298] sm:$0xff]
    %v325 = vld [vmem:[#allocation8 + $0x2a0] sm:$0xff]
    %v326 = vld [vmem:[#allocation8 + $0x2a8] sm:$0xff]
    %v327 = vld [vmem:[#allocation8 + $0x2b0] sm:$0xff]
    %v328 = vld [vmem:[#allocation8 + $0x2b8] sm:$0xff]
    %v329 = vld [vmem:[#allocation8 + $0x2c0] sm:$0xff]
    %v330 = vld [vmem:[#allocation8 + $0x2c8] sm:$0xff]
    %v331 = vld [vmem:[#allocation8 + $0x2d0] sm:$0xff]
    %v332 = vld [vmem:[#allocation8 + $0x2d8] sm:$0xff]
    %v333 = vld [vmem:[#allocation8 + $0x2e0] sm:$0xff]
    %v334 = vld [vmem:[#allocation8 + $0x2e8] sm:$0xff]
    %v335 = vld [vmem:[#allocation8 + $0x2f0] sm:$0xff]
    %v336 = vld [vmem:[#allocation8 + $0x2f8] sm:$0xff]
    %v337 = vld [vmem:[#allocation8 + $0x300] sm:$0xff]
    %v338 = vld [vmem:[#allocation8 + $0x308] sm:$0xff]
    %v339 = vld [vmem:[#allocation8 + $0x310] sm:$0xff]
    %v340 = vld [vmem:[#allocation8 + $0x318] sm:$0xff]
    %v341 = vld [vmem:[#allocation8 + $0x320] sm:$0xff]
    %v342 = vld [vmem:[#allocation8 + $0x328] sm:$0xff]
    %v343 = vld [vmem:[#allocation8 + $0x330] sm:$0xff]
    %v344 = vld [vmem:[#allocation8 + $0x338] sm:$0xff]
    %v345 = vld [vmem:[#allocation8 + $0x340] sm:$0xff]
    %v346 = vld [vmem:[#allocation8 + $0x348] sm:$0xff]
    %v347 = vld [vmem:[#allocation8 + $0x350] sm:$0xff]
    %v348 = vld [vmem:[#allocation8 + $0x358] sm:$0xff]
    %v349 = vld [vmem:[#allocation8 + $0x360] sm:$0xff]
    %v350 = vld [vmem:[#allocation8 + $0x368] sm:$0xff]
    %v351 = vld [vmem:[#allocation8 + $0x370] sm:$0xff]
    %v352 = vld [vmem:[#allocation8 + $0x378] sm:$0xff]
    %v353 = vld [vmem:[#allocation8 + $0x380] sm:$0xff]
    %v354 = vld [vmem:[#allocation8 + $0x388] sm:$0xff]
    %v355 = vld [vmem:[#allocation8 + $0x390] sm:$0xff]
    %v356 = vld [vmem:[#allocation8 + $0x398] sm:$0xff]
    %v357 = vld [vmem:[#allocation8 + $0x3a0] sm:$0xff]
    %v358 = vld [vmem:[#allocation8 + $0x3a8] sm:$0xff]
    %v359 = vld [vmem:[#allocation8 + $0x3b0] sm:$0xff]
    %v360 = vld [vmem:[#allocation8 + $0x3b8] sm:$0xff]
    %v361 = vld [vmem:[#allocation8 + $0x3c0] sm:$0xff]
    %v362 = vld [vmem:[#allocation8 + $0x3c8] sm:$0xff]
    %v363 = vld [vmem:[#allocation8 + $0x3d0] sm:$0xff]
    %v364 = vld [vmem:[#allocation8 + $0x3d8] sm:$0xff]
    %v365 = vld [vmem:[#allocation8 + $0x3e0] sm:$0xff]
    %v366 = vld [vmem:[#allocation8 + $0x3e8] sm:$0xff]
    %v367 = vld [vmem:[#allocation8 + $0x3f0] sm:$0xff]
    %v368 = vld [vmem:[#allocation8 + $0x3f8] sm:$0xff]
    %v497 = vunpack.c.l.b16 %v241
    %v498 = vunpack.c.h.b16 %v241
    %v499 = vunpack.c.l.b16 %v242
    %v500 = vunpack.c.h.b16 %v242
    %v501 = vunpack.c.l.b16 %v243
    %v502 = vunpack.c.h.b16 %v243
    %v503 = vunpack.c.l.b16 %v244
    %v504 = vunpack.c.h.b16 %v244
    %v505 = vunpack.c.l.b16 %v245
    %v506 = vunpack.c.h.b16 %v245
    %v507 = vunpack.c.l.b16 %v246
    %v508 = vunpack.c.h.b16 %v246
    %v509 = vunpack.c.l.b16 %v247
    %v510 = vunpack.c.h.b16 %v247
    %v511 = vunpack.c.l.b16 %v248
    %v512 = vunpack.c.h.b16 %v248
    %v513 = vunpack.c.l.b16 %v249
    %v514 = vunpack.c.h.b16 %v249
    %v515 = vunpack.c.l.b16 %v250
    %v516 = vunpack.c.h.b16 %v250
    %v517 = vunpack.c.l.b16 %v251
    %v518 = vunpack.c.h.b16 %v251
    %v519 = vunpack.c.l.b16 %v252
    %v520 = vunpack.c.h.b16 %v252
    %v521 = vunpack.c.l.b16 %v253
    %v522 = vunpack.c.h.b16 %v253
    %v523 = vunpack.c.l.b16 %v254
    %v524 = vunpack.c.h.b16 %v254
    %v525 = vunpack.c.l.b16 %v255
    %v526 = vunpack.c.h.b16 %v255
    %v527 = vunpack.c.l.b16 %v256
    %v528 = vunpack.c.h.b16 %v256
    %v529 = vunpack.c.l.b16 %v257
    %v530 = vunpack.c.h.b16 %v257
    %v531 = vunpack.c.l.b16 %v258
    %v532 = vunpack.c.h.b16 %v258
    %v533 = vunpack.c.l.b16 %v259
    %v534 = vunpack.c.h.b16 %v259
    %v535 = vunpack.c.l.b16 %v260
    %v536 = vunpack.c.h.b16 %v260
    %v537 = vunpack.c.l.b16 %v261
    %v538 = vunpack.c.h.b16 %v261
    %v539 = vunpack.c.l.b16 %v262
    %v540 = vunpack.c.h.b16 %v262
    %v541 = vunpack.c.l.b16 %v263
    %v542 = vunpack.c.h.b16 %v263
    %v543 = vunpack.c.l.b16 %v264
    %v544 = vunpack.c.h.b16 %v264
    %v545 = vunpack.c.l.b16 %v265
    %v546 = vunpack.c.h.b16 %v265
    %v547 = vunpack.c.l.b16 %v266
    %v548 = vunpack.c.h.b16 %v266
    %v549 = vunpack.c.l.b16 %v267
    %v550 = vunpack.c.h.b16 %v267
    %v551 = vunpack.c.l.b16 %v268
    %v552 = vunpack.c.h.b16 %v268
    %v553 = vunpack.c.l.b16 %v269
    %v554 = vunpack.c.h.b16 %v269
    %v555 = vunpack.c.l.b16 %v270
    %v556 = vunpack.c.h.b16 %v270
    %v557 = vunpack.c.l.b16 %v271
    %v558 = vunpack.c.h.b16 %v271
    %v559 = vunpack.c.l.b16 %v272
    %v560 = vunpack.c.h.b16 %v272
    %v561 = vunpack.c.l.b16 %v273
    %v562 = vunpack.c.h.b16 %v273
    %v563 = vunpack.c.l.b16 %v274
    %v564 = vunpack.c.h.b16 %v274
    %v565 = vunpack.c.l.b16 %v275
    %v566 = vunpack.c.h.b16 %v275
    %v567 = vunpack.c.l.b16 %v276
    %v568 = vunpack.c.h.b16 %v276
    %v569 = vunpack.c.l.b16 %v277
    %v570 = vunpack.c.h.b16 %v277
    %v571 = vunpack.c.l.b16 %v278
    %v572 = vunpack.c.h.b16 %v278
    %v573 = vunpack.c.l.b16 %v279
    %v574 = vunpack.c.h.b16 %v279
    %v575 = vunpack.c.l.b16 %v280
    %v576 = vunpack.c.h.b16 %v280
    %v577 = vunpack.c.l.b16 %v281
    %v578 = vunpack.c.h.b16 %v281
    %v579 = vunpack.c.l.b16 %v282
    %v580 = vunpack.c.h.b16 %v282
    %v581 = vunpack.c.l.b16 %v283
    %v582 = vunpack.c.h.b16 %v283
    %v583 = vunpack.c.l.b16 %v284
    %v584 = vunpack.c.h.b16 %v284
    %v585 = vunpack.c.l.b16 %v285
    %v586 = vunpack.c.h.b16 %v285
    %v587 = vunpack.c.l.b16 %v286
    %v588 = vunpack.c.h.b16 %v286
    %v589 = vunpack.c.l.b16 %v287
    %v590 = vunpack.c.h.b16 %v287
    %v591 = vunpack.c.l.b16 %v288
    %v592 = vunpack.c.h.b16 %v288
    %v593 = vunpack.c.l.b16 %v289
    %v594 = vunpack.c.h.b16 %v289
    %v595 = vunpack.c.l.b16 %v290
    %v596 = vunpack.c.h.b16 %v290
    %v597 = vunpack.c.l.b16 %v291
    %v598 = vunpack.c.h.b16 %v291
    %v599 = vunpack.c.l.b16 %v292
    %v600 = vunpack.c.h.b16 %v292
    %v601 = vunpack.c.l.b16 %v293
    %v602 = vunpack.c.h.b16 %v293
    %v603 = vunpack.c.l.b16 %v294
    %v604 = vunpack.c.h.b16 %v294
    %v605 = vunpack.c.l.b16 %v295
    %v606 = vunpack.c.h.b16 %v295
    %v607 = vunpack.c.l.b16 %v296
    %v608 = vunpack.c.h.b16 %v296
    %v609 = vunpack.c.l.b16 %v297
    %v610 = vunpack.c.h.b16 %v297
    %v611 = vunpack.c.l.b16 %v298
    %v612 = vunpack.c.h.b16 %v298
    %v613 = vunpack.c.l.b16 %v299
    %v614 = vunpack.c.h.b16 %v299
    %v615 = vunpack.c.l.b16 %v300
    %v616 = vunpack.c.h.b16 %v300
    %v617 = vunpack.c.l.b16 %v301
    %v618 = vunpack.c.h.b16 %v301
    %v619 = vunpack.c.l.b16 %v302
    %v620 = vunpack.c.h.b16 %v302
    %v621 = vunpack.c.l.b16 %v303
    %v622 = vunpack.c.h.b16 %v303
    %v623 = vunpack.c.l.b16 %v304
    %v624 = vunpack.c.h.b16 %v304
    %v625 = vunpack.c.l.b16 %v305
    %v626 = vunpack.c.h.b16 %v305
    %v627 = vunpack.c.l.b16 %v306
    %v628 = vunpack.c.h.b16 %v306
    %v629 = vunpack.c.l.b16 %v307
    %v630 = vunpack.c.h.b16 %v307
    %v631 = vunpack.c.l.b16 %v308
    %v632 = vunpack.c.h.b16 %v308
    %v633 = vunpack.c.l.b16 %v309
    %v634 = vunpack.c.h.b16 %v309
    %v635 = vunpack.c.l.b16 %v310
    %v636 = vunpack.c.h.b16 %v310
    %v637 = vunpack.c.l.b16 %v311
    %v638 = vunpack.c.h.b16 %v311
    %v639 = vunpack.c.l.b16 %v312
    %v640 = vunpack.c.h.b16 %v312
    %v641 = vunpack.c.l.b16 %v313
    %v642 = vunpack.c.h.b16 %v313
    %v643 = vunpack.c.l.b16 %v314
    %v644 = vunpack.c.h.b16 %v314
    %v645 = vunpack.c.l.b16 %v315
    %v646 = vunpack.c.h.b16 %v315
    %v647 = vunpack.c.l.b16 %v316
    %v648 = vunpack.c.h.b16 %v316
    %v649 = vunpack.c.l.b16 %v317
    %v650 = vunpack.c.h.b16 %v317
    %v651 = vunpack.c.l.b16 %v318
    %v652 = vunpack.c.h.b16 %v318
    %v653 = vunpack.c.l.b16 %v319
    %v654 = vunpack.c.h.b16 %v319
    %v655 = vunpack.c.l.b16 %v320
    %v656 = vunpack.c.h.b16 %v320
    %v657 = vunpack.c.l.b16 %v321
    %v658 = vunpack.c.h.b16 %v321
    %v659 = vunpack.c.l.b16 %v322
    %v660 = vunpack.c.h.b16 %v322
    %v661 = vunpack.c.l.b16 %v323
    %v662 = vunpack.c.h.b16 %v323
    %v663 = vunpack.c.l.b16 %v324
    %v664 = vunpack.c.h.b16 %v324
    %v665 = vunpack.c.l.b16 %v325
    %v666 = vunpack.c.h.b16 %v325
    %v667 = vunpack.c.l.b16 %v326
    %v668 = vunpack.c.h.b16 %v326
    %v669 = vunpack.c.l.b16 %v327
    %v670 = vunpack.c.h.b16 %v327
    %v671 = vunpack.c.l.b16 %v328
    %v672 = vunpack.c.h.b16 %v328
    %v673 = vunpack.c.l.b16 %v329
    %v674 = vunpack.c.h.b16 %v329
    %v675 = vunpack.c.l.b16 %v330
    %v676 = vunpack.c.h.b16 %v330
    %v677 = vunpack.c.l.b16 %v331
    %v678 = vunpack.c.h.b16 %v331
    %v679 = vunpack.c.l.b16 %v332
    %v680 = vunpack.c.h.b16 %v332
    %v681 = vunpack.c.l.b16 %v333
    %v682 = vunpack.c.h.b16 %v333
    %v683 = vunpack.c.l.b16 %v334
    %v684 = vunpack.c.h.b16 %v334
    %v685 = vunpack.c.l.b16 %v335
    %v686 = vunpack.c.h.b16 %v335
    %v687 = vunpack.c.l.b16 %v336
    %v688 = vunpack.c.h.b16 %v336
    %v689 = vunpack.c.l.b16 %v337
    %v690 = vunpack.c.h.b16 %v337
    %v691 = vunpack.c.l.b16 %v338
    %v692 = vunpack.c.h.b16 %v338
    %v693 = vunpack.c.l.b16 %v339
    %v694 = vunpack.c.h.b16 %v339
    %v695 = vunpack.c.l.b16 %v340
    %v696 = vunpack.c.h.b16 %v340
    %v697 = vunpack.c.l.b16 %v341
    %v698 = vunpack.c.h.b16 %v341
    %v699 = vunpack.c.l.b16 %v342
    %v700 = vunpack.c.h.b16 %v342
    %v701 = vunpack.c.l.b16 %v343
    %v702 = vunpack.c.h.b16 %v343
    %v703 = vunpack.c.l.b16 %v344
    %v704 = vunpack.c.h.b16 %v344
    %v705 = vunpack.c.l.b16 %v345
    %v706 = vunpack.c.h.b16 %v345
    %v707 = vunpack.c.l.b16 %v346
    %v708 = vunpack.c.h.b16 %v346
    %v709 = vunpack.c.l.b16 %v347
    %v710 = vunpack.c.h.b16 %v347
    %v711 = vunpack.c.l.b16 %v348
    %v712 = vunpack.c.h.b16 %v348
    %v713 = vunpack.c.l.b16 %v349
    %v714 = vunpack.c.h.b16 %v349
    %v715 = vunpack.c.l.b16 %v350
    %v716 = vunpack.c.h.b16 %v350
    %v717 = vunpack.c.l.b16 %v351
    %v718 = vunpack.c.h.b16 %v351
    %v719 = vunpack.c.l.b16 %v352
    %v720 = vunpack.c.h.b16 %v352
    %v721 = vunpack.c.l.b16 %v353
    %v722 = vunpack.c.h.b16 %v353
    %v723 = vunpack.c.l.b16 %v354
    %v724 = vunpack.c.h.b16 %v354
    %v725 = vunpack.c.l.b16 %v355
    %v726 = vunpack.c.h.b16 %v355
    %v727 = vunpack.c.l.b16 %v356
    %v728 = vunpack.c.h.b16 %v356
    %v729 = vunpack.c.l.b16 %v357
    %v730 = vunpack.c.h.b16 %v357
    %v731 = vunpack.c.l.b16 %v358
    %v732 = vunpack.c.h.b16 %v358
    %v733 = vunpack.c.l.b16 %v359
    %v734 = vunpack.c.h.b16 %v359
    %v735 = vunpack.c.l.b16 %v360
    %v736 = vunpack.c.h.b16 %v360
    %v737 = vunpack.c.l.b16 %v361
    %v738 = vunpack.c.h.b16 %v361
    %v739 = vunpack.c.l.b16 %v362
    %v740 = vunpack.c.h.b16 %v362
    %v741 = vunpack.c.l.b16 %v363
    %v742 = vunpack.c.h.b16 %v363
    %v743 = vunpack.c.l.b16 %v364
    %v744 = vunpack.c.h.b16 %v364
    %v745 = vunpack.c.l.b16 %v365
    %v746 = vunpack.c.h.b16 %v365
    %v747 = vunpack.c.l.b16 %v366
    %v748 = vunpack.c.h.b16 %v366
    %v749 = vunpack.c.l.b16 %v367
    %v750 = vunpack.c.h.b16 %v367
    %v751 = vunpack.c.l.b16 %v368
    %v752 = vunpack.c.h.b16 %v368
    %v753 = vpack.c.b16 %v529, %v497
    %v754 = vpack.c.b16 %v530, %v498
    %v755 = vpack.c.b16 %v531, %v499
    %v756 = vpack.c.b16 %v532, %v500
    %v757 = vpack.c.b16 %v533, %v501
    %v758 = vpack.c.b16 %v534, %v502
    %v759 = vpack.c.b16 %v535, %v503
    %v760 = vpack.c.b16 %v536, %v504
    %v761 = vpack.c.b16 %v537, %v505
    %v762 = vpack.c.b16 %v538, %v506
    %v763 = vpack.c.b16 %v539, %v507
    %v764 = vpack.c.b16 %v540, %v508
    %v765 = vpack.c.b16 %v541, %v509
    %v766 = vpack.c.b16 %v542, %v510
    %v767 = vpack.c.b16 %v543, %v511
    %v768 = vpack.c.b16 %v544, %v512
    %v769 = vpack.c.b16 %v545, %v513
    %v770 = vpack.c.b16 %v546, %v514
    %v771 = vpack.c.b16 %v547, %v515
    %v772 = vpack.c.b16 %v548, %v516
    %v773 = vpack.c.b16 %v549, %v517
    %v774 = vpack.c.b16 %v550, %v518
    %v775 = vpack.c.b16 %v551, %v519
    %v776 = vpack.c.b16 %v552, %v520
    %v777 = vpack.c.b16 %v553, %v521
    %v778 = vpack.c.b16 %v554, %v522
    %v779 = vpack.c.b16 %v555, %v523
    %v780 = vpack.c.b16 %v556, %v524
    %v781 = vpack.c.b16 %v557, %v525
    %v782 = vpack.c.b16 %v558, %v526
    %v783 = vpack.c.b16 %v559, %v527
    %v784 = vpack.c.b16 %v560, %v528
    %v785 = vpack.c.b16 %v593, %v561
    %v786 = vpack.c.b16 %v594, %v562
    %v787 = vpack.c.b16 %v595, %v563
    %v788 = vpack.c.b16 %v596, %v564
    %v789 = vpack.c.b16 %v597, %v565
    %v790 = vpack.c.b16 %v598, %v566
    %v791 = vpack.c.b16 %v599, %v567
    %v792 = vpack.c.b16 %v600, %v568
    %v793 = vpack.c.b16 %v601, %v569
    %v794 = vpack.c.b16 %v602, %v570
    %v795 = vpack.c.b16 %v603, %v571
    %v796 = vpack.c.b16 %v604, %v572
    %v797 = vpack.c.b16 %v605, %v573
    %v798 = vpack.c.b16 %v606, %v574
    %v799 = vpack.c.b16 %v607, %v575
    %v800 = vpack.c.b16 %v608, %v576
    %v801 = vpack.c.b16 %v609, %v577
    %v802 = vpack.c.b16 %v610, %v578
    %v803 = vpack.c.b16 %v611, %v579
    %v804 = vpack.c.b16 %v612, %v580
    %v805 = vpack.c.b16 %v613, %v581
    %v806 = vpack.c.b16 %v614, %v582
    %v807 = vpack.c.b16 %v615, %v583
    %v808 = vpack.c.b16 %v616, %v584
    %v809 = vpack.c.b16 %v617, %v585
    %v810 = vpack.c.b16 %v618, %v586
    %v811 = vpack.c.b16 %v619, %v587
    %v812 = vpack.c.b16 %v620, %v588
    %v813 = vpack.c.b16 %v621, %v589
    %v814 = vpack.c.b16 %v622, %v590
    %v815 = vpack.c.b16 %v623, %v591
    %v816 = vpack.c.b16 %v624, %v592
    %v817 = vpack.c.b16 %v657, %v625
    %v818 = vpack.c.b16 %v658, %v626
    %v819 = vpack.c.b16 %v659, %v627
    %v820 = vpack.c.b16 %v660, %v628
    %v821 = vpack.c.b16 %v661, %v629
    %v822 = vpack.c.b16 %v662, %v630
    %v823 = vpack.c.b16 %v663, %v631
    %v824 = vpack.c.b16 %v664, %v632
    %v825 = vpack.c.b16 %v665, %v633
    %v826 = vpack.c.b16 %v666, %v634
    %v827 = vpack.c.b16 %v667, %v635
    %v828 = vpack.c.b16 %v668, %v636
    %v829 = vpack.c.b16 %v669, %v637
    %v830 = vpack.c.b16 %v670, %v638
    %v831 = vpack.c.b16 %v671, %v639
    %v832 = vpack.c.b16 %v672, %v640
    %v833 = vpack.c.b16 %v673, %v641
    %v834 = vpack.c.b16 %v674, %v642
    %v835 = vpack.c.b16 %v675, %v643
    %v836 = vpack.c.b16 %v676, %v644
    %v837 = vpack.c.b16 %v677, %v645
    %v838 = vpack.c.b16 %v678, %v646
    %v839 = vpack.c.b16 %v679, %v647
    %v840 = vpack.c.b16 %v680, %v648
    %v841 = vpack.c.b16 %v681, %v649
    %v842 = vpack.c.b16 %v682, %v650
    %v843 = vpack.c.b16 %v683, %v651
    %v844 = vpack.c.b16 %v684, %v652
    %v845 = vpack.c.b16 %v685, %v653
    %v846 = vpack.c.b16 %v686, %v654
    %v847 = vpack.c.b16 %v687, %v655
    %v848 = vpack.c.b16 %v688, %v656
    %v849 = vpack.c.b16 %v721, %v689
    %v850 = vpack.c.b16 %v722, %v690
    %v851 = vpack.c.b16 %v723, %v691
    %v852 = vpack.c.b16 %v724, %v692
    %v853 = vpack.c.b16 %v725, %v693
    %v854 = vpack.c.b16 %v726, %v694
    %v855 = vpack.c.b16 %v727, %v695
    %v856 = vpack.c.b16 %v728, %v696
    %v857 = vpack.c.b16 %v729, %v697
    %v858 = vpack.c.b16 %v730, %v698
    %v859 = vpack.c.b16 %v731, %v699
    %v860 = vpack.c.b16 %v732, %v700
    %v861 = vpack.c.b16 %v733, %v701
    %v862 = vpack.c.b16 %v734, %v702
    %v863 = vpack.c.b16 %v735, %v703
    %v864 = vpack.c.b16 %v736, %v704
    %v865 = vpack.c.b16 %v737, %v705
    %v866 = vpack.c.b16 %v738, %v706
    %v867 = vpack.c.b16 %v739, %v707
    %v868 = vpack.c.b16 %v740, %v708
    %v869 = vpack.c.b16 %v741, %v709
    %v870 = vpack.c.b16 %v742, %v710
    %v871 = vpack.c.b16 %v743, %v711
    %v872 = vpack.c.b16 %v744, %v712
    %v873 = vpack.c.b16 %v745, %v713
    %v874 = vpack.c.b16 %v746, %v714
    %v875 = vpack.c.b16 %v747, %v715
    %v876 = vpack.c.b16 %v748, %v716
    %v877 = vpack.c.b16 %v749, %v717
    %v878 = vpack.c.b16 %v750, %v718
    %v879 = vpack.c.b16 %v751, %v719
    %v880 = vpack.c.b16 %v752, %v720
    %vm1009 = vcmask 523264
    %v1011 = vsel %vm1009, %v240, 0
    %1013 = vmatprep.subr.bf16.mxu0 0
    %1014 = vmatpush1.bf16.msra.mxu0 0
    %1015 = vmatprep.subr.bf16.mxu0 0
    %1016 = vmatpush1.bf16.msra.mxu0 0
    %1017 = vmatprep.subr.bf16.mxu0 0
    %1018 = vmatpush1.bf16.msra.mxu0 0
    %1019 = vmatprep.subr.bf16.mxu0 0
    %1020 = vmatpush1.bf16.msra.mxu0 0
    %1021 = vmatprep.subr.bf16.mxu0 %v850
    %1022 = vmatpush1.bf16.msra.mxu0 %v849
    %1023 = vmatprep.subr.bf16.mxu0 %v818
    %1024 = vmatpush1.bf16.msra.mxu0 %v817
    %1025 = vmatprep.subr.bf16.mxu0 %v786
    %1026 = vmatpush1.bf16.msra.mxu0 %v785
    %1027 = vmatprep.subr.bf16.mxu0 %v754
    %1028 = vmatpush1.bf16.msra.mxu0 %v753
    %1029 = vmatprep.subr.bf16.mxu0 0
    %1030 = vmatpush2.bf16.msra.mxu0 0
    %1031 = vmatprep.subr.bf16.mxu0 0
    %1032 = vmatpush2.bf16.msra.mxu0 0
    %1033 = vmatprep.subr.bf16.mxu0 0
    %1034 = vmatpush2.bf16.msra.mxu0 0
    %1035 = vmatprep.subr.bf16.mxu0 0
    %1036 = vmatpush2.bf16.msra.mxu0 0
    %1037 = vmatprep.subr.bf16.mxu0 0
    %1038 = vmatpush2.bf16.msra.mxu0 0
    %1039 = vmatprep.subr.bf16.mxu0 0
    %1040 = vmatpush2.bf16.msra.mxu0 0
    %1041 = vmatprep.subr.bf16.mxu0 0
    %1042 = vmatpush2.bf16.msra.mxu0 0
    %1043 = vmatprep.subr.bf16.mxu0 0
    %1044 = vmatpush2.bf16.msra.mxu0 0
    %1045 = vmatprep.mubr.bf16.mxu0 0
    %1046 = vmatmul.mubr.bf16.gmra.mxu0 %v1011
    %v1047 = vpop.f32.mrf.mxu0
    %v1048 = vadd.f32 0.0, %v1047
    %v1049 = vpop.f32.mrf.mxu0
    %v1050 = vadd.f32 0.0, %v1049
    %v1051 = vpop.f32.mrf.mxu0
    %v1052 = vpop.f32.mrf.mxu0
    %1053 = vdwg.mxu0
    %1054 = vmatprep.subr.bf16.mxu0 0
    %1055 = vmatpush1.bf16.msra.mxu0 0
    %1056 = vmatprep.subr.bf16.mxu0 0
    %1057 = vmatpush1.bf16.msra.mxu0 0
    %1058 = vmatprep.subr.bf16.mxu0 0
    %1059 = vmatpush1.bf16.msra.mxu0 0
    %1060 = vmatprep.subr.bf16.mxu0 0
    %1061 = vmatpush1.bf16.msra.mxu0 0
    %1062 = vmatprep.subr.bf16.mxu0 %v852
    %1063 = vmatpush1.bf16.msra.mxu0 %v851
    %1064 = vmatprep.subr.bf16.mxu0 %v820
    %1065 = vmatpush1.bf16.msra.mxu0 %v819
    %1066 = vmatprep.subr.bf16.mxu0 %v788
    %1067 = vmatpush1.bf16.msra.mxu0 %v787
    %1068 = vmatprep.subr.bf16.mxu0 %v756
    %1069 = vmatpush1.bf16.msra.mxu0 %v755
    %1070 = vmatprep.subr.bf16.mxu0 0
    %1071 = vmatpush2.bf16.msra.mxu0 0
    %1072 = vmatprep.subr.bf16.mxu0 0
    %1073 = vmatpush2.bf16.msra.mxu0 0
    %1074 = vmatprep.subr.bf16.mxu0 0
    %1075 = vmatpush2.bf16.msra.mxu0 0
    %1076 = vmatprep.subr.bf16.mxu0 0
    %1077 = vmatpush2.bf16.msra.mxu0 0
    %1078 = vmatprep.subr.bf16.mxu0 0
    %1079 = vmatpush2.bf16.msra.mxu0 0
    %1080 = vmatprep.subr.bf16.mxu0 0
    %1081 = vmatpush2.bf16.msra.mxu0 0
    %1082 = vmatprep.subr.bf16.mxu0 0
    %1083 = vmatpush2.bf16.msra.mxu0 0
    %1084 = vmatprep.subr.bf16.mxu0 0
    %1085 = vmatpush2.bf16.msra.mxu0 0
    %1086 = vmatprep.mubr.bf16.mxu0 0
    %1087 = vmatmul.mubr.bf16.gmra.mxu0 %v1011
    %v1088 = vpop.f32.mrf.mxu0
    %v1089 = vadd.f32 0.0, %v1088
    %v1090 = vpop.f32.mrf.mxu0
    %v1091 = vadd.f32 0.0, %v1090
    %v1092 = vpop.f32.mrf.mxu0
    %v1093 = vpop.f32.mrf.mxu0
    %1094 = vdwg.mxu0
    %1095 = vmatprep.subr.bf16.mxu0 0
    %1096 = vmatpush1.bf16.msra.mxu0 0
    %1097 = vmatprep.subr.bf16.mxu0 0
    %1098 = vmatpush1.bf16.msra.mxu0 0
    %1099 = vmatprep.subr.bf16.mxu0 0
    %1100 = vmatpush1.bf16.msra.mxu0 0
    %1101 = vmatprep.subr.bf16.mxu0 0
    %1102 = vmatpush1.bf16.msra.mxu0 0
    %1103 = vmatprep.subr.bf16.mxu0 %v854
    %1104 = vmatpush1.bf16.msra.mxu0 %v853
    %1105 = vmatprep.subr.bf16.mxu0 %v822
    %1106 = vmatpush1.bf16.msra.mxu0 %v821
    %1107 = vmatprep.subr.bf16.mxu0 %v790
    %1108 = vmatpush1.bf16.msra.mxu0 %v789
    %1109 = vmatprep.subr.bf16.mxu0 %v758
    %1110 = vmatpush1.bf16.msra.mxu0 %v757
    %1111 = vmatprep.subr.bf16.mxu0 0
    %1112 = vmatpush2.bf16.msra.mxu0 0
    %1113 = vmatprep.subr.bf16.mxu0 0
    %1114 = vmatpush2.bf16.msra.mxu0 0
    %1115 = vmatprep.subr.bf16.mxu0 0
    %1116 = vmatpush2.bf16.msra.mxu0 0
    %1117 = vmatprep.subr.bf16.mxu0 0
    %1118 = vmatpush2.bf16.msra.mxu0 0
    %1119 = vmatprep.subr.bf16.mxu0 0
    %1120 = vmatpush2.bf16.msra.mxu0 0
    %1121 = vmatprep.subr.bf16.mxu0 0
    %1122 = vmatpush2.bf16.msra.mxu0 0
    %1123 = vmatprep.subr.bf16.mxu0 0
    %1124 = vmatpush2.bf16.msra.mxu0 0
    %1125 = vmatprep.subr.bf16.mxu0 0
    %1126 = vmatpush2.bf16.msra.mxu0 0
    %1127 = vmatprep.mubr.bf16.mxu0 0
    %1128 = vmatmul.mubr.bf16.gmra.mxu0 %v1011
    %v1129 = vpop.f32.mrf.mxu0
    %v1130 = vadd.f32 0.0, %v1129
    %v1131 = vpop.f32.mrf.mxu0
    %v1132 = vadd.f32 0.0, %v1131
    %v1133 = vpop.f32.mrf.mxu0
    %v1134 = vpop.f32.mrf.mxu0
    %1135 = vdwg.mxu0
    %1136 = vmatprep.subr.bf16.mxu0 0
    %1137 = vmatpush1.bf16.msra.mxu0 0
    %1138 = vmatprep.subr.bf16.mxu0 0
    %1139 = vmatpush1.bf16.msra.mxu0 0
    %1140 = vmatprep.subr.bf16.mxu0 0
    %1141 = vmatpush1.bf16.msra.mxu0 0
    %1142 = vmatprep.subr.bf16.mxu0 0
    %1143 = vmatpush1.bf16.msra.mxu0 0
    %1144 = vmatprep.subr.bf16.mxu0 %v856
    %1145 = vmatpush1.bf16.msra.mxu0 %v855
    %1146 = vmatprep.subr.bf16.mxu0 %v824
    %1147 = vmatpush1.bf16.msra.mxu0 %v823
    %1148 = vmatprep.subr.bf16.mxu0 %v792
    %1149 = vmatpush1.bf16.msra.mxu0 %v791
    %1150 = vmatprep.subr.bf16.mxu0 %v760
    %1151 = vmatpush1.bf16.msra.mxu0 %v759
    %1152 = vmatprep.subr.bf16.mxu0 0
    %1153 = vmatpush2.bf16.msra.mxu0 0
    %1154 = vmatprep.subr.bf16.mxu0 0
    %1155 = vmatpush2.bf16.msra.mxu0 0
    %1156 = vmatprep.subr.bf16.mxu0 0
    %1157 = vmatpush2.bf16.msra.mxu0 0
    %1158 = vmatprep.subr.bf16.mxu0 0
    %1159 = vmatpush2.bf16.msra.mxu0 0
    %1160 = vmatprep.subr.bf16.mxu0 0
    %1161 = vmatpush2.bf16.msra.mxu0 0
    %1162 = vmatprep.subr.bf16.mxu0 0
    %1163 = vmatpush2.bf16.msra.mxu0 0
    %1164 = vmatprep.subr.bf16.mxu0 0
    %1165 = vmatpush2.bf16.msra.mxu0 0
    %1166 = vmatprep.subr.bf16.mxu0 0
    %1167 = vmatpush2.bf16.msra.mxu0 0
    %1168 = vmatprep.mubr.bf16.mxu0 0
    %1169 = vmatmul.mubr.bf16.gmra.mxu0 %v1011
    %v1170 = vpop.f32.mrf.mxu0
    %v1171 = vadd.f32 0.0, %v1170
    %v1172 = vpop.f32.mrf.mxu0
    %v1173 = vadd.f32 0.0, %v1172
    %v1174 = vpop.f32.mrf.mxu0
    %v1175 = vpop.f32.mrf.mxu0
    %1176 = vdwg.mxu0
    %1177 = vmatprep.subr.bf16.mxu0 0
    %1178 = vmatpush1.bf16.msra.mxu0 0
    %1179 = vmatprep.subr.bf16.mxu0 0
    %1180 = vmatpush1.bf16.msra.mxu0 0
    %1181 = vmatprep.subr.bf16.mxu0 0
    %1182 = vmatpush1.bf16.msra.mxu0 0
    %1183 = vmatprep.subr.bf16.mxu0 0
    %1184 = vmatpush1.bf16.msra.mxu0 0
    %1185 = vmatprep.subr.bf16.mxu0 %v858
    %1186 = vmatpush1.bf16.msra.mxu0 %v857
    %1187 = vmatprep.subr.bf16.mxu0 %v826
    %1188 = vmatpush1.bf16.msra.mxu0 %v825
    %1189 = vmatprep.subr.bf16.mxu0 %v794
    %1190 = vmatpush1.bf16.msra.mxu0 %v793
    %1191 = vmatprep.subr.bf16.mxu0 %v762
    %1192 = vmatpush1.bf16.msra.mxu0 %v761
    %1193 = vmatprep.subr.bf16.mxu0 0
    %1194 = vmatpush2.bf16.msra.mxu0 0
    %1195 = vmatprep.subr.bf16.mxu0 0
    %1196 = vmatpush2.bf16.msra.mxu0 0
    %1197 = vmatprep.subr.bf16.mxu0 0
    %1198 = vmatpush2.bf16.msra.mxu0 0
    %1199 = vmatprep.subr.bf16.mxu0 0
    %1200 = vmatpush2.bf16.msra.mxu0 0
    %1201 = vmatprep.subr.bf16.mxu0 0
    %1202 = vmatpush2.bf16.msra.mxu0 0
    %1203 = vmatprep.subr.bf16.mxu0 0
    %1204 = vmatpush2.bf16.msra.mxu0 0
    %1205 = vmatprep.subr.bf16.mxu0 0
    %1206 = vmatpush2.bf16.msra.mxu0 0
    %1207 = vmatprep.subr.bf16.mxu0 0
    %1208 = vmatpush2.bf16.msra.mxu0 0
    %1209 = vmatprep.mubr.bf16.mxu0 0
    %1210 = vmatmul.mubr.bf16.gmra.mxu0 %v1011
    %v1211 = vpop.f32.mrf.mxu0
    %v1212 = vadd.f32 0.0, %v1211
    %v1213 = vpop.f32.mrf.mxu0
    %v1214 = vadd.f32 0.0, %v1213
    %v1215 = vpop.f32.mrf.mxu0
    %v1216 = vpop.f32.mrf.mxu0
    %1217 = vdwg.mxu0
    %1218 = vmatprep.subr.bf16.mxu0 0
    %1219 = vmatpush1.bf16.msra.mxu0 0
    %1220 = vmatprep.subr.bf16.mxu0 0
    %1221 = vmatpush1.bf16.msra.mxu0 0
    %1222 = vmatprep.subr.bf16.mxu0 0
    %1223 = vmatpush1.bf16.msra.mxu0 0
    %1224 = vmatprep.subr.bf16.mxu0 0
    %1225 = vmatpush1.bf16.msra.mxu0 0
    %1226 = vmatprep.subr.bf16.mxu0 %v860
    %1227 = vmatpush1.bf16.msra.mxu0 %v859
    %1228 = vmatprep.subr.bf16.mxu0 %v828
    %1229 = vmatpush1.bf16.msra.mxu0 %v827
    %1230 = vmatprep.subr.bf16.mxu0 %v796
    %1231 = vmatpush1.bf16.msra.mxu0 %v795
    %1232 = vmatprep.subr.bf16.mxu0 %v764
    %1233 = vmatpush1.bf16.msra.mxu0 %v763
    %1234 = vmatprep.subr.bf16.mxu0 0
    %1235 = vmatpush2.bf16.msra.mxu0 0
    %1236 = vmatprep.subr.bf16.mxu0 0
    %1237 = vmatpush2.bf16.msra.mxu0 0
    %1238 = vmatprep.subr.bf16.mxu0 0
    %1239 = vmatpush2.bf16.msra.mxu0 0
    %1240 = vmatprep.subr.bf16.mxu0 0
    %1241 = vmatpush2.bf16.msra.mxu0 0
    %1242 = vmatprep.subr.bf16.mxu0 0
    %1243 = vmatpush2.bf16.msra.mxu0 0
    %1244 = vmatprep.subr.bf16.mxu0 0
    %1245 = vmatpush2.bf16.msra.mxu0 0
    %1246 = vmatprep.subr.bf16.mxu0 0
    %1247 = vmatpush2.bf16.msra.mxu0 0
    %1248 = vmatprep.subr.bf16.mxu0 0
    %1249 = vmatpush2.bf16.msra.mxu0 0
    %1250 = vmatprep.mubr.bf16.mxu0 0
    %1251 = vmatmul.mubr.bf16.gmra.mxu0 %v1011
    %v1252 = vpop.f32.mrf.mxu0
    %v1253 = vadd.f32 0.0, %v1252
    %v1254 = vpop.f32.mrf.mxu0
    %v1255 = vadd.f32 0.0, %v1254
    %v1256 = vpop.f32.mrf.mxu0
    %v1257 = vpop.f32.mrf.mxu0
    %1258 = vdwg.mxu0
    %1259 = vmatprep.subr.bf16.mxu0 0
    %1260 = vmatpush1.bf16.msra.mxu0 0
    %1261 = vmatprep.subr.bf16.mxu0 0
    %1262 = vmatpush1.bf16.msra.mxu0 0
    %1263 = vmatprep.subr.bf16.mxu0 0
    %1264 = vmatpush1.bf16.msra.mxu0 0
    %1265 = vmatprep.subr.bf16.mxu0 0
    %1266 = vmatpush1.bf16.msra.mxu0 0
    %1267 = vmatprep.subr.bf16.mxu0 %v862
    %1268 = vmatpush1.bf16.msra.mxu0 %v861
    %1269 = vmatprep.subr.bf16.mxu0 %v830
    %1270 = vmatpush1.bf16.msra.mxu0 %v829
    %1271 = vmatprep.subr.bf16.mxu0 %v798
    %1272 = vmatpush1.bf16.msra.mxu0 %v797
    %1273 = vmatprep.subr.bf16.mxu0 %v766
    %1274 = vmatpush1.bf16.msra.mxu0 %v765
    %1275 = vmatprep.subr.bf16.mxu0 0
    %1276 = vmatpush2.bf16.msra.mxu0 0
    %1277 = vmatprep.subr.bf16.mxu0 0
    %1278 = vmatpush2.bf16.msra.mxu0 0
    %1279 = vmatprep.subr.bf16.mxu0 0
    %1280 = vmatpush2.bf16.msra.mxu0 0
    %1281 = vmatprep.subr.bf16.mxu0 0
    %1282 = vmatpush2.bf16.msra.mxu0 0
    %1283 = vmatprep.subr.bf16.mxu0 0
    %1284 = vmatpush2.bf16.msra.mxu0 0
    %1285 = vmatprep.subr.bf16.mxu0 0
    %1286 = vmatpush2.bf16.msra.mxu0 0
    %1287 = vmatprep.subr.bf16.mxu0 0
    %1288 = vmatpush2.bf16.msra.mxu0 0
    %1289 = vmatprep.subr.bf16.mxu0 0
    %1290 = vmatpush2.bf16.msra.mxu0 0
    %1291 = vmatprep.mubr.bf16.mxu0 0
    %1292 = vmatmul.mubr.bf16.gmra.mxu0 %v1011
    %v1293 = vpop.f32.mrf.mxu0
    %v1294 = vadd.f32 0.0, %v1293
    %v1295 = vpop.f32.mrf.mxu0
    %v1296 = vadd.f32 0.0, %v1295
    %v1297 = vpop.f32.mrf.mxu0
    %v1298 = vpop.f32.mrf.mxu0
    %1299 = vdwg.mxu0
    %1300 = vmatprep.subr.bf16.mxu0 0
    %1301 = vmatpush1.bf16.msra.mxu0 0
    %1302 = vmatprep.subr.bf16.mxu0 0
    %1303 = vmatpush1.bf16.msra.mxu0 0
    %1304 = vmatprep.subr.bf16.mxu0 0
    %1305 = vmatpush1.bf16.msra.mxu0 0
    %1306 = vmatprep.subr.bf16.mxu0 0
    %1307 = vmatpush1.bf16.msra.mxu0 0
    %1308 = vmatprep.subr.bf16.mxu0 %v864
    %1309 = vmatpush1.bf16.msra.mxu0 %v863
    %1310 = vmatprep.subr.bf16.mxu0 %v832
    %1311 = vmatpush1.bf16.msra.mxu0 %v831
    %1312 = vmatprep.subr.bf16.mxu0 %v800
    %1313 = vmatpush1.bf16.msra.mxu0 %v799
    %1314 = vmatprep.subr.bf16.mxu0 %v768
    %1315 = vmatpush1.bf16.msra.mxu0 %v767
    %1316 = vmatprep.subr.bf16.mxu0 0
    %1317 = vmatpush2.bf16.msra.mxu0 0
    %1318 = vmatprep.subr.bf16.mxu0 0
    %1319 = vmatpush2.bf16.msra.mxu0 0
    %1320 = vmatprep.subr.bf16.mxu0 0
    %1321 = vmatpush2.bf16.msra.mxu0 0
    %1322 = vmatprep.subr.bf16.mxu0 0
    %1323 = vmatpush2.bf16.msra.mxu0 0
    %1324 = vmatprep.subr.bf16.mxu0 0
    %1325 = vmatpush2.bf16.msra.mxu0 0
    %1326 = vmatprep.subr.bf16.mxu0 0
    %1327 = vmatpush2.bf16.msra.mxu0 0
    %1328 = vmatprep.subr.bf16.mxu0 0
    %1329 = vmatpush2.bf16.msra.mxu0 0
    %1330 = vmatprep.subr.bf16.mxu0 0
    %1331 = vmatpush2.bf16.msra.mxu0 0
    %1332 = vmatprep.mubr.bf16.mxu0 0
    %1333 = vmatmul.mubr.bf16.gmra.mxu0 %v1011
    %v1334 = vpop.f32.mrf.mxu0
    %v1335 = vadd.f32 0.0, %v1334
    %v1336 = vpop.f32.mrf.mxu0
    %v1337 = vadd.f32 0.0, %v1336
    %v1338 = vpop.f32.mrf.mxu0
    %v1339 = vpop.f32.mrf.mxu0
    %1340 = vdwg.mxu0
    %1341 = vmatprep.subr.bf16.mxu0 0
    %1342 = vmatpush1.bf16.msra.mxu0 0
    %1343 = vmatprep.subr.bf16.mxu0 0
    %1344 = vmatpush1.bf16.msra.mxu0 0
    %1345 = vmatprep.subr.bf16.mxu0 0
    %1346 = vmatpush1.bf16.msra.mxu0 0
    %1347 = vmatprep.subr.bf16.mxu0 0
    %1348 = vmatpush1.bf16.msra.mxu0 0
    %1349 = vmatprep.subr.bf16.mxu0 %v866
    %1350 = vmatpush1.bf16.msra.mxu0 %v865
    %1351 = vmatprep.subr.bf16.mxu0 %v834
    %1352 = vmatpush1.bf16.msra.mxu0 %v833
    %1353 = vmatprep.subr.bf16.mxu0 %v802
    %1354 = vmatpush1.bf16.msra.mxu0 %v801
    %1355 = vmatprep.subr.bf16.mxu0 %v770
    %1356 = vmatpush1.bf16.msra.mxu0 %v769
    %1357 = vmatprep.subr.bf16.mxu0 0
    %1358 = vmatpush2.bf16.msra.mxu0 0
    %1359 = vmatprep.subr.bf16.mxu0 0
    %1360 = vmatpush2.bf16.msra.mxu0 0
    %1361 = vmatprep.subr.bf16.mxu0 0
    %1362 = vmatpush2.bf16.msra.mxu0 0
    %1363 = vmatprep.subr.bf16.mxu0 0
    %1364 = vmatpush2.bf16.msra.mxu0 0
    %1365 = vmatprep.subr.bf16.mxu0 0
    %1366 = vmatpush2.bf16.msra.mxu0 0
    %1367 = vmatprep.subr.bf16.mxu0 0
    %1368 = vmatpush2.bf16.msra.mxu0 0
    %1369 = vmatprep.subr.bf16.mxu0 0
    %1370 = vmatpush2.bf16.msra.mxu0 0
    %1371 = vmatprep.subr.bf16.mxu0 0
    %1372 = vmatpush2.bf16.msra.mxu0 0
    %1373 = vmatprep.mubr.bf16.mxu0 0
    %1374 = vmatmul.mubr.bf16.gmra.mxu0 %v1011
    %v1375 = vpop.f32.mrf.mxu0
    %v1376 = vadd.f32 0.0, %v1375
    %v1377 = vpop.f32.mrf.mxu0
    %v1378 = vadd.f32 0.0, %v1377
    %v1379 = vpop.f32.mrf.mxu0
    %v1380 = vpop.f32.mrf.mxu0
    %1381 = vdwg.mxu0
    %1382 = vmatprep.subr.bf16.mxu0 0
    %1383 = vmatpush1.bf16.msra.mxu0 0
    %1384 = vmatprep.subr.bf16.mxu0 0
    %1385 = vmatpush1.bf16.msra.mxu0 0
    %1386 = vmatprep.subr.bf16.mxu0 0
    %1387 = vmatpush1.bf16.msra.mxu0 0
    %1388 = vmatprep.subr.bf16.mxu0 0
    %1389 = vmatpush1.bf16.msra.mxu0 0
    %1390 = vmatprep.subr.bf16.mxu0 %v868
    %1391 = vmatpush1.bf16.msra.mxu0 %v867
    %1392 = vmatprep.subr.bf16.mxu0 %v836
    %1393 = vmatpush1.bf16.msra.mxu0 %v835
    %1394 = vmatprep.subr.bf16.mxu0 %v804
    %1395 = vmatpush1.bf16.msra.mxu0 %v803
    %1396 = vmatprep.subr.bf16.mxu0 %v772
    %1397 = vmatpush1.bf16.msra.mxu0 %v771
    %1398 = vmatprep.subr.bf16.mxu0 0
    %1399 = vmatpush2.bf16.msra.mxu0 0
    %1400 = vmatprep.subr.bf16.mxu0 0
    %1401 = vmatpush2.bf16.msra.mxu0 0
    %1402 = vmatprep.subr.bf16.mxu0 0
    %1403 = vmatpush2.bf16.msra.mxu0 0
    %1404 = vmatprep.subr.bf16.mxu0 0
    %1405 = vmatpush2.bf16.msra.mxu0 0
    %1406 = vmatprep.subr.bf16.mxu0 0
    %1407 = vmatpush2.bf16.msra.mxu0 0
    %1408 = vmatprep.subr.bf16.mxu0 0
    %1409 = vmatpush2.bf16.msra.mxu0 0
    %1410 = vmatprep.subr.bf16.mxu0 0
    %1411 = vmatpush2.bf16.msra.mxu0 0
    %1412 = vmatprep.subr.bf16.mxu0 0
    %1413 = vmatpush2.bf16.msra.mxu0 0
    %1414 = vmatprep.mubr.bf16.mxu0 0
    %1415 = vmatmul.mubr.bf16.gmra.mxu0 %v1011
    %v1416 = vpop.f32.mrf.mxu0
    %v1417 = vadd.f32 0.0, %v1416
    %v1418 = vpop.f32.mrf.mxu0
    %v1419 = vadd.f32 0.0, %v1418
    %v1420 = vpop.f32.mrf.mxu0
    %v1421 = vpop.f32.mrf.mxu0
    %1422 = vdwg.mxu0
    %1423 = vmatprep.subr.bf16.mxu0 0
    %1424 = vmatpush1.bf16.msra.mxu0 0
    %1425 = vmatprep.subr.bf16.mxu0 0
    %1426 = vmatpush1.bf16.msra.mxu0 0
    %1427 = vmatprep.subr.bf16.mxu0 0
    %1428 = vmatpush1.bf16.msra.mxu0 0
    %1429 = vmatprep.subr.bf16.mxu0 0
    %1430 = vmatpush1.bf16.msra.mxu0 0
    %1431 = vmatprep.subr.bf16.mxu0 %v870
    %1432 = vmatpush1.bf16.msra.mxu0 %v869
    %1433 = vmatprep.subr.bf16.mxu0 %v838
    %1434 = vmatpush1.bf16.msra.mxu0 %v837
    %1435 = vmatprep.subr.bf16.mxu0 %v806
    %1436 = vmatpush1.bf16.msra.mxu0 %v805
    %1437 = vmatprep.subr.bf16.mxu0 %v774
    %1438 = vmatpush1.bf16.msra.mxu0 %v773
    %1439 = vmatprep.subr.bf16.mxu0 0
    %1440 = vmatpush2.bf16.msra.mxu0 0
    %1441 = vmatprep.subr.bf16.mxu0 0
    %1442 = vmatpush2.bf16.msra.mxu0 0
    %1443 = vmatprep.subr.bf16.mxu0 0
    %1444 = vmatpush2.bf16.msra.mxu0 0
    %1445 = vmatprep.subr.bf16.mxu0 0
    %1446 = vmatpush2.bf16.msra.mxu0 0
    %1447 = vmatprep.subr.bf16.mxu0 0
    %1448 = vmatpush2.bf16.msra.mxu0 0
    %1449 = vmatprep.subr.bf16.mxu0 0
    %1450 = vmatpush2.bf16.msra.mxu0 0
    %1451 = vmatprep.subr.bf16.mxu0 0
    %1452 = vmatpush2.bf16.msra.mxu0 0
    %1453 = vmatprep.subr.bf16.mxu0 0
    %1454 = vmatpush2.bf16.msra.mxu0 0
    %1455 = vmatprep.mubr.bf16.mxu0 0
    %1456 = vmatmul.mubr.bf16.gmra.mxu0 %v1011
    %v1457 = vpop.f32.mrf.mxu0
    %v1458 = vadd.f32 0.0, %v1457
    %v1459 = vpop.f32.mrf.mxu0
    %v1460 = vadd.f32 0.0, %v1459
    %v1461 = vpop.f32.mrf.mxu0
    %v1462 = vpop.f32.mrf.mxu0
    %1463 = vdwg.mxu0
    %1464 = vmatprep.subr.bf16.mxu0 0
    %1465 = vmatpush1.bf16.msra.mxu0 0
    %1466 = vmatprep.subr.bf16.mxu0 0
    %1467 = vmatpush1.bf16.msra.mxu0 0
    %1468 = vmatprep.subr.bf16.mxu0 0
    %1469 = vmatpush1.bf16.msra.mxu0 0
    %1470 = vmatprep.subr.bf16.mxu0 0
    %1471 = vmatpush1.bf16.msra.mxu0 0
    %1472 = vmatprep.subr.bf16.mxu0 %v872
    %1473 = vmatpush1.bf16.msra.mxu0 %v871
    %1474 = vmatprep.subr.bf16.mxu0 %v840
    %1475 = vmatpush1.bf16.msra.mxu0 %v839
    %1476 = vmatprep.subr.bf16.mxu0 %v808
    %1477 = vmatpush1.bf16.msra.mxu0 %v807
    %1478 = vmatprep.subr.bf16.mxu0 %v776
    %1479 = vmatpush1.bf16.msra.mxu0 %v775
    %1480 = vmatprep.subr.bf16.mxu0 0
    %1481 = vmatpush2.bf16.msra.mxu0 0
    %1482 = vmatprep.subr.bf16.mxu0 0
    %1483 = vmatpush2.bf16.msra.mxu0 0
    %1484 = vmatprep.subr.bf16.mxu0 0
    %1485 = vmatpush2.bf16.msra.mxu0 0
    %1486 = vmatprep.subr.bf16.mxu0 0
    %1487 = vmatpush2.bf16.msra.mxu0 0
    %1488 = vmatprep.subr.bf16.mxu0 0
    %1489 = vmatpush2.bf16.msra.mxu0 0
    %1490 = vmatprep.subr.bf16.mxu0 0
    %1491 = vmatpush2.bf16.msra.mxu0 0
    %1492 = vmatprep.subr.bf16.mxu0 0
    %1493 = vmatpush2.bf16.msra.mxu0 0
    %1494 = vmatprep.subr.bf16.mxu0 0
    %1495 = vmatpush2.bf16.msra.mxu0 0
    %1496 = vmatprep.mubr.bf16.mxu0 0
    %1497 = vmatmul.mubr.bf16.gmra.mxu0 %v1011
    %v1498 = vpop.f32.mrf.mxu0
    %v1499 = vadd.f32 0.0, %v1498
    %v1500 = vpop.f32.mrf.mxu0
    %v1501 = vadd.f32 0.0, %v1500
    %v1502 = vpop.f32.mrf.mxu0
    %v1503 = vpop.f32.mrf.mxu0
    %1504 = vdwg.mxu0
    %1505 = vmatprep.subr.bf16.mxu0 0
    %1506 = vmatpush1.bf16.msra.mxu0 0
    %1507 = vmatprep.subr.bf16.mxu0 0
    %1508 = vmatpush1.bf16.msra.mxu0 0
    %1509 = vmatprep.subr.bf16.mxu0 0
    %1510 = vmatpush1.bf16.msra.mxu0 0
    %1511 = vmatprep.subr.bf16.mxu0 0
    %1512 = vmatpush1.bf16.msra.mxu0 0
    %1513 = vmatprep.subr.bf16.mxu0 %v874
    %1514 = vmatpush1.bf16.msra.mxu0 %v873
    %1515 = vmatprep.subr.bf16.mxu0 %v842
    %1516 = vmatpush1.bf16.msra.mxu0 %v841
    %1517 = vmatprep.subr.bf16.mxu0 %v810
    %1518 = vmatpush1.bf16.msra.mxu0 %v809
    %1519 = vmatprep.subr.bf16.mxu0 %v778
    %1520 = vmatpush1.bf16.msra.mxu0 %v777
    %1521 = vmatprep.subr.bf16.mxu0 0
    %1522 = vmatpush2.bf16.msra.mxu0 0
    %1523 = vmatprep.subr.bf16.mxu0 0
    %1524 = vmatpush2.bf16.msra.mxu0 0
    %1525 = vmatprep.subr.bf16.mxu0 0
    %1526 = vmatpush2.bf16.msra.mxu0 0
    %1527 = vmatprep.subr.bf16.mxu0 0
    %1528 = vmatpush2.bf16.msra.mxu0 0
    %1529 = vmatprep.subr.bf16.mxu0 0
    %1530 = vmatpush2.bf16.msra.mxu0 0
    %1531 = vmatprep.subr.bf16.mxu0 0
    %1532 = vmatpush2.bf16.msra.mxu0 0
    %1533 = vmatprep.subr.bf16.mxu0 0
    %1534 = vmatpush2.bf16.msra.mxu0 0
    %1535 = vmatprep.subr.bf16.mxu0 0
    %1536 = vmatpush2.bf16.msra.mxu0 0
    %1537 = vmatprep.mubr.bf16.mxu0 0
    %1538 = vmatmul.mubr.bf16.gmra.mxu0 %v1011
    %v1539 = vpop.f32.mrf.mxu0
    %v1540 = vadd.f32 0.0, %v1539
    %v1541 = vpop.f32.mrf.mxu0
    %v1542 = vadd.f32 0.0, %v1541
    %v1543 = vpop.f32.mrf.mxu0
    %v1544 = vpop.f32.mrf.mxu0
    %1545 = vdwg.mxu0
    %1546 = vmatprep.subr.bf16.mxu0 0
    %1547 = vmatpush1.bf16.msra.mxu0 0
    %1548 = vmatprep.subr.bf16.mxu0 0
    %1549 = vmatpush1.bf16.msra.mxu0 0
    %1550 = vmatprep.subr.bf16.mxu0 0
    %1551 = vmatpush1.bf16.msra.mxu0 0
    %1552 = vmatprep.subr.bf16.mxu0 0
    %1553 = vmatpush1.bf16.msra.mxu0 0
    %1554 = vmatprep.subr.bf16.mxu0 %v876
    %1555 = vmatpush1.bf16.msra.mxu0 %v875
    %1556 = vmatprep.subr.bf16.mxu0 %v844
    %1557 = vmatpush1.bf16.msra.mxu0 %v843
    %1558 = vmatprep.subr.bf16.mxu0 %v812
    %1559 = vmatpush1.bf16.msra.mxu0 %v811
    %1560 = vmatprep.subr.bf16.mxu0 %v780
    %1561 = vmatpush1.bf16.msra.mxu0 %v779
    %1562 = vmatprep.subr.bf16.mxu0 0
    %1563 = vmatpush2.bf16.msra.mxu0 0
    %1564 = vmatprep.subr.bf16.mxu0 0
    %1565 = vmatpush2.bf16.msra.mxu0 0
    %1566 = vmatprep.subr.bf16.mxu0 0
    %1567 = vmatpush2.bf16.msra.mxu0 0
    %1568 = vmatprep.subr.bf16.mxu0 0
    %1569 = vmatpush2.bf16.msra.mxu0 0
    %1570 = vmatprep.subr.bf16.mxu0 0
    %1571 = vmatpush2.bf16.msra.mxu0 0
    %1572 = vmatprep.subr.bf16.mxu0 0
    %1573 = vmatpush2.bf16.msra.mxu0 0
    %1574 = vmatprep.subr.bf16.mxu0 0
    %1575 = vmatpush2.bf16.msra.mxu0 0
    %1576 = vmatprep.subr.bf16.mxu0 0
    %1577 = vmatpush2.bf16.msra.mxu0 0
    %1578 = vmatprep.mubr.bf16.mxu0 0
    %1579 = vmatmul.mubr.bf16.gmra.mxu0 %v1011
    %v1580 = vpop.f32.mrf.mxu0
    %v1581 = vadd.f32 0.0, %v1580
    %v1582 = vpop.f32.mrf.mxu0
    %v1583 = vadd.f32 0.0, %v1582
    %v1584 = vpop.f32.mrf.mxu0
    %v1585 = vpop.f32.mrf.mxu0
    %1586 = vdwg.mxu0
    %1587 = vmatprep.subr.bf16.mxu0 0
    %1588 = vmatpush1.bf16.msra.mxu0 0
    %1589 = vmatprep.subr.bf16.mxu0 0
    %1590 = vmatpush1.bf16.msra.mxu0 0
    %1591 = vmatprep.subr.bf16.mxu0 0
    %1592 = vmatpush1.bf16.msra.mxu0 0
    %1593 = vmatprep.subr.bf16.mxu0 0
    %1594 = vmatpush1.bf16.msra.mxu0 0
    %1595 = vmatprep.subr.bf16.mxu0 %v878
    %1596 = vmatpush1.bf16.msra.mxu0 %v877
    %1597 = vmatprep.subr.bf16.mxu0 %v846
    %1598 = vmatpush1.bf16.msra.mxu0 %v845
    %1599 = vmatprep.subr.bf16.mxu0 %v814
    %1600 = vmatpush1.bf16.msra.mxu0 %v813
    %1601 = vmatprep.subr.bf16.mxu0 %v782
    %1602 = vmatpush1.bf16.msra.mxu0 %v781
    %1603 = vmatprep.subr.bf16.mxu0 0
    %1604 = vmatpush2.bf16.msra.mxu0 0
    %1605 = vmatprep.subr.bf16.mxu0 0
    %1606 = vmatpush2.bf16.msra.mxu0 0
    %1607 = vmatprep.subr.bf16.mxu0 0
    %1608 = vmatpush2.bf16.msra.mxu0 0
    %1609 = vmatprep.subr.bf16.mxu0 0
    %1610 = vmatpush2.bf16.msra.mxu0 0
    %1611 = vmatprep.subr.bf16.mxu0 0
    %1612 = vmatpush2.bf16.msra.mxu0 0
    %1613 = vmatprep.subr.bf16.mxu0 0
    %1614 = vmatpush2.bf16.msra.mxu0 0
    %1615 = vmatprep.subr.bf16.mxu0 0
    %1616 = vmatpush2.bf16.msra.mxu0 0
    %1617 = vmatprep.subr.bf16.mxu0 0
    %1618 = vmatpush2.bf16.msra.mxu0 0
    %1619 = vmatprep.mubr.bf16.mxu0 0
    %1620 = vmatmul.mubr.bf16.gmra.mxu0 %v1011
    %v1621 = vpop.f32.mrf.mxu0
    %v1622 = vadd.f32 0.0, %v1621
    %v1623 = vpop.f32.mrf.mxu0
    %v1624 = vadd.f32 0.0, %v1623
    %v1625 = vpop.f32.mrf.mxu0
    %v1626 = vpop.f32.mrf.mxu0
    %1627 = vdwg.mxu0
    %1628 = vmatprep.subr.bf16.mxu0 0
    %1629 = vmatpush1.bf16.msra.mxu0 0
    %1630 = vmatprep.subr.bf16.mxu0 0
    %1631 = vmatpush1.bf16.msra.mxu0 0
    %1632 = vmatprep.subr.bf16.mxu0 0
    %1633 = vmatpush1.bf16.msra.mxu0 0
    %1634 = vmatprep.subr.bf16.mxu0 0
    %1635 = vmatpush1.bf16.msra.mxu0 0
    %1636 = vmatprep.subr.bf16.mxu0 %v880
    %1637 = vmatpush1.bf16.msra.mxu0 %v879
    %1638 = vmatprep.subr.bf16.mxu0 %v848
    %1639 = vmatpush1.bf16.msra.mxu0 %v847
    %1640 = vmatprep.subr.bf16.mxu0 %v816
    %1641 = vmatpush1.bf16.msra.mxu0 %v815
    %1642 = vmatprep.subr.bf16.mxu0 %v784
    %1643 = vmatpush1.bf16.msra.mxu0 %v783
    %1644 = vmatprep.subr.bf16.mxu0 0
    %1645 = vmatpush2.bf16.msra.mxu0 0
    %1646 = vmatprep.subr.bf16.mxu0 0
    %1647 = vmatpush2.bf16.msra.mxu0 0
    %1648 = vmatprep.subr.bf16.mxu0 0
    %1649 = vmatpush2.bf16.msra.mxu0 0
    %1650 = vmatprep.subr.bf16.mxu0 0
    %1651 = vmatpush2.bf16.msra.mxu0 0
    %1652 = vmatprep.subr.bf16.mxu0 0
    %1653 = vmatpush2.bf16.msra.mxu0 0
    %1654 = vmatprep.subr.bf16.mxu0 0
    %1655 = vmatpush2.bf16.msra.mxu0 0
    %1656 = vmatprep.subr.bf16.mxu0 0
    %1657 = vmatpush2.bf16.msra.mxu0 0
    %1658 = vmatprep.subr.bf16.mxu0 0
    %1659 = vmatpush2.bf16.msra.mxu0 0
    %1660 = vmatprep.mubr.bf16.mxu0 0
    %1661 = vmatmul.mubr.bf16.gmra.mxu0 %v1011
    %v1662 = vpop.f32.mrf.mxu0
    %v1663 = vadd.f32 0.0, %v1662
    %v1664 = vpop.f32.mrf.mxu0
    %v1665 = vadd.f32 0.0, %v1664
    %v1666 = vpop.f32.mrf.mxu0
    %v1667 = vpop.f32.mrf.mxu0
    %1668 = vdwg.mxu0
    %v1669 = vrot.slane %v1048, 4
    %v1670 = vadd.f32 %v1048, %v1669
    %v1671 = vrot.slane %v1670, 2
    %v1672 = vadd.f32 %v1670, %v1671
    %v1673 = vrot.slane %v1672, 1
    %v1674 = vadd.f32 %v1672, %v1673
    %v1675 = vrot.slane %v1050, 4
    %v1676 = vadd.f32 %v1050, %v1675
    %v1677 = vrot.slane %v1676, 2
    %v1678 = vadd.f32 %v1676, %v1677
    %v1679 = vrot.slane %v1678, 1
    %v1680 = vadd.f32 %v1678, %v1679
    %v1681 = vrot.slane %v1089, 4
    %v1682 = vadd.f32 %v1089, %v1681
    %v1683 = vrot.slane %v1682, 2
    %v1684 = vadd.f32 %v1682, %v1683
    %v1685 = vrot.slane %v1684, 1
    %v1686 = vadd.f32 %v1684, %v1685
    %v1687 = vrot.slane %v1091, 4
    %v1688 = vadd.f32 %v1091, %v1687
    %v1689 = vrot.slane %v1688, 2
    %v1690 = vadd.f32 %v1688, %v1689
    %v1691 = vrot.slane %v1690, 1
    %v1692 = vadd.f32 %v1690, %v1691
    %v1693 = vrot.slane %v1130, 4
    %v1694 = vadd.f32 %v1130, %v1693
    %v1695 = vrot.slane %v1694, 2
    %v1696 = vadd.f32 %v1694, %v1695
    %v1697 = vrot.slane %v1696, 1
    %v1698 = vadd.f32 %v1696, %v1697
    %v1699 = vrot.slane %v1132, 4
    %v1700 = vadd.f32 %v1132, %v1699
    %v1701 = vrot.slane %v1700, 2
    %v1702 = vadd.f32 %v1700, %v1701
    %v1703 = vrot.slane %v1702, 1
    %v1704 = vadd.f32 %v1702, %v1703
    %v1705 = vrot.slane %v1171, 4
    %v1706 = vadd.f32 %v1171, %v1705
    %v1707 = vrot.slane %v1706, 2
    %v1708 = vadd.f32 %v1706, %v1707
    %v1709 = vrot.slane %v1708, 1
    %v1710 = vadd.f32 %v1708, %v1709
    %v1711 = vrot.slane %v1173, 4
    %v1712 = vadd.f32 %v1173, %v1711
    %v1713 = vrot.slane %v1712, 2
    %v1714 = vadd.f32 %v1712, %v1713
    %v1715 = vrot.slane %v1714, 1
    %v1716 = vadd.f32 %v1714, %v1715
    %v1717 = vrot.slane %v1212, 4
    %v1718 = vadd.f32 %v1212, %v1717
    %v1719 = vrot.slane %v1718, 2
    %v1720 = vadd.f32 %v1718, %v1719
    %v1721 = vrot.slane %v1720, 1
    %v1722 = vadd.f32 %v1720, %v1721
    %v1723 = vrot.slane %v1214, 4
    %v1724 = vadd.f32 %v1214, %v1723
    %v1725 = vrot.slane %v1724, 2
    %v1726 = vadd.f32 %v1724, %v1725
    %v1727 = vrot.slane %v1726, 1
    %v1728 = vadd.f32 %v1726, %v1727
    %v1729 = vrot.slane %v1253, 4
    %v1730 = vadd.f32 %v1253, %v1729
    %v1731 = vrot.slane %v1730, 2
    %v1732 = vadd.f32 %v1730, %v1731
    %v1733 = vrot.slane %v1732, 1
    %v1734 = vadd.f32 %v1732, %v1733
    %v1735 = vrot.slane %v1255, 4
    %v1736 = vadd.f32 %v1255, %v1735
    %v1737 = vrot.slane %v1736, 2
    %v1738 = vadd.f32 %v1736, %v1737
    %v1739 = vrot.slane %v1738, 1
    %v1740 = vadd.f32 %v1738, %v1739
    %v1741 = vrot.slane %v1294, 4
    %v1742 = vadd.f32 %v1294, %v1741
    %v1743 = vrot.slane %v1742, 2
    %v1744 = vadd.f32 %v1742, %v1743
    %v1745 = vrot.slane %v1744, 1
    %v1746 = vadd.f32 %v1744, %v1745
    %v1747 = vrot.slane %v1296, 4
    %v1748 = vadd.f32 %v1296, %v1747
    %v1749 = vrot.slane %v1748, 2
    %v1750 = vadd.f32 %v1748, %v1749
    %v1751 = vrot.slane %v1750, 1
    %v1752 = vadd.f32 %v1750, %v1751
    %v1753 = vrot.slane %v1335, 4
    %v1754 = vadd.f32 %v1335, %v1753
    %v1755 = vrot.slane %v1754, 2
    %v1756 = vadd.f32 %v1754, %v1755
    %v1757 = vrot.slane %v1756, 1
    %v1758 = vadd.f32 %v1756, %v1757
    %v1759 = vrot.slane %v1337, 4
    %v1760 = vadd.f32 %v1337, %v1759
    %v1761 = vrot.slane %v1760, 2
    %v1762 = vadd.f32 %v1760, %v1761
    %v1763 = vrot.slane %v1762, 1
    %v1764 = vadd.f32 %v1762, %v1763
    %v1765 = vrot.slane %v1376, 4
    %v1766 = vadd.f32 %v1376, %v1765
    %v1767 = vrot.slane %v1766, 2
    %v1768 = vadd.f32 %v1766, %v1767
    %v1769 = vrot.slane %v1768, 1
    %v1770 = vadd.f32 %v1768, %v1769
    %v1771 = vrot.slane %v1378, 4
    %v1772 = vadd.f32 %v1378, %v1771
    %v1773 = vrot.slane %v1772, 2
    %v1774 = vadd.f32 %v1772, %v1773
    %v1775 = vrot.slane %v1774, 1
    %v1776 = vadd.f32 %v1774, %v1775
    %v1777 = vrot.slane %v1417, 4
    %v1778 = vadd.f32 %v1417, %v1777
    %v1779 = vrot.slane %v1778, 2
    %v1780 = vadd.f32 %v1778, %v1779
    %v1781 = vrot.slane %v1780, 1
    %v1782 = vadd.f32 %v1780, %v1781
    %v1783 = vrot.slane %v1419, 4
    %v1784 = vadd.f32 %v1419, %v1783
    %v1785 = vrot.slane %v1784, 2
    %v1786 = vadd.f32 %v1784, %v1785
    %v1787 = vrot.slane %v1786, 1
    %v1788 = vadd.f32 %v1786, %v1787
    %v1789 = vrot.slane %v1458, 4
    %v1790 = vadd.f32 %v1458, %v1789
    %v1791 = vrot.slane %v1790, 2
    %v1792 = vadd.f32 %v1790, %v1791
    %v1793 = vrot.slane %v1792, 1
    %v1794 = vadd.f32 %v1792, %v1793
    %v1795 = vrot.slane %v1460, 4
    %v1796 = vadd.f32 %v1460, %v1795
    %v1797 = vrot.slane %v1796, 2
    %v1798 = vadd.f32 %v1796, %v1797
    %v1799 = vrot.slane %v1798, 1
    %v1800 = vadd.f32 %v1798, %v1799
    %v1801 = vrot.slane %v1499, 4
    %v1802 = vadd.f32 %v1499, %v1801
    %v1803 = vrot.slane %v1802, 2
    %v1804 = vadd.f32 %v1802, %v1803
    %v1805 = vrot.slane %v1804, 1
    %v1806 = vadd.f32 %v1804, %v1805
    %v1807 = vrot.slane %v1501, 4
    %v1808 = vadd.f32 %v1501, %v1807
    %v1809 = vrot.slane %v1808, 2
    %v1810 = vadd.f32 %v1808, %v1809
    %v1811 = vrot.slane %v1810, 1
    %v1812 = vadd.f32 %v1810, %v1811
    %v1813 = vrot.slane %v1540, 4
    %v1814 = vadd.f32 %v1540, %v1813
    %v1815 = vrot.slane %v1814, 2
    %v1816 = vadd.f32 %v1814, %v1815
    %v1817 = vrot.slane %v1816, 1
    %v1818 = vadd.f32 %v1816, %v1817
    %v1819 = vrot.slane %v1542, 4
    %v1820 = vadd.f32 %v1542, %v1819
    %v1821 = vrot.slane %v1820, 2
    %v1822 = vadd.f32 %v1820, %v1821
    %v1823 = vrot.slane %v1822, 1
    %v1824 = vadd.f32 %v1822, %v1823
    %v1825 = vrot.slane %v1581, 4
    %v1826 = vadd.f32 %v1581, %v1825
    %v1827 = vrot.slane %v1826, 2
    %v1828 = vadd.f32 %v1826, %v1827
    %v1829 = vrot.slane %v1828, 1
    %v1830 = vadd.f32 %v1828, %v1829
    %v1831 = vrot.slane %v1583, 4
    %v1832 = vadd.f32 %v1583, %v1831
    %v1833 = vrot.slane %v1832, 2
    %v1834 = vadd.f32 %v1832, %v1833
    %v1835 = vrot.slane %v1834, 1
    %v1836 = vadd.f32 %v1834, %v1835
    %v1837 = vrot.slane %v1622, 4
    %v1838 = vadd.f32 %v1622, %v1837
    %v1839 = vrot.slane %v1838, 2
    %v1840 = vadd.f32 %v1838, %v1839
    %v1841 = vrot.slane %v1840, 1
    %v1842 = vadd.f32 %v1840, %v1841
    %v1843 = vrot.slane %v1624, 4
    %v1844 = vadd.f32 %v1624, %v1843
    %v1845 = vrot.slane %v1844, 2
    %v1846 = vadd.f32 %v1844, %v1845
    %v1847 = vrot.slane %v1846, 1
    %v1848 = vadd.f32 %v1846, %v1847
    %v1849 = vrot.slane %v1663, 4
    %v1850 = vadd.f32 %v1663, %v1849
    %v1851 = vrot.slane %v1850, 2
    %v1852 = vadd.f32 %v1850, %v1851
    %v1853 = vrot.slane %v1852, 1
    %v1854 = vadd.f32 %v1852, %v1853
    %v1855 = vrot.slane %v1665, 4
    %v1856 = vadd.f32 %v1665, %v1855
    %v1857 = vrot.slane %v1856, 2
    %v1858 = vadd.f32 %v1856, %v1857
    %v1859 = vrot.slane %v1858, 1
    %v1860 = vadd.f32 %v1858, %v1859
    %v1861 = vmul.f32 %v1048, %v1048
    %v1862 = vmul.f32 %v1050, %v1050
    %v1863 = vmul.f32 %v1089, %v1089
    %v1864 = vmul.f32 %v1091, %v1091
    %v1865 = vmul.f32 %v1130, %v1130
    %v1866 = vmul.f32 %v1132, %v1132
    %v1867 = vmul.f32 %v1171, %v1171
    %v1868 = vmul.f32 %v1173, %v1173
    %v1869 = vmul.f32 %v1212, %v1212
    %v1870 = vmul.f32 %v1214, %v1214
    %v1871 = vmul.f32 %v1253, %v1253
    %v1872 = vmul.f32 %v1255, %v1255
    %v1873 = vmul.f32 %v1294, %v1294
    %v1874 = vmul.f32 %v1296, %v1296
    %v1875 = vmul.f32 %v1335, %v1335
    %v1876 = vmul.f32 %v1337, %v1337
    %v1877 = vmul.f32 %v1376, %v1376
    %v1878 = vmul.f32 %v1378, %v1378
    %v1879 = vmul.f32 %v1417, %v1417
    %v1880 = vmul.f32 %v1419, %v1419
    %v1881 = vmul.f32 %v1458, %v1458
    %v1882 = vmul.f32 %v1460, %v1460
    %v1883 = vmul.f32 %v1499, %v1499
    %v1884 = vmul.f32 %v1501, %v1501
    %v1885 = vmul.f32 %v1540, %v1540
    %v1886 = vmul.f32 %v1542, %v1542
    %v1887 = vmul.f32 %v1581, %v1581
    %v1888 = vmul.f32 %v1583, %v1583
    %v1889 = vmul.f32 %v1622, %v1622
    %v1890 = vmul.f32 %v1624, %v1624
    %v1891 = vmul.f32 %v1663, %v1663
    %v1892 = vmul.f32 %v1665, %v1665
    %v1893 = vrot.slane %v1861, 4
    %v1894 = vadd.f32 %v1861, %v1893
    %v1895 = vrot.slane %v1894, 2
    %v1896 = vadd.f32 %v1894, %v1895
    %v1897 = vrot.slane %v1896, 1
    %v1898 = vadd.f32 %v1896, %v1897
    %v1899 = vrot.slane %v1862, 4
    %v1900 = vadd.f32 %v1862, %v1899
    %v1901 = vrot.slane %v1900, 2
    %v1902 = vadd.f32 %v1900, %v1901
    %v1903 = vrot.slane %v1902, 1
    %v1904 = vadd.f32 %v1902, %v1903
    %v1905 = vrot.slane %v1863, 4
    %v1906 = vadd.f32 %v1863, %v1905
    %v1907 = vrot.slane %v1906, 2
    %v1908 = vadd.f32 %v1906, %v1907
    %v1909 = vrot.slane %v1908, 1
    %v1910 = vadd.f32 %v1908, %v1909
    %v1911 = vrot.slane %v1864, 4
    %v1912 = vadd.f32 %v1864, %v1911
    %v1913 = vrot.slane %v1912, 2
    %v1914 = vadd.f32 %v1912, %v1913
    %v1915 = vrot.slane %v1914, 1
    %v1916 = vadd.f32 %v1914, %v1915
    %v1917 = vrot.slane %v1865, 4
    %v1918 = vadd.f32 %v1865, %v1917
    %v1919 = vrot.slane %v1918, 2
    %v1920 = vadd.f32 %v1918, %v1919
    %v1921 = vrot.slane %v1920, 1
    %v1922 = vadd.f32 %v1920, %v1921
    %v1923 = vrot.slane %v1866, 4
    %v1924 = vadd.f32 %v1866, %v1923
    %v1925 = vrot.slane %v1924, 2
    %v1926 = vadd.f32 %v1924, %v1925
    %v1927 = vrot.slane %v1926, 1
    %v1928 = vadd.f32 %v1926, %v1927
    %v1929 = vrot.slane %v1867, 4
    %v1930 = vadd.f32 %v1867, %v1929
    %v1931 = vrot.slane %v1930, 2
    %v1932 = vadd.f32 %v1930, %v1931
    %v1933 = vrot.slane %v1932, 1
    %v1934 = vadd.f32 %v1932, %v1933
    %v1935 = vrot.slane %v1868, 4
    %v1936 = vadd.f32 %v1868, %v1935
    %v1937 = vrot.slane %v1936, 2
    %v1938 = vadd.f32 %v1936, %v1937
    %v1939 = vrot.slane %v1938, 1
    %v1940 = vadd.f32 %v1938, %v1939
    %v1941 = vrot.slane %v1869, 4
    %v1942 = vadd.f32 %v1869, %v1941
    %v1943 = vrot.slane %v1942, 2
    %v1944 = vadd.f32 %v1942, %v1943
    %v1945 = vrot.slane %v1944, 1
    %v1946 = vadd.f32 %v1944, %v1945
    %v1947 = vrot.slane %v1870, 4
    %v1948 = vadd.f32 %v1870, %v1947
    %v1949 = vrot.slane %v1948, 2
    %v1950 = vadd.f32 %v1948, %v1949
    %v1951 = vrot.slane %v1950, 1
    %v1952 = vadd.f32 %v1950, %v1951
    %v1953 = vrot.slane %v1871, 4
    %v1954 = vadd.f32 %v1871, %v1953
    %v1955 = vrot.slane %v1954, 2
    %v1956 = vadd.f32 %v1954, %v1955
    %v1957 = vrot.slane %v1956, 1
    %v1958 = vadd.f32 %v1956, %v1957
    %v1959 = vrot.slane %v1872, 4
    %v1960 = vadd.f32 %v1872, %v1959
    %v1961 = vrot.slane %v1960, 2
    %v1962 = vadd.f32 %v1960, %v1961
    %v1963 = vrot.slane %v1962, 1
    %v1964 = vadd.f32 %v1962, %v1963
    %v1965 = vrot.slane %v1873, 4
    %v1966 = vadd.f32 %v1873, %v1965
    %v1967 = vrot.slane %v1966, 2
    %v1968 = vadd.f32 %v1966, %v1967
    %v1969 = vrot.slane %v1968, 1
    %v1970 = vadd.f32 %v1968, %v1969
    %v1971 = vrot.slane %v1874, 4
    %v1972 = vadd.f32 %v1874, %v1971
    %v1973 = vrot.slane %v1972, 2
    %v1974 = vadd.f32 %v1972, %v1973
    %v1975 = vrot.slane %v1974, 1
    %v1976 = vadd.f32 %v1974, %v1975
    %v1977 = vrot.slane %v1875, 4
    %v1978 = vadd.f32 %v1875, %v1977
    %v1979 = vrot.slane %v1978, 2
    %v1980 = vadd.f32 %v1978, %v1979
    %v1981 = vrot.slane %v1980, 1
    %v1982 = vadd.f32 %v1980, %v1981
    %v1983 = vrot.slane %v1876, 4
    %v1984 = vadd.f32 %v1876, %v1983
    %v1985 = vrot.slane %v1984, 2
    %v1986 = vadd.f32 %v1984, %v1985
    %v1987 = vrot.slane %v1986, 1
    %v1988 = vadd.f32 %v1986, %v1987
    %v1989 = vrot.slane %v1877, 4
    %v1990 = vadd.f32 %v1877, %v1989
    %v1991 = vrot.slane %v1990, 2
    %v1992 = vadd.f32 %v1990, %v1991
    %v1993 = vrot.slane %v1992, 1
    %v1994 = vadd.f32 %v1992, %v1993
    %v1995 = vrot.slane %v1878, 4
    %v1996 = vadd.f32 %v1878, %v1995
    %v1997 = vrot.slane %v1996, 2
    %v1998 = vadd.f32 %v1996, %v1997
    %v1999 = vrot.slane %v1998, 1
    %v2000 = vadd.f32 %v1998, %v1999
    %v2001 = vrot.slane %v1879, 4
    %v2002 = vadd.f32 %v1879, %v2001
    %v2003 = vrot.slane %v2002, 2
    %v2004 = vadd.f32 %v2002, %v2003
    %v2005 = vrot.slane %v2004, 1
    %v2006 = vadd.f32 %v2004, %v2005
    %v2007 = vrot.slane %v1880, 4
    %v2008 = vadd.f32 %v1880, %v2007
    %v2009 = vrot.slane %v2008, 2
    %v2010 = vadd.f32 %v2008, %v2009
    %v2011 = vrot.slane %v2010, 1
    %v2012 = vadd.f32 %v2010, %v2011
    %v2013 = vrot.slane %v1881, 4
    %v2014 = vadd.f32 %v1881, %v2013
    %v2015 = vrot.slane %v2014, 2
    %v2016 = vadd.f32 %v2014, %v2015
    %v2017 = vrot.slane %v2016, 1
    %v2018 = vadd.f32 %v2016, %v2017
    %v2019 = vrot.slane %v1882, 4
    %v2020 = vadd.f32 %v1882, %v2019
    %v2021 = vrot.slane %v2020, 2
    %v2022 = vadd.f32 %v2020, %v2021
    %v2023 = vrot.slane %v2022, 1
    %v2024 = vadd.f32 %v2022, %v2023
    %v2025 = vrot.slane %v1883, 4
    %v2026 = vadd.f32 %v1883, %v2025
    %v2027 = vrot.slane %v2026, 2
    %v2028 = vadd.f32 %v2026, %v2027
    %v2029 = vrot.slane %v2028, 1
    %v2030 = vadd.f32 %v2028, %v2029
    %v2031 = vrot.slane %v1884, 4
    %v2032 = vadd.f32 %v1884, %v2031
    %v2033 = vrot.slane %v2032, 2
    %v2034 = vadd.f32 %v2032, %v2033
    %v2035 = vrot.slane %v2034, 1
    %v2036 = vadd.f32 %v2034, %v2035
    %v2037 = vrot.slane %v1885, 4
    %v2038 = vadd.f32 %v1885, %v2037
    %v2039 = vrot.slane %v2038, 2
    %v2040 = vadd.f32 %v2038, %v2039
    %v2041 = vrot.slane %v2040, 1
    %v2042 = vadd.f32 %v2040, %v2041
    %v2043 = vrot.slane %v1886, 4
    %v2044 = vadd.f32 %v1886, %v2043
    %v2045 = vrot.slane %v2044, 2
    %v2046 = vadd.f32 %v2044, %v2045
    %v2047 = vrot.slane %v2046, 1
    %v2048 = vadd.f32 %v2046, %v2047
    %v2049 = vrot.slane %v1887, 4
    %v2050 = vadd.f32 %v1887, %v2049
    %v2051 = vrot.slane %v2050, 2
    %v2052 = vadd.f32 %v2050, %v2051
    %v2053 = vrot.slane %v2052, 1
    %v2054 = vadd.f32 %v2052, %v2053
    %v2055 = vrot.slane %v1888, 4
    %v2056 = vadd.f32 %v1888, %v2055
    %v2057 = vrot.slane %v2056, 2
    %v2058 = vadd.f32 %v2056, %v2057
    %v2059 = vrot.slane %v2058, 1
    %v2060 = vadd.f32 %v2058, %v2059
    %v2061 = vrot.slane %v1889, 4
    %v2062 = vadd.f32 %v1889, %v2061
    %v2063 = vrot.slane %v2062, 2
    %v2064 = vadd.f32 %v2062, %v2063
    %v2065 = vrot.slane %v2064, 1
    %v2066 = vadd.f32 %v2064, %v2065
    %v2067 = vrot.slane %v1890, 4
    %v2068 = vadd.f32 %v1890, %v2067
    %v2069 = vrot.slane %v2068, 2
    %v2070 = vadd.f32 %v2068, %v2069
    %v2071 = vrot.slane %v2070, 1
    %v2072 = vadd.f32 %v2070, %v2071
    %v2073 = vrot.slane %v1891, 4
    %v2074 = vadd.f32 %v1891, %v2073
    %v2075 = vrot.slane %v2074, 2
    %v2076 = vadd.f32 %v2074, %v2075
    %v2077 = vrot.slane %v2076, 1
    %v2078 = vadd.f32 %v2076, %v2077
    %v2079 = vrot.slane %v1892, 4
    %v2080 = vadd.f32 %v1892, %v2079
    %v2081 = vrot.slane %v2080, 2
    %v2082 = vadd.f32 %v2080, %v2081
    %v2083 = vrot.slane %v2082, 1
    %v2084 = vadd.f32 %v2082, %v2083
    %v2085 = vld [vmem:[#allocation10] sm:$0xff]
    %v2086 = vld [vmem:[#allocation10 + $0x8] sm:$0xff]
    %v2087 = vld [vmem:[#allocation10 + $0x10] sm:$0xff]
    %v2088 = vld [vmem:[#allocation10 + $0x18] sm:$0xff]
    %v2089 = vld [vmem:[#allocation11] sm:$0xff]
    %v2090 = vld [vmem:[#allocation11 + $0x8] sm:$0xff]
    %v2091 = vld [vmem:[#allocation11 + $0x10] sm:$0xff]
    %v2092 = vld [vmem:[#allocation11 + $0x18] sm:$0xff]
    %v2093 = vmul.f32 %v1674, 0.125
    %v2094 = vmul.f32 %v1680, 0.125
    %v2095 = vmul.f32 %v1686, 0.125
    %v2096 = vmul.f32 %v1692, 0.125
    %v2097 = vmul.f32 %v1698, 0.125
    %v2098 = vmul.f32 %v1704, 0.125
    %v2099 = vmul.f32 %v1710, 0.125
    %v2100 = vmul.f32 %v1716, 0.125
    %v2101 = vmul.f32 %v1722, 0.125
    %v2102 = vmul.f32 %v1728, 0.125
    %v2103 = vmul.f32 %v1734, 0.125
    %v2104 = vmul.f32 %v1740, 0.125
    %v2105 = vmul.f32 %v1746, 0.125
    %v2106 = vmul.f32 %v1752, 0.125
    %v2107 = vmul.f32 %v1758, 0.125
    %v2108 = vmul.f32 %v1764, 0.125
    %v2109 = vmul.f32 %v1770, 0.125
    %v2110 = vmul.f32 %v1776, 0.125
    %v2111 = vmul.f32 %v1782, 0.125
    %v2112 = vmul.f32 %v1788, 0.125
    %v2113 = vmul.f32 %v1794, 0.125
    %v2114 = vmul.f32 %v1800, 0.125
    %v2115 = vmul.f32 %v1806, 0.125
    %v2116 = vmul.f32 %v1812, 0.125
    %v2117 = vmul.f32 %v1818, 0.125
    %v2118 = vmul.f32 %v1824, 0.125
    %v2119 = vmul.f32 %v1830, 0.125
    %v2120 = vmul.f32 %v1836, 0.125
    %v2121 = vmul.f32 %v1842, 0.125
    %v2122 = vmul.f32 %v1848, 0.125
    %v2123 = vmul.f32 %v1854, 0.125
    %v2124 = vmul.f32 %v1860, 0.125
    %v2125 = vmul.f32 %v1898, 0.125
    %v2126 = vmul.f32 %v1904, 0.125
    %v2127 = vmul.f32 %v1910, 0.125
    %v2128 = vmul.f32 %v1916, 0.125
    %v2129 = vmul.f32 %v1922, 0.125
    %v2130 = vmul.f32 %v1928, 0.125
    %v2131 = vmul.f32 %v1934, 0.125
    %v2132 = vmul.f32 %v1940, 0.125
    %v2133 = vmul.f32 %v1946, 0.125
    %v2134 = vmul.f32 %v1952, 0.125
    %v2135 = vmul.f32 %v1958, 0.125
    %v2136 = vmul.f32 %v1964, 0.125
    %v2137 = vmul.f32 %v1970, 0.125
    %v2138 = vmul.f32 %v1976, 0.125
    %v2139 = vmul.f32 %v1982, 0.125
    %v2140 = vmul.f32 %v1988, 0.125
    %v2141 = vmul.f32 %v1994, 0.125
    %v2142 = vmul.f32 %v2000, 0.125
    %v2143 = vmul.f32 %v2006, 0.125
    %v2144 = vmul.f32 %v2012, 0.125
    %v2145 = vmul.f32 %v2018, 0.125
    %v2146 = vmul.f32 %v2024, 0.125
    %v2147 = vmul.f32 %v2030, 0.125
    %v2148 = vmul.f32 %v2036, 0.125
    %v2149 = vmul.f32 %v2042, 0.125
    %v2150 = vmul.f32 %v2048, 0.125
    %v2151 = vmul.f32 %v2054, 0.125
    %v2152 = vmul.f32 %v2060, 0.125
    %v2153 = vmul.f32 %v2066, 0.125
    %v2154 = vmul.f32 %v2072, 0.125
    %v2155 = vmul.f32 %v2078, 0.125
    %v2156 = vmul.f32 %v2084, 0.125
    %v2157 = vmul.f32 %v2093, %v2093
    %v2158 = vmul.f32 %v2094, %v2094
    %v2159 = vmul.f32 %v2095, %v2095
    %v2160 = vmul.f32 %v2096, %v2096
    %v2161 = vmul.f32 %v2097, %v2097
    %v2162 = vmul.f32 %v2098, %v2098
    %v2163 = vmul.f32 %v2099, %v2099
    %v2164 = vmul.f32 %v2100, %v2100
    %v2165 = vmul.f32 %v2101, %v2101
    %v2166 = vmul.f32 %v2102, %v2102
    %v2167 = vmul.f32 %v2103, %v2103
    %v2168 = vmul.f32 %v2104, %v2104
    %v2169 = vmul.f32 %v2105, %v2105
    %v2170 = vmul.f32 %v2106, %v2106
    %v2171 = vmul.f32 %v2107, %v2107
    %v2172 = vmul.f32 %v2108, %v2108
    %v2173 = vmul.f32 %v2109, %v2109
    %v2174 = vmul.f32 %v2110, %v2110
    %v2175 = vmul.f32 %v2111, %v2111
    %v2176 = vmul.f32 %v2112, %v2112
    %v2177 = vmul.f32 %v2113, %v2113
    %v2178 = vmul.f32 %v2114, %v2114
    %v2179 = vmul.f32 %v2115, %v2115
    %v2180 = vmul.f32 %v2116, %v2116
    %v2181 = vmul.f32 %v2117, %v2117
    %v2182 = vmul.f32 %v2118, %v2118
    %v2183 = vmul.f32 %v2119, %v2119
    %v2184 = vmul.f32 %v2120, %v2120
    %v2185 = vmul.f32 %v2121, %v2121
    %v2186 = vmul.f32 %v2122, %v2122
    %v2187 = vmul.f32 %v2123, %v2123
    %v2188 = vmul.f32 %v2124, %v2124
    %v2189 = vsub.f32 %v2125, %v2157
    %v2190 = vsub.f32 %v2126, %v2158
    %v2191 = vsub.f32 %v2127, %v2159
    %v2192 = vsub.f32 %v2128, %v2160
    %v2193 = vsub.f32 %v2129, %v2161
    %v2194 = vsub.f32 %v2130, %v2162
    %v2195 = vsub.f32 %v2131, %v2163
    %v2196 = vsub.f32 %v2132, %v2164
    %v2197 = vsub.f32 %v2133, %v2165
    %v2198 = vsub.f32 %v2134, %v2166
    %v2199 = vsub.f32 %v2135, %v2167
    %v2200 = vsub.f32 %v2136, %v2168
    %v2201 = vsub.f32 %v2137, %v2169
    %v2202 = vsub.f32 %v2138, %v2170
    %v2203 = vsub.f32 %v2139, %v2171
    %v2204 = vsub.f32 %v2140, %v2172
    %v2205 = vsub.f32 %v2141, %v2173
    %v2206 = vsub.f32 %v2142, %v2174
    %v2207 = vsub.f32 %v2143, %v2175
    %v2208 = vsub.f32 %v2144, %v2176
    %v2209 = vsub.f32 %v2145, %v2177
    %v2210 = vsub.f32 %v2146, %v2178
    %v2211 = vsub.f32 %v2147, %v2179
    %v2212 = vsub.f32 %v2148, %v2180
    %v2213 = vsub.f32 %v2149, %v2181
    %v2214 = vsub.f32 %v2150, %v2182
    %v2215 = vsub.f32 %v2151, %v2183
    %v2216 = vsub.f32 %v2152, %v2184
    %v2217 = vsub.f32 %v2153, %v2185
    %v2218 = vsub.f32 %v2154, %v2186
    %v2219 = vsub.f32 %v2155, %v2187
    %v2220 = vsub.f32 %v2156, %v2188
    %v2221 = vmax.f32 %v2189, 0.0
    %v2222 = vmax.f32 %v2190, 0.0
    %v2223 = vmax.f32 %v2191, 0.0
    %v2224 = vmax.f32 %v2192, 0.0
    %v2225 = vmax.f32 %v2193, 0.0
    %v2226 = vmax.f32 %v2194, 0.0
    %v2227 = vmax.f32 %v2195, 0.0
    %v2228 = vmax.f32 %v2196, 0.0
    %v2229 = vmax.f32 %v2197, 0.0
    %v2230 = vmax.f32 %v2198, 0.0
    %v2231 = vmax.f32 %v2199, 0.0
    %v2232 = vmax.f32 %v2200, 0.0
    %v2233 = vmax.f32 %v2201, 0.0
    %v2234 = vmax.f32 %v2202, 0.0
    %v2235 = vmax.f32 %v2203, 0.0
    %v2236 = vmax.f32 %v2204, 0.0
    %v2237 = vmax.f32 %v2205, 0.0
    %v2238 = vmax.f32 %v2206, 0.0
    %v2239 = vmax.f32 %v2207, 0.0
    %v2240 = vmax.f32 %v2208, 0.0
    %v2241 = vmax.f32 %v2209, 0.0
    %v2242 = vmax.f32 %v2210, 0.0
    %v2243 = vmax.f32 %v2211, 0.0
    %v2244 = vmax.f32 %v2212, 0.0
    %v2245 = vmax.f32 %v2213, 0.0
    %v2246 = vmax.f32 %v2214, 0.0
    %v2247 = vmax.f32 %v2215, 0.0
    %v2248 = vmax.f32 %v2216, 0.0
    %v2249 = vmax.f32 %v2217, 0.0
    %v2250 = vmax.f32 %v2218, 0.0
    %v2251 = vmax.f32 %v2219, 0.0
    %v2252 = vmax.f32 %v2220, 0.0
    %v2253 = vadd.f32 %v2221, 1e-05
    %v2254 = vadd.f32 %v2222, 1e-05
    %v2255 = vadd.f32 %v2223, 1e-05
    %v2256 = vadd.f32 %v2224, 1e-05
    %v2257 = vadd.f32 %v2225, 1e-05
    %v2258 = vadd.f32 %v2226, 1e-05
    %v2259 = vadd.f32 %v2227, 1e-05
    %v2260 = vadd.f32 %v2228, 1e-05
    %v2261 = vadd.f32 %v2229, 1e-05
    %v2262 = vadd.f32 %v2230, 1e-05
    %v2263 = vadd.f32 %v2231, 1e-05
    %v2264 = vadd.f32 %v2232, 1e-05
    %v2265 = vadd.f32 %v2233, 1e-05
    %v2266 = vadd.f32 %v2234, 1e-05
    %v2267 = vadd.f32 %v2235, 1e-05
    %v2268 = vadd.f32 %v2236, 1e-05
    %v2269 = vadd.f32 %v2237, 1e-05
    %v2270 = vadd.f32 %v2238, 1e-05
    %v2271 = vadd.f32 %v2239, 1e-05
    %v2272 = vadd.f32 %v2240, 1e-05
    %v2273 = vadd.f32 %v2241, 1e-05
    %v2274 = vadd.f32 %v2242, 1e-05
    %v2275 = vadd.f32 %v2243, 1e-05
    %v2276 = vadd.f32 %v2244, 1e-05
    %v2277 = vadd.f32 %v2245, 1e-05
    %v2278 = vadd.f32 %v2246, 1e-05
    %v2279 = vadd.f32 %v2247, 1e-05
    %v2280 = vadd.f32 %v2248, 1e-05
    %v2281 = vadd.f32 %v2249, 1e-05
    %v2282 = vadd.f32 %v2250, 1e-05
    %v2283 = vadd.f32 %v2251, 1e-05
    %v2284 = vadd.f32 %v2252, 1e-05
    %v2285 = vrsqrt.pop %v2253
    %v2286 = vrsqrt.pop %v2254
    %v2287 = vrsqrt.pop %v2255
    %v2288 = vrsqrt.pop %v2256
    %v2289 = vrsqrt.pop %v2257
    %v2290 = vrsqrt.pop %v2258
    %v2291 = vrsqrt.pop %v2259
    %v2292 = vrsqrt.pop %v2260
    %v2293 = vrsqrt.pop %v2261
    %v2294 = vrsqrt.pop %v2262
    %v2295 = vrsqrt.pop %v2263
    %v2296 = vrsqrt.pop %v2264
    %v2297 = vrsqrt.pop %v2265
    %v2298 = vrsqrt.pop %v2266
    %v2299 = vrsqrt.pop %v2267
    %v2300 = vrsqrt.pop %v2268
    %v2301 = vrsqrt.pop %v2269
    %v2302 = vrsqrt.pop %v2270
    %v2303 = vrsqrt.pop %v2271
    %v2304 = vrsqrt.pop %v2272
    %v2305 = vrsqrt.pop %v2273
    %v2306 = vrsqrt.pop %v2274
    %v2307 = vrsqrt.pop %v2275
    %v2308 = vrsqrt.pop %v2276
    %v2309 = vrsqrt.pop %v2277
    %v2310 = vrsqrt.pop %v2278
    %v2311 = vrsqrt.pop %v2279
    %v2312 = vrsqrt.pop %v2280
    %v2313 = vrsqrt.pop %v2281
    %v2314 = vrsqrt.pop %v2282
    %v2315 = vrsqrt.pop %v2283
    %v2316 = vrsqrt.pop %v2284
    %v2349 = vcombine.low %v2285, %v2286
    %v2350 = vcombine.low %v2287, %v2288
    %v2351 = vcombine.low %v2289, %v2290
    %v2352 = vcombine.low %v2291, %v2292
    %v2354 = vunpack.c.l.s4 1966171168
    %v2355 = vunpack.c.0.s8 %v2354
    %v2356 = vlaneseq
    %v2357 = vshrl.u32 %v2356, 7
    %v2358 = vsub.s32 %v2355, %v2357
    %v2359 = vrot.slane %v2349, %v2358
    %v2361 = vunpack.c.l.s4 1966171168
    %v2362 = vunpack.c.0.s8 %v2361
    %v2363 = vlaneseq
    %v2364 = vshrl.u32 %v2363, 7
    %v2365 = vsub.s32 %v2362, %v2364
    %v2366 = vrot.slane %v2350, %v2365
    %v2368 = vunpack.c.l.s4 1966171168
    %v2369 = vunpack.c.0.s8 %v2368
    %v2370 = vlaneseq
    %v2371 = vshrl.u32 %v2370, 7
    %v2372 = vsub.s32 %v2369, %v2371
    %v2373 = vrot.slane %v2351, %v2372
    %v2375 = vunpack.c.l.s4 1966171168
    %v2376 = vunpack.c.0.s8 %v2375
    %v2377 = vlaneseq
    %v2378 = vshrl.u32 %v2377, 7
    %v2379 = vsub.s32 %v2376, %v2378
    %v2380 = vrot.slane %v2352, %v2379
    %v2381 = vcombine.low %v2359, %v2366
    %v2382 = vcombine.low %v2373, %v2380
    %v2384 = vunpack.c.l.s4 1966171168
    %v2385 = vunpack.c.0.s8 %v2384
    %v2386 = vlaneseq
    %v2387 = vshrl.u32 %v2386, 7
    %v2388 = vsub.s32 %v2385, %v2387
    %v2389 = vrot.slane %v2381, %v2388
    %v2391 = vunpack.c.l.s4 1966171168
    %v2392 = vunpack.c.0.s8 %v2391
    %v2393 = vlaneseq
    %v2394 = vshrl.u32 %v2393, 7
    %v2395 = vsub.s32 %v2392, %v2394
    %v2396 = vrot.slane %v2382, %v2395
    %v2397 = vcombine.low %v2389, %v2396
    %v2398 = vcombine.low %v2293, %v2294
    %v2399 = vcombine.low %v2295, %v2296
    %v2400 = vcombine.low %v2297, %v2298
    %v2401 = vcombine.low %v2299, %v2300
    %v2403 = vunpack.c.l.s4 1966171168
    %v2404 = vunpack.c.0.s8 %v2403
    %v2405 = vlaneseq
    %v2406 = vshrl.u32 %v2405, 7
    %v2407 = vsub.s32 %v2404, %v2406
    %v2408 = vrot.slane %v2398, %v2407
    %v2410 = vunpack.c.l.s4 1966171168
    %v2411 = vunpack.c.0.s8 %v2410
    %v2412 = vlaneseq
    %v2413 = vshrl.u32 %v2412, 7
    %v2414 = vsub.s32 %v2411, %v2413
    %v2415 = vrot.slane %v2399, %v2414
    %v2417 = vunpack.c.l.s4 1966171168
    %v2418 = vunpack.c.0.s8 %v2417
    %v2419 = vlaneseq
    %v2420 = vshrl.u32 %v2419, 7
    %v2421 = vsub.s32 %v2418, %v2420
    %v2422 = vrot.slane %v2400, %v2421
    %v2424 = vunpack.c.l.s4 1966171168
    %v2425 = vunpack.c.0.s8 %v2424
    %v2426 = vlaneseq
    %v2427 = vshrl.u32 %v2426, 7
    %v2428 = vsub.s32 %v2425, %v2427
    %v2429 = vrot.slane %v2401, %v2428
    %v2430 = vcombine.low %v2408, %v2415
    %v2431 = vcombine.low %v2422, %v2429
    %v2433 = vunpack.c.l.s4 1966171168
    %v2434 = vunpack.c.0.s8 %v2433
    %v2435 = vlaneseq
    %v2436 = vshrl.u32 %v2435, 7
    %v2437 = vsub.s32 %v2434, %v2436
    %v2438 = vrot.slane %v2430, %v2437
    %v2440 = vunpack.c.l.s4 1966171168
    %v2441 = vunpack.c.0.s8 %v2440
    %v2442 = vlaneseq
    %v2443 = vshrl.u32 %v2442, 7
    %v2444 = vsub.s32 %v2441, %v2443
    %v2445 = vrot.slane %v2431, %v2444
    %v2446 = vcombine.low %v2438, %v2445
    %v2447 = vcombine.low %v2301, %v2302
    %v2448 = vcombine.low %v2303, %v2304
    %v2449 = vcombine.low %v2305, %v2306
    %v2450 = vcombine.low %v2307, %v2308
    %v2452 = vunpack.c.l.s4 1966171168
    %v2453 = vunpack.c.0.s8 %v2452
    %v2454 = vlaneseq
    %v2455 = vshrl.u32 %v2454, 7
    %v2456 = vsub.s32 %v2453, %v2455
    %v2457 = vrot.slane %v2447, %v2456
    %v2459 = vunpack.c.l.s4 1966171168
    %v2460 = vunpack.c.0.s8 %v2459
    %v2461 = vlaneseq
    %v2462 = vshrl.u32 %v2461, 7
    %v2463 = vsub.s32 %v2460, %v2462
    %v2464 = vrot.slane %v2448, %v2463
    %v2466 = vunpack.c.l.s4 1966171168
    %v2467 = vunpack.c.0.s8 %v2466
    %v2468 = vlaneseq
    %v2469 = vshrl.u32 %v2468, 7
    %v2470 = vsub.s32 %v2467, %v2469
    %v2471 = vrot.slane %v2449, %v2470
    %v2473 = vunpack.c.l.s4 1966171168
    %v2474 = vunpack.c.0.s8 %v2473
    %v2475 = vlaneseq
    %v2476 = vshrl.u32 %v2475, 7
    %v2477 = vsub.s32 %v2474, %v2476
    %v2478 = vrot.slane %v2450, %v2477
    %v2479 = vcombine.low %v2457, %v2464
    %v2480 = vcombine.low %v2471, %v2478
    %v2482 = vunpack.c.l.s4 1966171168
    %v2483 = vunpack.c.0.s8 %v2482
    %v2484 = vlaneseq
    %v2485 = vshrl.u32 %v2484, 7
    %v2486 = vsub.s32 %v2483, %v2485
    %v2487 = vrot.slane %v2479, %v2486
    %v2489 = vunpack.c.l.s4 1966171168
    %v2490 = vunpack.c.0.s8 %v2489
    %v2491 = vlaneseq
    %v2492 = vshrl.u32 %v2491, 7
    %v2493 = vsub.s32 %v2490, %v2492
    %v2494 = vrot.slane %v2480, %v2493
    %v2495 = vcombine.low %v2487, %v2494
    %v2496 = vcombine.low %v2309, %v2310
    %v2497 = vcombine.low %v2311, %v2312
    %v2498 = vcombine.low %v2313, %v2314
    %v2499 = vcombine.low %v2315, %v2316
    %v2501 = vunpack.c.l.s4 1966171168
    %v2502 = vunpack.c.0.s8 %v2501
    %v2503 = vlaneseq
    %v2504 = vshrl.u32 %v2503, 7
    %v2505 = vsub.s32 %v2502, %v2504
    %v2506 = vrot.slane %v2496, %v2505
    %v2508 = vunpack.c.l.s4 1966171168
    %v2509 = vunpack.c.0.s8 %v2508
    %v2510 = vlaneseq
    %v2511 = vshrl.u32 %v2510, 7
    %v2512 = vsub.s32 %v2509, %v2511
    %v2513 = vrot.slane %v2497, %v2512
    %v2515 = vunpack.c.l.s4 1966171168
    %v2516 = vunpack.c.0.s8 %v2515
    %v2517 = vlaneseq
    %v2518 = vshrl.u32 %v2517, 7
    %v2519 = vsub.s32 %v2516, %v2518
    %v2520 = vrot.slane %v2498, %v2519
    %v2522 = vunpack.c.l.s4 1966171168
    %v2523 = vunpack.c.0.s8 %v2522
    %v2524 = vlaneseq
    %v2525 = vshrl.u32 %v2524, 7
    %v2526 = vsub.s32 %v2523, %v2525
    %v2527 = vrot.slane %v2499, %v2526
    %v2528 = vcombine.low %v2506, %v2513
    %v2529 = vcombine.low %v2520, %v2527
    %v2531 = vunpack.c.l.s4 1966171168
    %v2532 = vunpack.c.0.s8 %v2531
    %v2533 = vlaneseq
    %v2534 = vshrl.u32 %v2533, 7
    %v2535 = vsub.s32 %v2532, %v2534
    %v2536 = vrot.slane %v2528, %v2535
    %v2538 = vunpack.c.l.s4 1966171168
    %v2539 = vunpack.c.0.s8 %v2538
    %v2540 = vlaneseq
    %v2541 = vshrl.u32 %v2540, 7
    %v2542 = vsub.s32 %v2539, %v2541
    %v2543 = vrot.slane %v2529, %v2542
    %v2544 = vcombine.low %v2536, %v2543
    %v2549 = vmul.f32 %v2085, %v2397
    %v2550 = vmul.f32 %v2086, %v2446
    %v2551 = vmul.f32 %v2087, %v2495
    %v2552 = vmul.f32 %v2088, %v2544
    %v2557 = vlaneseq
    %v2558 = vshrl.u32 %v2557, 7
    %v2559 = vsub.s32 0, %v2558
    %v2560 = vrot.slane %v2549, %v2559
    %v2561 = vlaneseq
    %v2562 = vshrl.u32 %v2561, 7
    %v2563 = vsub.s32 1, %v2562
    %v2564 = vrot.slane %v2549, %v2563
    %v2565 = vlaneseq
    %v2566 = vshrl.u32 %v2565, 7
    %v2567 = vsub.s32 2, %v2566
    %v2568 = vrot.slane %v2549, %v2567
    %v2569 = vlaneseq
    %v2570 = vshrl.u32 %v2569, 7
    %v2571 = vsub.s32 3, %v2570
    %v2572 = vrot.slane %v2549, %v2571
    %v2573 = vlaneseq
    %v2574 = vshrl.u32 %v2573, 7
    %v2575 = vsub.s32 4, %v2574
    %v2576 = vrot.slane %v2549, %v2575
    %v2577 = vlaneseq
    %v2578 = vshrl.u32 %v2577, 7
    %v2579 = vsub.s32 5, %v2578
    %v2580 = vrot.slane %v2549, %v2579
    %v2581 = vlaneseq
    %v2582 = vshrl.u32 %v2581, 7
    %v2583 = vsub.s32 6, %v2582
    %v2584 = vrot.slane %v2549, %v2583
    %v2585 = vlaneseq
    %v2586 = vshrl.u32 %v2585, 7
    %v2587 = vsub.s32 7, %v2586
    %v2588 = vrot.slane %v2549, %v2587
    %v2589 = vlaneseq
    %v2590 = vshrl.u32 %v2589, 7
    %v2591 = vsub.s32 0, %v2590
    %v2592 = vrot.slane %v2550, %v2591
    %v2593 = vlaneseq
    %v2594 = vshrl.u32 %v2593, 7
    %v2595 = vsub.s32 1, %v2594
    %v2596 = vrot.slane %v2550, %v2595
    %v2597 = vlaneseq
    %v2598 = vshrl.u32 %v2597, 7
    %v2599 = vsub.s32 2, %v2598
    %v2600 = vrot.slane %v2550, %v2599
    %v2601 = vlaneseq
    %v2602 = vshrl.u32 %v2601, 7
    %v2603 = vsub.s32 3, %v2602
    %v2604 = vrot.slane %v2550, %v2603
    %v2605 = vlaneseq
    %v2606 = vshrl.u32 %v2605, 7
    %v2607 = vsub.s32 4, %v2606
    %v2608 = vrot.slane %v2550, %v2607
    %v2609 = vlaneseq
    %v2610 = vshrl.u32 %v2609, 7
    %v2611 = vsub.s32 5, %v2610
    %v2612 = vrot.slane %v2550, %v2611
    %v2613 = vlaneseq
    %v2614 = vshrl.u32 %v2613, 7
    %v2615 = vsub.s32 6, %v2614
    %v2616 = vrot.slane %v2550, %v2615
    %v2617 = vlaneseq
    %v2618 = vshrl.u32 %v2617, 7
    %v2619 = vsub.s32 7, %v2618
    %v2620 = vrot.slane %v2550, %v2619
    %v2621 = vlaneseq
    %v2622 = vshrl.u32 %v2621, 7
    %v2623 = vsub.s32 0, %v2622
    %v2624 = vrot.slane %v2551, %v2623
    %v2625 = vlaneseq
    %v2626 = vshrl.u32 %v2625, 7
    %v2627 = vsub.s32 1, %v2626
    %v2628 = vrot.slane %v2551, %v2627
    %v2629 = vlaneseq
    %v2630 = vshrl.u32 %v2629, 7
    %v2631 = vsub.s32 2, %v2630
    %v2632 = vrot.slane %v2551, %v2631
    %v2633 = vlaneseq
    %v2634 = vshrl.u32 %v2633, 7
    %v2635 = vsub.s32 3, %v2634
    %v2636 = vrot.slane %v2551, %v2635
    %v2637 = vlaneseq
    %v2638 = vshrl.u32 %v2637, 7
    %v2639 = vsub.s32 4, %v2638
    %v2640 = vrot.slane %v2551, %v2639
    %v2641 = vlaneseq
    %v2642 = vshrl.u32 %v2641, 7
    %v2643 = vsub.s32 5, %v2642
    %v2644 = vrot.slane %v2551, %v2643
    %v2645 = vlaneseq
    %v2646 = vshrl.u32 %v2645, 7
    %v2647 = vsub.s32 6, %v2646
    %v2648 = vrot.slane %v2551, %v2647
    %v2649 = vlaneseq
    %v2650 = vshrl.u32 %v2649, 7
    %v2651 = vsub.s32 7, %v2650
    %v2652 = vrot.slane %v2551, %v2651
    %v2653 = vlaneseq
    %v2654 = vshrl.u32 %v2653, 7
    %v2655 = vsub.s32 0, %v2654
    %v2656 = vrot.slane %v2552, %v2655
    %v2657 = vlaneseq
    %v2658 = vshrl.u32 %v2657, 7
    %v2659 = vsub.s32 1, %v2658
    %v2660 = vrot.slane %v2552, %v2659
    %v2661 = vlaneseq
    %v2662 = vshrl.u32 %v2661, 7
    %v2663 = vsub.s32 2, %v2662
    %v2664 = vrot.slane %v2552, %v2663
    %v2665 = vlaneseq
    %v2666 = vshrl.u32 %v2665, 7
    %v2667 = vsub.s32 3, %v2666
    %v2668 = vrot.slane %v2552, %v2667
    %v2669 = vlaneseq
    %v2670 = vshrl.u32 %v2669, 7
    %v2671 = vsub.s32 4, %v2670
    %v2672 = vrot.slane %v2552, %v2671
    %v2673 = vlaneseq
    %v2674 = vshrl.u32 %v2673, 7
    %v2675 = vsub.s32 5, %v2674
    %v2676 = vrot.slane %v2552, %v2675
    %v2677 = vlaneseq
    %v2678 = vshrl.u32 %v2677, 7
    %v2679 = vsub.s32 6, %v2678
    %v2680 = vrot.slane %v2552, %v2679
    %v2681 = vlaneseq
    %v2682 = vshrl.u32 %v2681, 7
    %v2683 = vsub.s32 7, %v2682
    %v2684 = vrot.slane %v2552, %v2683
    %v2717 = vmul.f32 %v2093, %v2560
    %v2718 = vmul.f32 %v2094, %v2564
    %v2719 = vmul.f32 %v2095, %v2568
    %v2720 = vmul.f32 %v2096, %v2572
    %v2721 = vmul.f32 %v2097, %v2576
    %v2722 = vmul.f32 %v2098, %v2580
    %v2723 = vmul.f32 %v2099, %v2584
    %v2724 = vmul.f32 %v2100, %v2588
    %v2725 = vmul.f32 %v2101, %v2592
    %v2726 = vmul.f32 %v2102, %v2596
    %v2727 = vmul.f32 %v2103, %v2600
    %v2728 = vmul.f32 %v2104, %v2604
    %v2729 = vmul.f32 %v2105, %v2608
    %v2730 = vmul.f32 %v2106, %v2612
    %v2731 = vmul.f32 %v2107, %v2616
    %v2732 = vmul.f32 %v2108, %v2620
    %v2733 = vmul.f32 %v2109, %v2624
    %v2734 = vmul.f32 %v2110, %v2628
    %v2735 = vmul.f32 %v2111, %v2632
    %v2736 = vmul.f32 %v2112, %v2636
    %v2737 = vmul.f32 %v2113, %v2640
    %v2738 = vmul.f32 %v2114, %v2644
    %v2739 = vmul.f32 %v2115, %v2648
    %v2740 = vmul.f32 %v2116, %v2652
    %v2741 = vmul.f32 %v2117, %v2656
    %v2742 = vmul.f32 %v2118, %v2660
    %v2743 = vmul.f32 %v2119, %v2664
    %v2744 = vmul.f32 %v2120, %v2668
    %v2745 = vmul.f32 %v2121, %v2672
    %v2746 = vmul.f32 %v2122, %v2676
    %v2747 = vmul.f32 %v2123, %v2680
    %v2748 = vmul.f32 %v2124, %v2684
    %v2781 = vcombine.low %v2717, %v2718
    %v2782 = vcombine.low %v2719, %v2720
    %v2783 = vcombine.low %v2721, %v2722
    %v2784 = vcombine.low %v2723, %v2724
    %v2786 = vunpack.c.l.s4 1966171168
    %v2787 = vunpack.c.0.s8 %v2786
    %v2788 = vlaneseq
    %v2789 = vshrl.u32 %v2788, 7
    %v2790 = vsub.s32 %v2787, %v2789
    %v2791 = vrot.slane %v2781, %v2790
    %v2793 = vunpack.c.l.s4 1966171168
    %v2794 = vunpack.c.0.s8 %v2793
    %v2795 = vlaneseq
    %v2796 = vshrl.u32 %v2795, 7
    %v2797 = vsub.s32 %v2794, %v2796
    %v2798 = vrot.slane %v2782, %v2797
    %v2800 = vunpack.c.l.s4 1966171168
    %v2801 = vunpack.c.0.s8 %v2800
    %v2802 = vlaneseq
    %v2803 = vshrl.u32 %v2802, 7
    %v2804 = vsub.s32 %v2801, %v2803
    %v2805 = vrot.slane %v2783, %v2804
    %v2807 = vunpack.c.l.s4 1966171168
    %v2808 = vunpack.c.0.s8 %v2807
    %v2809 = vlaneseq
    %v2810 = vshrl.u32 %v2809, 7
    %v2811 = vsub.s32 %v2808, %v2810
    %v2812 = vrot.slane %v2784, %v2811
    %v2813 = vcombine.low %v2791, %v2798
    %v2814 = vcombine.low %v2805, %v2812
    %v2816 = vunpack.c.l.s4 1966171168
    %v2817 = vunpack.c.0.s8 %v2816
    %v2818 = vlaneseq
    %v2819 = vshrl.u32 %v2818, 7
    %v2820 = vsub.s32 %v2817, %v2819
    %v2821 = vrot.slane %v2813, %v2820
    %v2823 = vunpack.c.l.s4 1966171168
    %v2824 = vunpack.c.0.s8 %v2823
    %v2825 = vlaneseq
    %v2826 = vshrl.u32 %v2825, 7
    %v2827 = vsub.s32 %v2824, %v2826
    %v2828 = vrot.slane %v2814, %v2827
    %v2829 = vcombine.low %v2821, %v2828
    %v2830 = vcombine.low %v2725, %v2726
    %v2831 = vcombine.low %v2727, %v2728
    %v2832 = vcombine.low %v2729, %v2730
    %v2833 = vcombine.low %v2731, %v2732
    %v2835 = vunpack.c.l.s4 1966171168
    %v2836 = vunpack.c.0.s8 %v2835
    %v2837 = vlaneseq
    %v2838 = vshrl.u32 %v2837, 7
    %v2839 = vsub.s32 %v2836, %v2838
    %v2840 = vrot.slane %v2830, %v2839
    %v2842 = vunpack.c.l.s4 1966171168
    %v2843 = vunpack.c.0.s8 %v2842
    %v2844 = vlaneseq
    %v2845 = vshrl.u32 %v2844, 7
    %v2846 = vsub.s32 %v2843, %v2845
    %v2847 = vrot.slane %v2831, %v2846
    %v2849 = vunpack.c.l.s4 1966171168
    %v2850 = vunpack.c.0.s8 %v2849
    %v2851 = vlaneseq
    %v2852 = vshrl.u32 %v2851, 7
    %v2853 = vsub.s32 %v2850, %v2852
    %v2854 = vrot.slane %v2832, %v2853
    %v2856 = vunpack.c.l.s4 1966171168
    %v2857 = vunpack.c.0.s8 %v2856
    %v2858 = vlaneseq
    %v2859 = vshrl.u32 %v2858, 7
    %v2860 = vsub.s32 %v2857, %v2859
    %v2861 = vrot.slane %v2833, %v2860
    %v2862 = vcombine.low %v2840, %v2847
    %v2863 = vcombine.low %v2854, %v2861
    %v2865 = vunpack.c.l.s4 1966171168
    %v2866 = vunpack.c.0.s8 %v2865
    %v2867 = vlaneseq
    %v2868 = vshrl.u32 %v2867, 7
    %v2869 = vsub.s32 %v2866, %v2868
    %v2870 = vrot.slane %v2862, %v2869
    %v2872 = vunpack.c.l.s4 1966171168
    %v2873 = vunpack.c.0.s8 %v2872
    %v2874 = vlaneseq
    %v2875 = vshrl.u32 %v2874, 7
    %v2876 = vsub.s32 %v2873, %v2875
    %v2877 = vrot.slane %v2863, %v2876
    %v2878 = vcombine.low %v2870, %v2877
    %v2879 = vcombine.low %v2733, %v2734
    %v2880 = vcombine.low %v2735, %v2736
    %v2881 = vcombine.low %v2737, %v2738
    %v2882 = vcombine.low %v2739, %v2740
    %v2884 = vunpack.c.l.s4 1966171168
    %v2885 = vunpack.c.0.s8 %v2884
    %v2886 = vlaneseq
    %v2887 = vshrl.u32 %v2886, 7
    %v2888 = vsub.s32 %v2885, %v2887
    %v2889 = vrot.slane %v2879, %v2888
    %v2891 = vunpack.c.l.s4 1966171168
    %v2892 = vunpack.c.0.s8 %v2891
    %v2893 = vlaneseq
    %v2894 = vshrl.u32 %v2893, 7
    %v2895 = vsub.s32 %v2892, %v2894
    %v2896 = vrot.slane %v2880, %v2895
    %v2898 = vunpack.c.l.s4 1966171168
    %v2899 = vunpack.c.0.s8 %v2898
    %v2900 = vlaneseq
    %v2901 = vshrl.u32 %v2900, 7
    %v2902 = vsub.s32 %v2899, %v2901
    %v2903 = vrot.slane %v2881, %v2902
    %v2905 = vunpack.c.l.s4 1966171168
    %v2906 = vunpack.c.0.s8 %v2905
    %v2907 = vlaneseq
    %v2908 = vshrl.u32 %v2907, 7
    %v2909 = vsub.s32 %v2906, %v2908
    %v2910 = vrot.slane %v2882, %v2909
    %v2911 = vcombine.low %v2889, %v2896
    %v2912 = vcombine.low %v2903, %v2910
    %v2914 = vunpack.c.l.s4 1966171168
    %v2915 = vunpack.c.0.s8 %v2914
    %v2916 = vlaneseq
    %v2917 = vshrl.u32 %v2916, 7
    %v2918 = vsub.s32 %v2915, %v2917
    %v2919 = vrot.slane %v2911, %v2918
    %v2921 = vunpack.c.l.s4 1966171168
    %v2922 = vunpack.c.0.s8 %v2921
    %v2923 = vlaneseq
    %v2924 = vshrl.u32 %v2923, 7
    %v2925 = vsub.s32 %v2922, %v2924
    %v2926 = vrot.slane %v2912, %v2925
    %v2927 = vcombine.low %v2919, %v2926
    %v2928 = vcombine.low %v2741, %v2742
    %v2929 = vcombine.low %v2743, %v2744
    %v2930 = vcombine.low %v2745, %v2746
    %v2931 = vcombine.low %v2747, %v2748
    %v2933 = vunpack.c.l.s4 1966171168
    %v2934 = vunpack.c.0.s8 %v2933
    %v2935 = vlaneseq
    %v2936 = vshrl.u32 %v2935, 7
    %v2937 = vsub.s32 %v2934, %v2936
    %v2938 = vrot.slane %v2928, %v2937
    %v2940 = vunpack.c.l.s4 1966171168
    %v2941 = vunpack.c.0.s8 %v2940
    %v2942 = vlaneseq
    %v2943 = vshrl.u32 %v2942, 7
    %v2944 = vsub.s32 %v2941, %v2943
    %v2945 = vrot.slane %v2929, %v2944
    %v2947 = vunpack.c.l.s4 1966171168
    %v2948 = vunpack.c.0.s8 %v2947
    %v2949 = vlaneseq
    %v2950 = vshrl.u32 %v2949, 7
    %v2951 = vsub.s32 %v2948, %v2950
    %v2952 = vrot.slane %v2930, %v2951
    %v2954 = vunpack.c.l.s4 1966171168
    %v2955 = vunpack.c.0.s8 %v2954
    %v2956 = vlaneseq
    %v2957 = vshrl.u32 %v2956, 7
    %v2958 = vsub.s32 %v2955, %v2957
    %v2959 = vrot.slane %v2931, %v2958
    %v2960 = vcombine.low %v2938, %v2945
    %v2961 = vcombine.low %v2952, %v2959
    %v2963 = vunpack.c.l.s4 1966171168
    %v2964 = vunpack.c.0.s8 %v2963
    %v2965 = vlaneseq
    %v2966 = vshrl.u32 %v2965, 7
    %v2967 = vsub.s32 %v2964, %v2966
    %v2968 = vrot.slane %v2960, %v2967
    %v2970 = vunpack.c.l.s4 1966171168
    %v2971 = vunpack.c.0.s8 %v2970
    %v2972 = vlaneseq
    %v2973 = vshrl.u32 %v2972, 7
    %v2974 = vsub.s32 %v2971, %v2973
    %v2975 = vrot.slane %v2961, %v2974
    %v2976 = vcombine.low %v2968, %v2975
    %v2981 = vsub.f32 %v2089, %v2829
    %v2982 = vsub.f32 %v2090, %v2878
    %v2983 = vsub.f32 %v2091, %v2927
    %v2984 = vsub.f32 %v2092, %v2976
    %v2985 = vmul.f32 %v1048, %v2560
    %v2986 = vmul.f32 %v1050, %v2564
    %v2987 = vmul.f32 %v1089, %v2568
    %v2988 = vmul.f32 %v1091, %v2572
    %v2989 = vmul.f32 %v1130, %v2576
    %v2990 = vmul.f32 %v1132, %v2580
    %v2991 = vmul.f32 %v1171, %v2584
    %v2992 = vmul.f32 %v1173, %v2588
    %v2993 = vmul.f32 %v1212, %v2592
    %v2994 = vmul.f32 %v1214, %v2596
    %v2995 = vmul.f32 %v1253, %v2600
    %v2996 = vmul.f32 %v1255, %v2604
    %v2997 = vmul.f32 %v1294, %v2608
    %v2998 = vmul.f32 %v1296, %v2612
    %v2999 = vmul.f32 %v1335, %v2616
    %v3000 = vmul.f32 %v1337, %v2620
    %v3001 = vmul.f32 %v1376, %v2624
    %v3002 = vmul.f32 %v1378, %v2628
    %v3003 = vmul.f32 %v1417, %v2632
    %v3004 = vmul.f32 %v1419, %v2636
    %v3005 = vmul.f32 %v1458, %v2640
    %v3006 = vmul.f32 %v1460, %v2644
    %v3007 = vmul.f32 %v1499, %v2648
    %v3008 = vmul.f32 %v1501, %v2652
    %v3009 = vmul.f32 %v1540, %v2656
    %v3010 = vmul.f32 %v1542, %v2660
    %v3011 = vmul.f32 %v1581, %v2664
    %v3012 = vmul.f32 %v1583, %v2668
    %v3013 = vmul.f32 %v1622, %v2672
    %v3014 = vmul.f32 %v1624, %v2676
    %v3015 = vmul.f32 %v1663, %v2680
    %v3016 = vmul.f32 %v1665, %v2684
    %v3021 = vlaneseq
    %v3022 = vshrl.u32 %v3021, 7
    %v3023 = vsub.s32 0, %v3022
    %v3024 = vrot.slane %v2981, %v3023
    %v3025 = vlaneseq
    %v3026 = vshrl.u32 %v3025, 7
    %v3027 = vsub.s32 1, %v3026
    %v3028 = vrot.slane %v2981, %v3027
    %v3029 = vlaneseq
    %v3030 = vshrl.u32 %v3029, 7
    %v3031 = vsub.s32 2, %v3030
    %v3032 = vrot.slane %v2981, %v3031
    %v3033 = vlaneseq
    %v3034 = vshrl.u32 %v3033, 7
    %v3035 = vsub.s32 3, %v3034
    %v3036 = vrot.slane %v2981, %v3035
    %v3037 = vlaneseq
    %v3038 = vshrl.u32 %v3037, 7
    %v3039 = vsub.s32 4, %v3038
    %v3040 = vrot.slane %v2981, %v3039
    %v3041 = vlaneseq
    %v3042 = vshrl.u32 %v3041, 7
    %v3043 = vsub.s32 5, %v3042
    %v3044 = vrot.slane %v2981, %v3043
    %v3045 = vlaneseq
    %v3046 = vshrl.u32 %v3045, 7
    %v3047 = vsub.s32 6, %v3046
    %v3048 = vrot.slane %v2981, %v3047
    %v3049 = vlaneseq
    %v3050 = vshrl.u32 %v3049, 7
    %v3051 = vsub.s32 7, %v3050
    %v3052 = vrot.slane %v2981, %v3051
    %v3053 = vlaneseq
    %v3054 = vshrl.u32 %v3053, 7
    %v3055 = vsub.s32 0, %v3054
    %v3056 = vrot.slane %v2982, %v3055
    %v3057 = vlaneseq
    %v3058 = vshrl.u32 %v3057, 7
    %v3059 = vsub.s32 1, %v3058
    %v3060 = vrot.slane %v2982, %v3059
    %v3061 = vlaneseq
    %v3062 = vshrl.u32 %v3061, 7
    %v3063 = vsub.s32 2, %v3062
    %v3064 = vrot.slane %v2982, %v3063
    %v3065 = vlaneseq
    %v3066 = vshrl.u32 %v3065, 7
    %v3067 = vsub.s32 3, %v3066
    %v3068 = vrot.slane %v2982, %v3067
    %v3069 = vlaneseq
    %v3070 = vshrl.u32 %v3069, 7
    %v3071 = vsub.s32 4, %v3070
    %v3072 = vrot.slane %v2982, %v3071
    %v3073 = vlaneseq
    %v3074 = vshrl.u32 %v3073, 7
    %v3075 = vsub.s32 5, %v3074
    %v3076 = vrot.slane %v2982, %v3075
    %v3077 = vlaneseq
    %v3078 = vshrl.u32 %v3077, 7
    %v3079 = vsub.s32 6, %v3078
    %v3080 = vrot.slane %v2982, %v3079
    %v3081 = vlaneseq
    %v3082 = vshrl.u32 %v3081, 7
    %v3083 = vsub.s32 7, %v3082
    %v3084 = vrot.slane %v2982, %v3083
    %v3085 = vlaneseq
    %v3086 = vshrl.u32 %v3085, 7
    %v3087 = vsub.s32 0, %v3086
    %v3088 = vrot.slane %v2983, %v3087
    %v3089 = vlaneseq
    %v3090 = vshrl.u32 %v3089, 7
    %v3091 = vsub.s32 1, %v3090
    %v3092 = vrot.slane %v2983, %v3091
    %v3093 = vlaneseq
    %v3094 = vshrl.u32 %v3093, 7
    %v3095 = vsub.s32 2, %v3094
    %v3096 = vrot.slane %v2983, %v3095
    %v3097 = vlaneseq
    %v3098 = vshrl.u32 %v3097, 7
    %v3099 = vsub.s32 3, %v3098
    %v3100 = vrot.slane %v2983, %v3099
    %v3101 = vlaneseq
    %v3102 = vshrl.u32 %v3101, 7
    %v3103 = vsub.s32 4, %v3102
    %v3104 = vrot.slane %v2983, %v3103
    %v3105 = vlaneseq
    %v3106 = vshrl.u32 %v3105, 7
    %v3107 = vsub.s32 5, %v3106
    %v3108 = vrot.slane %v2983, %v3107
    %v3109 = vlaneseq
    %v3110 = vshrl.u32 %v3109, 7
    %v3111 = vsub.s32 6, %v3110
    %v3112 = vrot.slane %v2983, %v3111
    %v3113 = vlaneseq
    %v3114 = vshrl.u32 %v3113, 7
    %v3115 = vsub.s32 7, %v3114
    %v3116 = vrot.slane %v2983, %v3115
    %v3117 = vlaneseq
    %v3118 = vshrl.u32 %v3117, 7
    %v3119 = vsub.s32 0, %v3118
    %v3120 = vrot.slane %v2984, %v3119
    %v3121 = vlaneseq
    %v3122 = vshrl.u32 %v3121, 7
    %v3123 = vsub.s32 1, %v3122
    %v3124 = vrot.slane %v2984, %v3123
    %v3125 = vlaneseq
    %v3126 = vshrl.u32 %v3125, 7
    %v3127 = vsub.s32 2, %v3126
    %v3128 = vrot.slane %v2984, %v3127
    %v3129 = vlaneseq
    %v3130 = vshrl.u32 %v3129, 7
    %v3131 = vsub.s32 3, %v3130
    %v3132 = vrot.slane %v2984, %v3131
    %v3133 = vlaneseq
    %v3134 = vshrl.u32 %v3133, 7
    %v3135 = vsub.s32 4, %v3134
    %v3136 = vrot.slane %v2984, %v3135
    %v3137 = vlaneseq
    %v3138 = vshrl.u32 %v3137, 7
    %v3139 = vsub.s32 5, %v3138
    %v3140 = vrot.slane %v2984, %v3139
    %v3141 = vlaneseq
    %v3142 = vshrl.u32 %v3141, 7
    %v3143 = vsub.s32 6, %v3142
    %v3144 = vrot.slane %v2984, %v3143
    %v3145 = vlaneseq
    %v3146 = vshrl.u32 %v3145, 7
    %v3147 = vsub.s32 7, %v3146
    %v3148 = vrot.slane %v2984, %v3147
    %v3181 = vadd.f32 %v2985, %v3024
    %v3182 = vadd.f32 %v2986, %v3028
    %v3183 = vadd.f32 %v2987, %v3032
    %v3184 = vadd.f32 %v2988, %v3036
    %v3185 = vadd.f32 %v2989, %v3040
    %v3186 = vadd.f32 %v2990, %v3044
    %v3187 = vadd.f32 %v2991, %v3048
    %v3188 = vadd.f32 %v2992, %v3052
    %v3189 = vadd.f32 %v2993, %v3056
    %v3190 = vadd.f32 %v2994, %v3060
    %v3191 = vadd.f32 %v2995, %v3064
    %v3192 = vadd.f32 %v2996, %v3068
    %v3193 = vadd.f32 %v2997, %v3072
    %v3194 = vadd.f32 %v2998, %v3076
    %v3195 = vadd.f32 %v2999, %v3080
    %v3196 = vadd.f32 %v3000, %v3084
    %v3197 = vadd.f32 %v3001, %v3088
    %v3198 = vadd.f32 %v3002, %v3092
    %v3199 = vadd.f32 %v3003, %v3096
    %v3200 = vadd.f32 %v3004, %v3100
    %v3201 = vadd.f32 %v3005, %v3104
    %v3202 = vadd.f32 %v3006, %v3108
    %v3203 = vadd.f32 %v3007, %v3112
    %v3204 = vadd.f32 %v3008, %v3116
    %v3205 = vadd.f32 %v3009, %v3120
    %v3206 = vadd.f32 %v3010, %v3124
    %v3207 = vadd.f32 %v3011, %v3128
    %v3208 = vadd.f32 %v3012, %v3132
    %v3209 = vadd.f32 %v3013, %v3136
    %v3210 = vadd.f32 %v3014, %v3140
    %v3211 = vadd.f32 %v3015, %v3144
    %v3212 = vadd.f32 %v3016, %v3148
    %v3213 = vmax.f32 %v3181, 0.0
    %v3214 = vmax.f32 %v3182, 0.0
    %v3215 = vmax.f32 %v3183, 0.0
    %v3216 = vmax.f32 %v3184, 0.0
    %v3217 = vmax.f32 %v3185, 0.0
    %v3218 = vmax.f32 %v3186, 0.0
    %v3219 = vmax.f32 %v3187, 0.0
    %v3220 = vmax.f32 %v3188, 0.0
    %v3221 = vmax.f32 %v3189, 0.0
    %v3222 = vmax.f32 %v3190, 0.0
    %v3223 = vmax.f32 %v3191, 0.0
    %v3224 = vmax.f32 %v3192, 0.0
    %v3225 = vmax.f32 %v3193, 0.0
    %v3226 = vmax.f32 %v3194, 0.0
    %v3227 = vmax.f32 %v3195, 0.0
    %v3228 = vmax.f32 %v3196, 0.0
    %v3229 = vmax.f32 %v3197, 0.0
    %v3230 = vmax.f32 %v3198, 0.0
    %v3231 = vmax.f32 %v3199, 0.0
    %v3232 = vmax.f32 %v3200, 0.0
    %v3233 = vmax.f32 %v3201, 0.0
    %v3234 = vmax.f32 %v3202, 0.0
    %v3235 = vmax.f32 %v3203, 0.0
    %v3236 = vmax.f32 %v3204, 0.0
    %v3237 = vmax.f32 %v3205, 0.0
    %v3238 = vmax.f32 %v3206, 0.0
    %v3239 = vmax.f32 %v3207, 0.0
    %v3240 = vmax.f32 %v3208, 0.0
    %v3241 = vmax.f32 %v3209, 0.0
    %v3242 = vmax.f32 %v3210, 0.0
    %v3243 = vmax.f32 %v3211, 0.0
    %v3244 = vmax.f32 %v3212, 0.0
    %s3245 = smul.u32 4, 32
    %s3246 = smul.u32 %s3245, 4
    %s3247 = sshll.u32 %s3246, 4
    %3248 = dma.done [#allocation5], %s3247
    %v3249 = vpack.c.bf16 %v3215, %v3213
    %v3250 = vpack.c.bf16 %v3216, %v3214
    %v3251 = vpack.c.bf16 %v3219, %v3217
    %v3252 = vpack.c.bf16 %v3220, %v3218
    %v3253 = vpack.c.bf16 %v3223, %v3221
    %v3254 = vpack.c.bf16 %v3224, %v3222
    %v3255 = vpack.c.bf16 %v3227, %v3225
    %v3256 = vpack.c.bf16 %v3228, %v3226
    %v3257 = vpack.c.bf16 %v3231, %v3229
    %v3258 = vpack.c.bf16 %v3232, %v3230
    %v3259 = vpack.c.bf16 %v3235, %v3233
    %v3260 = vpack.c.bf16 %v3236, %v3234
    %v3261 = vpack.c.bf16 %v3239, %v3237
    %v3262 = vpack.c.bf16 %v3240, %v3238
    %v3263 = vpack.c.bf16 %v3243, %v3241
    %v3264 = vpack.c.bf16 %v3244, %v3242
    %v3265 = vld [vmem:[#allocation2] sm:$0xff]
    %v3266 = vld [vmem:[#allocation2 + $0x8] sm:$0xff]
    %v3267 = vld [vmem:[#allocation2 + $0x10] sm:$0xff]
    %v3268 = vld [vmem:[#allocation2 + $0x18] sm:$0xff]
    %v3269 = vld [vmem:[#allocation2 + $0x20] sm:$0xff]
    %v3270 = vld [vmem:[#allocation2 + $0x28] sm:$0xff]
    %v3271 = vld [vmem:[#allocation2 + $0x30] sm:$0xff]
    %v3272 = vld [vmem:[#allocation2 + $0x38] sm:$0xff]
    %v3273 = vld [vmem:[#allocation2 + $0x40] sm:$0xff]
    %v3274 = vld [vmem:[#allocation2 + $0x48] sm:$0xff]
    %v3275 = vld [vmem:[#allocation2 + $0x50] sm:$0xff]
    %v3276 = vld [vmem:[#allocation2 + $0x58] sm:$0xff]
    %v3277 = vld [vmem:[#allocation2 + $0x60] sm:$0xff]
    %v3278 = vld [vmem:[#allocation2 + $0x68] sm:$0xff]
    %v3279 = vld [vmem:[#allocation2 + $0x70] sm:$0xff]
    %v3280 = vld [vmem:[#allocation2 + $0x78] sm:$0xff]
    %v3281 = vld [vmem:[#allocation2 + $0x80] sm:$0xff]
    %v3282 = vld [vmem:[#allocation2 + $0x88] sm:$0xff]
    %v3283 = vld [vmem:[#allocation2 + $0x90] sm:$0xff]
    %v3284 = vld [vmem:[#allocation2 + $0x98] sm:$0xff]
    %v3285 = vld [vmem:[#allocation2 + $0xa0] sm:$0xff]
    %v3286 = vld [vmem:[#allocation2 + $0xa8] sm:$0xff]
    %v3287 = vld [vmem:[#allocation2 + $0xb0] sm:$0xff]
    %v3288 = vld [vmem:[#allocation2 + $0xb8] sm:$0xff]
    %v3289 = vld [vmem:[#allocation2 + $0xc0] sm:$0xff]
    %v3290 = vld [vmem:[#allocation2 + $0xc8] sm:$0xff]
    %v3291 = vld [vmem:[#allocation2 + $0xd0] sm:$0xff]
    %v3292 = vld [vmem:[#allocation2 + $0xd8] sm:$0xff]
    %v3293 = vld [vmem:[#allocation2 + $0xe0] sm:$0xff]
    %v3294 = vld [vmem:[#allocation2 + $0xe8] sm:$0xff]
    %v3295 = vld [vmem:[#allocation2 + $0xf0] sm:$0xff]
    %v3296 = vld [vmem:[#allocation2 + $0xf8] sm:$0xff]
    %v3297 = vld [vmem:[#allocation2 + $0x100] sm:$0xff]
    %v3298 = vld [vmem:[#allocation2 + $0x108] sm:$0xff]
    %v3299 = vld [vmem:[#allocation2 + $0x110] sm:$0xff]
    %v3300 = vld [vmem:[#allocation2 + $0x118] sm:$0xff]
    %v3301 = vld [vmem:[#allocation2 + $0x120] sm:$0xff]
    %v3302 = vld [vmem:[#allocation2 + $0x128] sm:$0xff]
    %v3303 = vld [vmem:[#allocation2 + $0x130] sm:$0xff]
    %v3304 = vld [vmem:[#allocation2 + $0x138] sm:$0xff]
    %v3305 = vld [vmem:[#allocation2 + $0x140] sm:$0xff]
    %v3306 = vld [vmem:[#allocation2 + $0x148] sm:$0xff]
    %v3307 = vld [vmem:[#allocation2 + $0x150] sm:$0xff]
    %v3308 = vld [vmem:[#allocation2 + $0x158] sm:$0xff]
    %v3309 = vld [vmem:[#allocation2 + $0x160] sm:$0xff]
    %v3310 = vld [vmem:[#allocation2 + $0x168] sm:$0xff]
    %v3311 = vld [vmem:[#allocation2 + $0x170] sm:$0xff]
    %v3312 = vld [vmem:[#allocation2 + $0x178] sm:$0xff]
    %v3313 = vld [vmem:[#allocation2 + $0x180] sm:$0xff]
    %v3314 = vld [vmem:[#allocation2 + $0x188] sm:$0xff]
    %v3315 = vld [vmem:[#allocation2 + $0x190] sm:$0xff]
    %v3316 = vld [vmem:[#allocation2 + $0x198] sm:$0xff]
    %v3317 = vld [vmem:[#allocation2 + $0x1a0] sm:$0xff]
    %v3318 = vld [vmem:[#allocation2 + $0x1a8] sm:$0xff]
    %v3319 = vld [vmem:[#allocation2 + $0x1b0] sm:$0xff]
    %v3320 = vld [vmem:[#allocation2 + $0x1b8] sm:$0xff]
    %v3321 = vld [vmem:[#allocation2 + $0x1c0] sm:$0xff]
    %v3322 = vld [vmem:[#allocation2 + $0x1c8] sm:$0xff]
    %v3323 = vld [vmem:[#allocation2 + $0x1d0] sm:$0xff]
    %v3324 = vld [vmem:[#allocation2 + $0x1d8] sm:$0xff]
    %v3325 = vld [vmem:[#allocation2 + $0x1e0] sm:$0xff]
    %v3326 = vld [vmem:[#allocation2 + $0x1e8] sm:$0xff]
    %v3327 = vld [vmem:[#allocation2 + $0x1f0] sm:$0xff]
    %v3328 = vld [vmem:[#allocation2 + $0x1f8] sm:$0xff]
    %v3393 = vunpack.c.l.b16 %v3265
    %v3394 = vunpack.c.h.b16 %v3265
    %v3395 = vunpack.c.l.b16 %v3266
    %v3396 = vunpack.c.h.b16 %v3266
    %v3397 = vunpack.c.l.b16 %v3267
    %v3398 = vunpack.c.h.b16 %v3267
    %v3399 = vunpack.c.l.b16 %v3268
    %v3400 = vunpack.c.h.b16 %v3268
    %v3401 = vunpack.c.l.b16 %v3269
    %v3402 = vunpack.c.h.b16 %v3269
    %v3403 = vunpack.c.l.b16 %v3270
    %v3404 = vunpack.c.h.b16 %v3270
    %v3405 = vunpack.c.l.b16 %v3271
    %v3406 = vunpack.c.h.b16 %v3271
    %v3407 = vunpack.c.l.b16 %v3272
    %v3408 = vunpack.c.h.b16 %v3272
    %v3409 = vunpack.c.l.b16 %v3273
    %v3410 = vunpack.c.h.b16 %v3273
    %v3411 = vunpack.c.l.b16 %v3274
    %v3412 = vunpack.c.h.b16 %v3274
    %v3413 = vunpack.c.l.b16 %v3275
    %v3414 = vunpack.c.h.b16 %v3275
    %v3415 = vunpack.c.l.b16 %v3276
    %v3416 = vunpack.c.h.b16 %v3276
    %v3417 = vunpack.c.l.b16 %v3277
    %v3418 = vunpack.c.h.b16 %v3277
    %v3419 = vunpack.c.l.b16 %v3278
    %v3420 = vunpack.c.h.b16 %v3278
    %v3421 = vunpack.c.l.b16 %v3279
    %v3422 = vunpack.c.h.b16 %v3279
    %v3423 = vunpack.c.l.b16 %v3280
    %v3424 = vunpack.c.h.b16 %v3280
    %v3425 = vunpack.c.l.b16 %v3281
    %v3426 = vunpack.c.h.b16 %v3281
    %v3427 = vunpack.c.l.b16 %v3282
    %v3428 = vunpack.c.h.b16 %v3282
    %v3429 = vunpack.c.l.b16 %v3283
    %v3430 = vunpack.c.h.b16 %v3283
    %v3431 = vunpack.c.l.b16 %v3284
    %v3432 = vunpack.c.h.b16 %v3284
    %v3433 = vunpack.c.l.b16 %v3285
    %v3434 = vunpack.c.h.b16 %v3285
    %v3435 = vunpack.c.l.b16 %v3286
    %v3436 = vunpack.c.h.b16 %v3286
    %v3437 = vunpack.c.l.b16 %v3287
    %v3438 = vunpack.c.h.b16 %v3287
    %v3439 = vunpack.c.l.b16 %v3288
    %v3440 = vunpack.c.h.b16 %v3288
    %v3441 = vunpack.c.l.b16 %v3289
    %v3442 = vunpack.c.h.b16 %v3289
    %v3443 = vunpack.c.l.b16 %v3290
    %v3444 = vunpack.c.h.b16 %v3290
    %v3445 = vunpack.c.l.b16 %v3291
    %v3446 = vunpack.c.h.b16 %v3291
    %v3447 = vunpack.c.l.b16 %v3292
    %v3448 = vunpack.c.h.b16 %v3292
    %v3449 = vunpack.c.l.b16 %v3293
    %v3450 = vunpack.c.h.b16 %v3293
    %v3451 = vunpack.c.l.b16 %v3294
    %v3452 = vunpack.c.h.b16 %v3294
    %v3453 = vunpack.c.l.b16 %v3295
    %v3454 = vunpack.c.h.b16 %v3295
    %v3455 = vunpack.c.l.b16 %v3296
    %v3456 = vunpack.c.h.b16 %v3296
    %v3457 = vunpack.c.l.b16 %v3297
    %v3458 = vunpack.c.h.b16 %v3297
    %v3459 = vunpack.c.l.b16 %v3298
    %v3460 = vunpack.c.h.b16 %v3298
    %v3461 = vunpack.c.l.b16 %v3299
    %v3462 = vunpack.c.h.b16 %v3299
    %v3463 = vunpack.c.l.b16 %v3300
    %v3464 = vunpack.c.h.b16 %v3300
    %v3465 = vunpack.c.l.b16 %v3301
    %v3466 = vunpack.c.h.b16 %v3301
    %v3467 = vunpack.c.l.b16 %v3302
    %v3468 = vunpack.c.h.b16 %v3302
    %v3469 = vunpack.c.l.b16 %v3303
    %v3470 = vunpack.c.h.b16 %v3303
    %v3471 = vunpack.c.l.b16 %v3304
    %v3472 = vunpack.c.h.b16 %v3304
    %v3473 = vunpack.c.l.b16 %v3305
    %v3474 = vunpack.c.h.b16 %v3305
    %v3475 = vunpack.c.l.b16 %v3306
    %v3476 = vunpack.c.h.b16 %v3306
    %v3477 = vunpack.c.l.b16 %v3307
    %v3478 = vunpack.c.h.b16 %v3307
    %v3479 = vunpack.c.l.b16 %v3308
    %v3480 = vunpack.c.h.b16 %v3308
    %v3481 = vunpack.c.l.b16 %v3309
    %v3482 = vunpack.c.h.b16 %v3309
    %v3483 = vunpack.c.l.b16 %v3310
    %v3484 = vunpack.c.h.b16 %v3310
    %v3485 = vunpack.c.l.b16 %v3311
    %v3486 = vunpack.c.h.b16 %v3311
    %v3487 = vunpack.c.l.b16 %v3312
    %v3488 = vunpack.c.h.b16 %v3312
    %v3489 = vunpack.c.l.b16 %v3313
    %v3490 = vunpack.c.h.b16 %v3313
    %v3491 = vunpack.c.l.b16 %v3314
    %v3492 = vunpack.c.h.b16 %v3314
    %v3493 = vunpack.c.l.b16 %v3315
    %v3494 = vunpack.c.h.b16 %v3315
    %v3495 = vunpack.c.l.b16 %v3316
    %v3496 = vunpack.c.h.b16 %v3316
    %v3497 = vunpack.c.l.b16 %v3317
    %v3498 = vunpack.c.h.b16 %v3317
    %v3499 = vunpack.c.l.b16 %v3318
    %v3500 = vunpack.c.h.b16 %v3318
    %v3501 = vunpack.c.l.b16 %v3319
    %v3502 = vunpack.c.h.b16 %v3319
    %v3503 = vunpack.c.l.b16 %v3320
    %v3504 = vunpack.c.h.b16 %v3320
    %v3505 = vunpack.c.l.b16 %v3321
    %v3506 = vunpack.c.h.b16 %v3321
    %v3507 = vunpack.c.l.b16 %v3322
    %v3508 = vunpack.c.h.b16 %v3322
    %v3509 = vunpack.c.l.b16 %v3323
    %v3510 = vunpack.c.h.b16 %v3323
    %v3511 = vunpack.c.l.b16 %v3324
    %v3512 = vunpack.c.h.b16 %v3324
    %v3513 = vunpack.c.l.b16 %v3325
    %v3514 = vunpack.c.h.b16 %v3325
    %v3515 = vunpack.c.l.b16 %v3326
    %v3516 = vunpack.c.h.b16 %v3326
    %v3517 = vunpack.c.l.b16 %v3327
    %v3518 = vunpack.c.h.b16 %v3327
    %v3519 = vunpack.c.l.b16 %v3328
    %v3520 = vunpack.c.h.b16 %v3328
    %v3521 = vpack.c.b16 %v3397, %v3393
    %v3522 = vpack.c.b16 %v3398, %v3394
    %v3523 = vpack.c.b16 %v3399, %v3395
    %v3524 = vpack.c.b16 %v3400, %v3396
    %v3525 = vpack.c.b16 %v3405, %v3401
    %v3526 = vpack.c.b16 %v3406, %v3402
    %v3527 = vpack.c.b16 %v3407, %v3403
    %v3528 = vpack.c.b16 %v3408, %v3404
    %v3529 = vpack.c.b16 %v3413, %v3409
    %v3530 = vpack.c.b16 %v3414, %v3410
    %v3531 = vpack.c.b16 %v3415, %v3411
    %v3532 = vpack.c.b16 %v3416, %v3412
    %v3533 = vpack.c.b16 %v3421, %v3417
    %v3534 = vpack.c.b16 %v3422, %v3418
    %v3535 = vpack.c.b16 %v3423, %v3419
    %v3536 = vpack.c.b16 %v3424, %v3420
    %v3537 = vpack.c.b16 %v3429, %v3425
    %v3538 = vpack.c.b16 %v3430, %v3426
    %v3539 = vpack.c.b16 %v3431, %v3427
    %v3540 = vpack.c.b16 %v3432, %v3428
    %v3541 = vpack.c.b16 %v3437, %v3433
    %v3542 = vpack.c.b16 %v3438, %v3434
    %v3543 = vpack.c.b16 %v3439, %v3435
    %v3544 = vpack.c.b16 %v3440, %v3436
    %v3545 = vpack.c.b16 %v3445, %v3441
    %v3546 = vpack.c.b16 %v3446, %v3442
    %v3547 = vpack.c.b16 %v3447, %v3443
    %v3548 = vpack.c.b16 %v3448, %v3444
    %v3549 = vpack.c.b16 %v3453, %v3449
    %v3550 = vpack.c.b16 %v3454, %v3450
    %v3551 = vpack.c.b16 %v3455, %v3451
    %v3552 = vpack.c.b16 %v3456, %v3452
    %v3553 = vpack.c.b16 %v3461, %v3457
    %v3554 = vpack.c.b16 %v3462, %v3458
    %v3555 = vpack.c.b16 %v3463, %v3459
    %v3556 = vpack.c.b16 %v3464, %v3460
    %v3557 = vpack.c.b16 %v3469, %v3465
    %v3558 = vpack.c.b16 %v3470, %v3466
    %v3559 = vpack.c.b16 %v3471, %v3467
    %v3560 = vpack.c.b16 %v3472, %v3468
    %v3561 = vpack.c.b16 %v3477, %v3473
    %v3562 = vpack.c.b16 %v3478, %v3474
    %v3563 = vpack.c.b16 %v3479, %v3475
    %v3564 = vpack.c.b16 %v3480, %v3476
    %v3565 = vpack.c.b16 %v3485, %v3481
    %v3566 = vpack.c.b16 %v3486, %v3482
    %v3567 = vpack.c.b16 %v3487, %v3483
    %v3568 = vpack.c.b16 %v3488, %v3484
    %v3569 = vpack.c.b16 %v3493, %v3489
    %v3570 = vpack.c.b16 %v3494, %v3490
    %v3571 = vpack.c.b16 %v3495, %v3491
    %v3572 = vpack.c.b16 %v3496, %v3492
    %v3573 = vpack.c.b16 %v3501, %v3497
    %v3574 = vpack.c.b16 %v3502, %v3498
    %v3575 = vpack.c.b16 %v3503, %v3499
    %v3576 = vpack.c.b16 %v3504, %v3500
    %v3577 = vpack.c.b16 %v3509, %v3505
    %v3578 = vpack.c.b16 %v3510, %v3506
    %v3579 = vpack.c.b16 %v3511, %v3507
    %v3580 = vpack.c.b16 %v3512, %v3508
    %v3581 = vpack.c.b16 %v3517, %v3513
    %v3582 = vpack.c.b16 %v3518, %v3514
    %v3583 = vpack.c.b16 %v3519, %v3515
    %v3584 = vpack.c.b16 %v3520, %v3516
    %3649 = vmatprep.subr.bf16.mxu0 %v3550
    %3650 = vmatpush1.bf16.msra.mxu0 %v3549
    %3651 = vmatprep.subr.bf16.mxu0 %v3546
    %3652 = vmatpush1.bf16.msra.mxu0 %v3545
    %3653 = vmatprep.subr.bf16.mxu0 %v3542
    %3654 = vmatpush1.bf16.msra.mxu0 %v3541
    %3655 = vmatprep.subr.bf16.mxu0 %v3538
    %3656 = vmatpush1.bf16.msra.mxu0 %v3537
    %3657 = vmatprep.subr.bf16.mxu0 %v3534
    %3658 = vmatpush1.bf16.msra.mxu0 %v3533
    %3659 = vmatprep.subr.bf16.mxu0 %v3530
    %3660 = vmatpush1.bf16.msra.mxu0 %v3529
    %3661 = vmatprep.subr.bf16.mxu0 %v3526
    %3662 = vmatpush1.bf16.msra.mxu0 %v3525
    %3663 = vmatprep.subr.bf16.mxu0 %v3522
    %3664 = vmatpush1.bf16.msra.mxu0 %v3521
    %3665 = vmatprep.subr.bf16.mxu0 %v3582
    %3666 = vmatpush2.bf16.msra.mxu0 %v3581
    %3667 = vmatprep.subr.bf16.mxu0 %v3578
    %3668 = vmatpush2.bf16.msra.mxu0 %v3577
    %3669 = vmatprep.subr.bf16.mxu0 %v3574
    %3670 = vmatpush2.bf16.msra.mxu0 %v3573
    %3671 = vmatprep.subr.bf16.mxu0 %v3570
    %3672 = vmatpush2.bf16.msra.mxu0 %v3569
    %3673 = vmatprep.subr.bf16.mxu0 %v3566
    %3674 = vmatpush2.bf16.msra.mxu0 %v3565
    %3675 = vmatprep.subr.bf16.mxu0 %v3562
    %3676 = vmatpush2.bf16.msra.mxu0 %v3561
    %3677 = vmatprep.subr.bf16.mxu0 %v3558
    %3678 = vmatpush2.bf16.msra.mxu0 %v3557
    %3679 = vmatprep.subr.bf16.mxu0 %v3554
    %3680 = vmatpush2.bf16.msra.mxu0 %v3553
    %3681 = vmatprep.mubr.bf16.mxu0 %v3250
    %3682 = vmatmul.mubr.bf16.gmra.mxu0 %v3249
    %v3683 = vpop.f32.mrf.mxu0
    %v3684 = vadd.f32 0.0, %v3683
    %v3685 = vpop.f32.mrf.mxu0
    %v3686 = vadd.f32 0.0, %v3685
    %v3687 = vpop.f32.mrf.mxu0
    %v3688 = vadd.f32 0.0, %v3687
    %v3689 = vpop.f32.mrf.mxu0
    %v3690 = vadd.f32 0.0, %v3689
    %3691 = vmatprep.mubr.bf16.mxu0 %v3252
    %3692 = vmatmul.mubr.bf16.gmra.mxu0 %v3251
    %v3693 = vpop.f32.mrf.mxu0
    %v3694 = vadd.f32 0.0, %v3693
    %v3695 = vpop.f32.mrf.mxu0
    %v3696 = vadd.f32 0.0, %v3695
    %v3697 = vpop.f32.mrf.mxu0
    %v3698 = vadd.f32 0.0, %v3697
    %v3699 = vpop.f32.mrf.mxu0
    %v3700 = vadd.f32 0.0, %v3699
    %3701 = vmatprep.mubr.bf16.mxu0 %v3254
    %3702 = vmatmul.mubr.bf16.gmra.mxu0 %v3253
    %v3703 = vpop.f32.mrf.mxu0
    %v3704 = vadd.f32 0.0, %v3703
    %v3705 = vpop.f32.mrf.mxu0
    %v3706 = vadd.f32 0.0, %v3705
    %v3707 = vpop.f32.mrf.mxu0
    %v3708 = vadd.f32 0.0, %v3707
    %v3709 = vpop.f32.mrf.mxu0
    %v3710 = vadd.f32 0.0, %v3709
    %3711 = vmatprep.mubr.bf16.mxu0 %v3256
    %3712 = vmatmul.mubr.bf16.gmra.mxu0 %v3255
    %v3713 = vpop.f32.mrf.mxu0
    %v3714 = vadd.f32 0.0, %v3713
    %v3715 = vpop.f32.mrf.mxu0
    %v3716 = vadd.f32 0.0, %v3715
    %v3717 = vpop.f32.mrf.mxu0
    %v3718 = vadd.f32 0.0, %v3717
    %v3719 = vpop.f32.mrf.mxu0
    %v3720 = vadd.f32 0.0, %v3719
    %3721 = vmatprep.mubr.bf16.mxu0 %v3258
    %3722 = vmatmul.mubr.bf16.gmra.mxu0 %v3257
    %v3723 = vpop.f32.mrf.mxu0
    %v3724 = vadd.f32 0.0, %v3723
    %v3725 = vpop.f32.mrf.mxu0
    %v3726 = vadd.f32 0.0, %v3725
    %v3727 = vpop.f32.mrf.mxu0
    %v3728 = vadd.f32 0.0, %v3727
    %v3729 = vpop.f32.mrf.mxu0
    %v3730 = vadd.f32 0.0, %v3729
    %3731 = vmatprep.mubr.bf16.mxu0 %v3260
    %3732 = vmatmul.mubr.bf16.gmra.mxu0 %v3259
    %v3733 = vpop.f32.mrf.mxu0
    %v3734 = vadd.f32 0.0, %v3733
    %v3735 = vpop.f32.mrf.mxu0
    %v3736 = vadd.f32 0.0, %v3735
    %v3737 = vpop.f32.mrf.mxu0
    %v3738 = vadd.f32 0.0, %v3737
    %v3739 = vpop.f32.mrf.mxu0
    %v3740 = vadd.f32 0.0, %v3739
    %3741 = vmatprep.mubr.bf16.mxu0 %v3262
    %3742 = vmatmul.mubr.bf16.gmra.mxu0 %v3261
    %v3743 = vpop.f32.mrf.mxu0
    %v3744 = vadd.f32 0.0, %v3743
    %v3745 = vpop.f32.mrf.mxu0
    %v3746 = vadd.f32 0.0, %v3745
    %v3747 = vpop.f32.mrf.mxu0
    %v3748 = vadd.f32 0.0, %v3747
    %v3749 = vpop.f32.mrf.mxu0
    %v3750 = vadd.f32 0.0, %v3749
    %3751 = vmatprep.mubr.bf16.mxu0 %v3264
    %3752 = vmatmul.mubr.bf16.gmra.mxu0 %v3263
    %v3753 = vpop.f32.mrf.mxu0
    %v3754 = vadd.f32 0.0, %v3753
    %v3755 = vpop.f32.mrf.mxu0
    %v3756 = vadd.f32 0.0, %v3755
    %v3757 = vpop.f32.mrf.mxu0
    %v3758 = vadd.f32 0.0, %v3757
    %v3759 = vpop.f32.mrf.mxu0
    %v3760 = vadd.f32 0.0, %v3759
    %3761 = vdwg.mxu0
    %3762 = vmatprep.subr.bf16.mxu0 %v3552
    %3763 = vmatpush1.bf16.msra.mxu0 %v3551
    %3764 = vmatprep.subr.bf16.mxu0 %v3548
    %3765 = vmatpush1.bf16.msra.mxu0 %v3547
    %3766 = vmatprep.subr.bf16.mxu0 %v3544
    %3767 = vmatpush1.bf16.msra.mxu0 %v3543
    %3768 = vmatprep.subr.bf16.mxu0 %v3540
    %3769 = vmatpush1.bf16.msra.mxu0 %v3539
    %3770 = vmatprep.subr.bf16.mxu0 %v3536
    %3771 = vmatpush1.bf16.msra.mxu0 %v3535
    %3772 = vmatprep.subr.bf16.mxu0 %v3532
    %3773 = vmatpush1.bf16.msra.mxu0 %v3531
    %3774 = vmatprep.subr.bf16.mxu0 %v3528
    %3775 = vmatpush1.bf16.msra.mxu0 %v3527
    %3776 = vmatprep.subr.bf16.mxu0 %v3524
    %3777 = vmatpush1.bf16.msra.mxu0 %v3523
    %3778 = vmatprep.subr.bf16.mxu0 %v3584
    %3779 = vmatpush2.bf16.msra.mxu0 %v3583
    %3780 = vmatprep.subr.bf16.mxu0 %v3580
    %3781 = vmatpush2.bf16.msra.mxu0 %v3579
    %3782 = vmatprep.subr.bf16.mxu0 %v3576
    %3783 = vmatpush2.bf16.msra.mxu0 %v3575
    %3784 = vmatprep.subr.bf16.mxu0 %v3572
    %3785 = vmatpush2.bf16.msra.mxu0 %v3571
    %3786 = vmatprep.subr.bf16.mxu0 %v3568
    %3787 = vmatpush2.bf16.msra.mxu0 %v3567
    %3788 = vmatprep.subr.bf16.mxu0 %v3564
    %3789 = vmatpush2.bf16.msra.mxu0 %v3563
    %3790 = vmatprep.subr.bf16.mxu0 %v3560
    %3791 = vmatpush2.bf16.msra.mxu0 %v3559
    %3792 = vmatprep.subr.bf16.mxu0 %v3556
    %3793 = vmatpush2.bf16.msra.mxu0 %v3555
    %3794 = vmatprep.mubr.bf16.mxu0 %v3250
    %3795 = vmatmul.mubr.bf16.gmra.mxu0 %v3249
    %v3796 = vpop.f32.mrf.mxu0
    %v3797 = vadd.f32 0.0, %v3796
    %v3798 = vpop.f32.mrf.mxu0
    %v3799 = vadd.f32 0.0, %v3798
    %v3800 = vpop.f32.mrf.mxu0
    %v3801 = vadd.f32 0.0, %v3800
    %v3802 = vpop.f32.mrf.mxu0
    %v3803 = vadd.f32 0.0, %v3802
    %3804 = vmatprep.mubr.bf16.mxu0 %v3252
    %3805 = vmatmul.mubr.bf16.gmra.mxu0 %v3251
    %v3806 = vpop.f32.mrf.mxu0
    %v3807 = vadd.f32 0.0, %v3806
    %v3808 = vpop.f32.mrf.mxu0
    %v3809 = vadd.f32 0.0, %v3808
    %v3810 = vpop.f32.mrf.mxu0
    %v3811 = vadd.f32 0.0, %v3810
    %v3812 = vpop.f32.mrf.mxu0
    %v3813 = vadd.f32 0.0, %v3812
    %3814 = vmatprep.mubr.bf16.mxu0 %v3254
    %3815 = vmatmul.mubr.bf16.gmra.mxu0 %v3253
    %v3816 = vpop.f32.mrf.mxu0
    %v3817 = vadd.f32 0.0, %v3816
    %v3818 = vpop.f32.mrf.mxu0
    %v3819 = vadd.f32 0.0, %v3818
    %v3820 = vpop.f32.mrf.mxu0
    %v3821 = vadd.f32 0.0, %v3820
    %v3822 = vpop.f32.mrf.mxu0
    %v3823 = vadd.f32 0.0, %v3822
    %3824 = vmatprep.mubr.bf16.mxu0 %v3256
    %3825 = vmatmul.mubr.bf16.gmra.mxu0 %v3255
    %v3826 = vpop.f32.mrf.mxu0
    %v3827 = vadd.f32 0.0, %v3826
    %v3828 = vpop.f32.mrf.mxu0
    %v3829 = vadd.f32 0.0, %v3828
    %v3830 = vpop.f32.mrf.mxu0
    %v3831 = vadd.f32 0.0, %v3830
    %v3832 = vpop.f32.mrf.mxu0
    %v3833 = vadd.f32 0.0, %v3832
    %3834 = vmatprep.mubr.bf16.mxu0 %v3258
    %3835 = vmatmul.mubr.bf16.gmra.mxu0 %v3257
    %v3836 = vpop.f32.mrf.mxu0
    %v3837 = vadd.f32 0.0, %v3836
    %v3838 = vpop.f32.mrf.mxu0
    %v3839 = vadd.f32 0.0, %v3838
    %v3840 = vpop.f32.mrf.mxu0
    %v3841 = vadd.f32 0.0, %v3840
    %v3842 = vpop.f32.mrf.mxu0
    %v3843 = vadd.f32 0.0, %v3842
    %3844 = vmatprep.mubr.bf16.mxu0 %v3260
    %3845 = vmatmul.mubr.bf16.gmra.mxu0 %v3259
    %v3846 = vpop.f32.mrf.mxu0
    %v3847 = vadd.f32 0.0, %v3846
    %v3848 = vpop.f32.mrf.mxu0
    %v3849 = vadd.f32 0.0, %v3848
    %v3850 = vpop.f32.mrf.mxu0
    %v3851 = vadd.f32 0.0, %v3850
    %v3852 = vpop.f32.mrf.mxu0
    %v3853 = vadd.f32 0.0, %v3852
    %3854 = vmatprep.mubr.bf16.mxu0 %v3262
    %3855 = vmatmul.mubr.bf16.gmra.mxu0 %v3261
    %v3856 = vpop.f32.mrf.mxu0
    %v3857 = vadd.f32 0.0, %v3856
    %v3858 = vpop.f32.mrf.mxu0
    %v3859 = vadd.f32 0.0, %v3858
    %v3860 = vpop.f32.mrf.mxu0
    %v3861 = vadd.f32 0.0, %v3860
    %v3862 = vpop.f32.mrf.mxu0
    %v3863 = vadd.f32 0.0, %v3862
    %3864 = vmatprep.mubr.bf16.mxu0 %v3264
    %3865 = vmatmul.mubr.bf16.gmra.mxu0 %v3263
    %v3866 = vpop.f32.mrf.mxu0
    %v3867 = vadd.f32 0.0, %v3866
    %v3868 = vpop.f32.mrf.mxu0
    %v3869 = vadd.f32 0.0, %v3868
    %v3870 = vpop.f32.mrf.mxu0
    %v3871 = vadd.f32 0.0, %v3870
    %v3872 = vpop.f32.mrf.mxu0
    %v3873 = vadd.f32 0.0, %v3872
    %3874 = vdwg.mxu0
    %v3875 = vadd.f32 %v3684, %v3688
    %v3876 = vadd.f32 %v3875, %v3694
    %v3877 = vadd.f32 %v3876, %v3698
    %v3878 = vadd.f32 %v3877, %v3704
    %v3879 = vadd.f32 %v3878, %v3708
    %v3880 = vadd.f32 %v3879, %v3714
    %v3881 = vadd.f32 %v3880, %v3718
    %v3882 = vadd.f32 %v3881, %v3724
    %v3883 = vadd.f32 %v3882, %v3728
    %v3884 = vadd.f32 %v3883, %v3734
    %v3885 = vadd.f32 %v3884, %v3738
    %v3886 = vadd.f32 %v3885, %v3744
    %v3887 = vadd.f32 %v3886, %v3748
    %v3888 = vadd.f32 %v3887, %v3754
    %v3889 = vadd.f32 %v3888, %v3758
    %v3890 = vadd.f32 %v3889, %v3686
    %v3891 = vadd.f32 %v3890, %v3690
    %v3892 = vadd.f32 %v3891, %v3696
    %v3893 = vadd.f32 %v3892, %v3700
    %v3894 = vadd.f32 %v3893, %v3706
    %v3895 = vadd.f32 %v3894, %v3710
    %v3896 = vadd.f32 %v3895, %v3716
    %v3897 = vadd.f32 %v3896, %v3720
    %v3898 = vadd.f32 %v3897, %v3726
    %v3899 = vadd.f32 %v3898, %v3730
    %v3900 = vadd.f32 %v3899, %v3736
    %v3901 = vadd.f32 %v3900, %v3740
    %v3902 = vadd.f32 %v3901, %v3746
    %v3903 = vadd.f32 %v3902, %v3750
    %v3904 = vadd.f32 %v3903, %v3756
    %v3905 = vadd.f32 %v3904, %v3760
    %v3906 = vadd.f32 %v3905, %v3797
    %v3907 = vadd.f32 %v3906, %v3801
    %v3908 = vadd.f32 %v3907, %v3807
    %v3909 = vadd.f32 %v3908, %v3811
    %v3910 = vadd.f32 %v3909, %v3817
    %v3911 = vadd.f32 %v3910, %v3821
    %v3912 = vadd.f32 %v3911, %v3827
    %v3913 = vadd.f32 %v3912, %v3831
    %v3914 = vadd.f32 %v3913, %v3837
    %v3915 = vadd.f32 %v3914, %v3841
    %v3916 = vadd.f32 %v3915, %v3847
    %v3917 = vadd.f32 %v3916, %v3851
    %v3918 = vadd.f32 %v3917, %v3857
    %v3919 = vadd.f32 %v3918, %v3861
    %v3920 = vadd.f32 %v3919, %v3867
    %v3921 = vadd.f32 %v3920, %v3871
    %v3922 = vadd.f32 %v3921, %v3799
    %v3923 = vadd.f32 %v3922, %v3803
    %v3924 = vadd.f32 %v3923, %v3809
    %v3925 = vadd.f32 %v3924, %v3813
    %v3926 = vadd.f32 %v3925, %v3819
    %v3927 = vadd.f32 %v3926, %v3823
    %v3928 = vadd.f32 %v3927, %v3829
    %v3929 = vadd.f32 %v3928, %v3833
    %v3930 = vadd.f32 %v3929, %v3839
    %v3931 = vadd.f32 %v3930, %v3843
    %v3932 = vadd.f32 %v3931, %v3849
    %v3933 = vadd.f32 %v3932, %v3853
    %v3934 = vadd.f32 %v3933, %v3859
    %v3935 = vadd.f32 %v3934, %v3863
    %v3936 = vadd.f32 %v3935, %v3869
    %v3937 = vadd.f32 %v3936, %v3873
    %v3938 = vrot.slane %v3937, 4
    %v3939 = vadd.f32 %v3937, %v3938
    %v3940 = vrot.slane %v3939, 2
    %v3941 = vadd.f32 %v3939, %v3940
    %v3942 = vrot.slane %v3941, 1
    %v3943 = vadd.f32 %v3941, %v3942
    %v3944 = vmul.f32 %v3684, %v3684
    %v3945 = vmul.f32 %v3688, %v3688
    %v3946 = vmul.f32 %v3694, %v3694
    %v3947 = vmul.f32 %v3698, %v3698
    %v3948 = vmul.f32 %v3704, %v3704
    %v3949 = vmul.f32 %v3708, %v3708
    %v3950 = vmul.f32 %v3714, %v3714
    %v3951 = vmul.f32 %v3718, %v3718
    %v3952 = vmul.f32 %v3724, %v3724
    %v3953 = vmul.f32 %v3728, %v3728
    %v3954 = vmul.f32 %v3734, %v3734
    %v3955 = vmul.f32 %v3738, %v3738
    %v3956 = vmul.f32 %v3744, %v3744
    %v3957 = vmul.f32 %v3748, %v3748
    %v3958 = vmul.f32 %v3754, %v3754
    %v3959 = vmul.f32 %v3758, %v3758
    %v3960 = vmul.f32 %v3686, %v3686
    %v3961 = vmul.f32 %v3690, %v3690
    %v3962 = vmul.f32 %v3696, %v3696
    %v3963 = vmul.f32 %v3700, %v3700
    %v3964 = vmul.f32 %v3706, %v3706
    %v3965 = vmul.f32 %v3710, %v3710
    %v3966 = vmul.f32 %v3716, %v3716
    %v3967 = vmul.f32 %v3720, %v3720
    %v3968 = vmul.f32 %v3726, %v3726
    %v3969 = vmul.f32 %v3730, %v3730
    %v3970 = vmul.f32 %v3736, %v3736
    %v3971 = vmul.f32 %v3740, %v3740
    %v3972 = vmul.f32 %v3746, %v3746
    %v3973 = vmul.f32 %v3750, %v3750
    %v3974 = vmul.f32 %v3756, %v3756
    %v3975 = vmul.f32 %v3760, %v3760
    %v3976 = vmul.f32 %v3797, %v3797
    %v3977 = vmul.f32 %v3801, %v3801
    %v3978 = vmul.f32 %v3807, %v3807
    %v3979 = vmul.f32 %v3811, %v3811
    %v3980 = vmul.f32 %v3817, %v3817
    %v3981 = vmul.f32 %v3821, %v3821
    %v3982 = vmul.f32 %v3827, %v3827
    %v3983 = vmul.f32 %v3831, %v3831
    %v3984 = vmul.f32 %v3837, %v3837
    %v3985 = vmul.f32 %v3841, %v3841
    %v3986 = vmul.f32 %v3847, %v3847
    %v3987 = vmul.f32 %v3851, %v3851
    %v3988 = vmul.f32 %v3857, %v3857
    %v3989 = vmul.f32 %v3861, %v3861
    %v3990 = vmul.f32 %v3867, %v3867
    %v3991 = vmul.f32 %v3871, %v3871
    %v3992 = vmul.f32 %v3799, %v3799
    %v3993 = vmul.f32 %v3803, %v3803
    %v3994 = vmul.f32 %v3809, %v3809
    %v3995 = vmul.f32 %v3813, %v3813
    %v3996 = vmul.f32 %v3819, %v3819
    %v3997 = vmul.f32 %v3823, %v3823
    %v3998 = vmul.f32 %v3829, %v3829
    %v3999 = vmul.f32 %v3833, %v3833
    %v4000 = vmul.f32 %v3839, %v3839
    %v4001 = vmul.f32 %v3843, %v3843
    %v4002 = vmul.f32 %v3849, %v3849
    %v4003 = vmul.f32 %v3853, %v3853
    %v4004 = vmul.f32 %v3859, %v3859
    %v4005 = vmul.f32 %v3863, %v3863
    %v4006 = vmul.f32 %v3869, %v3869
    %v4007 = vmul.f32 %v3873, %v3873
    %v4008 = vadd.f32 %v3944, %v3945
    %v4009 = vadd.f32 %v4008, %v3946
    %v4010 = vadd.f32 %v4009, %v3947
    %v4011 = vadd.f32 %v4010, %v3948
    %v4012 = vadd.f32 %v4011, %v3949
    %v4013 = vadd.f32 %v4012, %v3950
    %v4014 = vadd.f32 %v4013, %v3951
    %v4015 = vadd.f32 %v4014, %v3952
    %v4016 = vadd.f32 %v4015, %v3953
    %v4017 = vadd.f32 %v4016, %v3954
    %v4018 = vadd.f32 %v4017, %v3955
    %v4019 = vadd.f32 %v4018, %v3956
    %v4020 = vadd.f32 %v4019, %v3957
    %v4021 = vadd.f32 %v4020, %v3958
    %v4022 = vadd.f32 %v4021, %v3959
    %v4023 = vadd.f32 %v4022, %v3960
    %v4024 = vadd.f32 %v4023, %v3961
    %v4025 = vadd.f32 %v4024, %v3962
    %v4026 = vadd.f32 %v4025, %v3963
    %v4027 = vadd.f32 %v4026, %v3964
    %v4028 = vadd.f32 %v4027, %v3965
    %v4029 = vadd.f32 %v4028, %v3966
    %v4030 = vadd.f32 %v4029, %v3967
    %v4031 = vadd.f32 %v4030, %v3968
    %v4032 = vadd.f32 %v4031, %v3969
    %v4033 = vadd.f32 %v4032, %v3970
    %v4034 = vadd.f32 %v4033, %v3971
    %v4035 = vadd.f32 %v4034, %v3972
    %v4036 = vadd.f32 %v4035, %v3973
    %v4037 = vadd.f32 %v4036, %v3974
    %v4038 = vadd.f32 %v4037, %v3975
    %v4039 = vadd.f32 %v4038, %v3976
    %v4040 = vadd.f32 %v4039, %v3977
    %v4041 = vadd.f32 %v4040, %v3978
    %v4042 = vadd.f32 %v4041, %v3979
    %v4043 = vadd.f32 %v4042, %v3980
    %v4044 = vadd.f32 %v4043, %v3981
    %v4045 = vadd.f32 %v4044, %v3982
    %v4046 = vadd.f32 %v4045, %v3983
    %v4047 = vadd.f32 %v4046, %v3984
    %v4048 = vadd.f32 %v4047, %v3985
    %v4049 = vadd.f32 %v4048, %v3986
    %v4050 = vadd.f32 %v4049, %v3987
    %v4051 = vadd.f32 %v4050, %v3988
    %v4052 = vadd.f32 %v4051, %v3989
    %v4053 = vadd.f32 %v4052, %v3990
    %v4054 = vadd.f32 %v4053, %v3991
    %v4055 = vadd.f32 %v4054, %v3992
    %v4056 = vadd.f32 %v4055, %v3993
    %v4057 = vadd.f32 %v4056, %v3994
    %v4058 = vadd.f32 %v4057, %v3995
    %v4059 = vadd.f32 %v4058, %v3996
    %v4060 = vadd.f32 %v4059, %v3997
    %v4061 = vadd.f32 %v4060, %v3998
    %v4062 = vadd.f32 %v4061, %v3999
    %v4063 = vadd.f32 %v4062, %v4000
    %v4064 = vadd.f32 %v4063, %v4001
    %v4065 = vadd.f32 %v4064, %v4002
    %v4066 = vadd.f32 %v4065, %v4003
    %v4067 = vadd.f32 %v4066, %v4004
    %v4068 = vadd.f32 %v4067, %v4005
    %v4069 = vadd.f32 %v4068, %v4006
    %v4070 = vadd.f32 %v4069, %v4007
    %v4071 = vrot.slane %v4070, 4
    %v4072 = vadd.f32 %v4070, %v4071
    %v4073 = vrot.slane %v4072, 2
    %v4074 = vadd.f32 %v4072, %v4073
    %v4075 = vrot.slane %v4074, 1
    %v4076 = vadd.f32 %v4074, %v4075
    %v4077 = vld [vmem:[#allocation13] sm:$0x1]
    %v4078 = vld [vmem:[#allocation14] sm:$0x1]
    %v4079 = vmul.f32 %v3943, 0.001953125
    %v4080 = vmul.f32 %v4076, 0.001953125
    %v4081 = vmul.f32 %v4079, %v4079
    %v4082 = vsub.f32 %v4080, %v4081
    %v4083 = vmax.f32 %v4082, 0.0
    %v4084 = vadd.f32 %v4083, 1e-05
    %v4085 = vrsqrt.pop %v4084
    %v4086 = vmul.f32 %v4077, %v4085
    %v4087 = vmul.f32 %v4079, %v4086
    %v4088 = vsub.f32 %v4078, %v4087
    %v4090 = vlaneseq
    %v4091 = vshrl.u32 %v4090, 7
    %v4092 = vsub.s32 0, %v4091
    %v4093 = vrot.slane %v4086, %v4092
    %v4095 = vmul.f32 %v3684, %v4093
    %v4096 = vmul.f32 %v3688, %v4093
    %v4097 = vmul.f32 %v3694, %v4093
    %v4098 = vmul.f32 %v3698, %v4093
    %v4099 = vmul.f32 %v3704, %v4093
    %v4100 = vmul.f32 %v3708, %v4093
    %v4101 = vmul.f32 %v3714, %v4093
    %v4102 = vmul.f32 %v3718, %v4093
    %v4103 = vmul.f32 %v3724, %v4093
    %v4104 = vmul.f32 %v3728, %v4093
    %v4105 = vmul.f32 %v3734, %v4093
    %v4106 = vmul.f32 %v3738, %v4093
    %v4107 = vmul.f32 %v3744, %v4093
    %v4108 = vmul.f32 %v3748, %v4093
    %v4109 = vmul.f32 %v3754, %v4093
    %v4110 = vmul.f32 %v3758, %v4093
    %v4111 = vmul.f32 %v3686, %v4093
    %v4112 = vmul.f32 %v3690, %v4093
    %v4113 = vmul.f32 %v3696, %v4093
    %v4114 = vmul.f32 %v3700, %v4093
    %v4115 = vmul.f32 %v3706, %v4093
    %v4116 = vmul.f32 %v3710, %v4093
    %v4117 = vmul.f32 %v3716, %v4093
    %v4118 = vmul.f32 %v3720, %v4093
    %v4119 = vmul.f32 %v3726, %v4093
    %v4120 = vmul.f32 %v3730, %v4093
    %v4121 = vmul.f32 %v3736, %v4093
    %v4122 = vmul.f32 %v3740, %v4093
    %v4123 = vmul.f32 %v3746, %v4093
    %v4124 = vmul.f32 %v3750, %v4093
    %v4125 = vmul.f32 %v3756, %v4093
    %v4126 = vmul.f32 %v3760, %v4093
    %v4127 = vmul.f32 %v3797, %v4093
    %v4128 = vmul.f32 %v3801, %v4093
    %v4129 = vmul.f32 %v3807, %v4093
    %v4130 = vmul.f32 %v3811, %v4093
    %v4131 = vmul.f32 %v3817, %v4093
    %v4132 = vmul.f32 %v3821, %v4093
    %v4133 = vmul.f32 %v3827, %v4093
    %v4134 = vmul.f32 %v3831, %v4093
    %v4135 = vmul.f32 %v3837, %v4093
    %v4136 = vmul.f32 %v3841, %v4093
    %v4137 = vmul.f32 %v3847, %v4093
    %v4138 = vmul.f32 %v3851, %v4093
    %v4139 = vmul.f32 %v3857, %v4093
    %v4140 = vmul.f32 %v3861, %v4093
    %v4141 = vmul.f32 %v3867, %v4093
    %v4142 = vmul.f32 %v3871, %v4093
    %v4143 = vmul.f32 %v3799, %v4093
    %v4144 = vmul.f32 %v3803, %v4093
    %v4145 = vmul.f32 %v3809, %v4093
    %v4146 = vmul.f32 %v3813, %v4093
    %v4147 = vmul.f32 %v3819, %v4093
    %v4148 = vmul.f32 %v3823, %v4093
    %v4149 = vmul.f32 %v3829, %v4093
    %v4150 = vmul.f32 %v3833, %v4093
    %v4151 = vmul.f32 %v3839, %v4093
    %v4152 = vmul.f32 %v3843, %v4093
    %v4153 = vmul.f32 %v3849, %v4093
    %v4154 = vmul.f32 %v3853, %v4093
    %v4155 = vmul.f32 %v3859, %v4093
    %v4156 = vmul.f32 %v3863, %v4093
    %v4157 = vmul.f32 %v3869, %v4093
    %v4158 = vmul.f32 %v3873, %v4093
    %v4160 = vlaneseq
    %v4161 = vshrl.u32 %v4160, 7
    %v4162 = vsub.s32 0, %v4161
    %v4163 = vrot.slane %v4088, %v4162
    %v4165 = vadd.f32 %v4095, %v4163
    %v4166 = vadd.f32 %v4096, %v4163
    %v4167 = vadd.f32 %v4097, %v4163
    %v4168 = vadd.f32 %v4098, %v4163
    %v4169 = vadd.f32 %v4099, %v4163
    %v4170 = vadd.f32 %v4100, %v4163
    %v4171 = vadd.f32 %v4101, %v4163
    %v4172 = vadd.f32 %v4102, %v4163
    %v4173 = vadd.f32 %v4103, %v4163
    %v4174 = vadd.f32 %v4104, %v4163
    %v4175 = vadd.f32 %v4105, %v4163
    %v4176 = vadd.f32 %v4106, %v4163
    %v4177 = vadd.f32 %v4107, %v4163
    %v4178 = vadd.f32 %v4108, %v4163
    %v4179 = vadd.f32 %v4109, %v4163
    %v4180 = vadd.f32 %v4110, %v4163
    %v4181 = vadd.f32 %v4111, %v4163
    %v4182 = vadd.f32 %v4112, %v4163
    %v4183 = vadd.f32 %v4113, %v4163
    %v4184 = vadd.f32 %v4114, %v4163
    %v4185 = vadd.f32 %v4115, %v4163
    %v4186 = vadd.f32 %v4116, %v4163
    %v4187 = vadd.f32 %v4117, %v4163
    %v4188 = vadd.f32 %v4118, %v4163
    %v4189 = vadd.f32 %v4119, %v4163
    %v4190 = vadd.f32 %v4120, %v4163
    %v4191 = vadd.f32 %v4121, %v4163
    %v4192 = vadd.f32 %v4122, %v4163
    %v4193 = vadd.f32 %v4123, %v4163
    %v4194 = vadd.f32 %v4124, %v4163
    %v4195 = vadd.f32 %v4125, %v4163
    %v4196 = vadd.f32 %v4126, %v4163
    %v4197 = vadd.f32 %v4127, %v4163
    %v4198 = vadd.f32 %v4128, %v4163
    %v4199 = vadd.f32 %v4129, %v4163
    %v4200 = vadd.f32 %v4130, %v4163
    %v4201 = vadd.f32 %v4131, %v4163
    %v4202 = vadd.f32 %v4132, %v4163
    %v4203 = vadd.f32 %v4133, %v4163
    %v4204 = vadd.f32 %v4134, %v4163
    %v4205 = vadd.f32 %v4135, %v4163
    %v4206 = vadd.f32 %v4136, %v4163
    %v4207 = vadd.f32 %v4137, %v4163
    %v4208 = vadd.f32 %v4138, %v4163
    %v4209 = vadd.f32 %v4139, %v4163
    %v4210 = vadd.f32 %v4140, %v4163
    %v4211 = vadd.f32 %v4141, %v4163
    %v4212 = vadd.f32 %v4142, %v4163
    %v4213 = vadd.f32 %v4143, %v4163
    %v4214 = vadd.f32 %v4144, %v4163
    %v4215 = vadd.f32 %v4145, %v4163
    %v4216 = vadd.f32 %v4146, %v4163
    %v4217 = vadd.f32 %v4147, %v4163
    %v4218 = vadd.f32 %v4148, %v4163
    %v4219 = vadd.f32 %v4149, %v4163
    %v4220 = vadd.f32 %v4150, %v4163
    %v4221 = vadd.f32 %v4151, %v4163
    %v4222 = vadd.f32 %v4152, %v4163
    %v4223 = vadd.f32 %v4153, %v4163
    %v4224 = vadd.f32 %v4154, %v4163
    %v4225 = vadd.f32 %v4155, %v4163
    %v4226 = vadd.f32 %v4156, %v4163
    %v4227 = vadd.f32 %v4157, %v4163
    %v4228 = vadd.f32 %v4158, %v4163
    %v4229 = vmax.f32 %v4165, 0.0
    %v4230 = vmax.f32 %v4166, 0.0
    %v4231 = vmax.f32 %v4167, 0.0
    %v4232 = vmax.f32 %v4168, 0.0
    %v4233 = vmax.f32 %v4169, 0.0
    %v4234 = vmax.f32 %v4170, 0.0
    %v4235 = vmax.f32 %v4171, 0.0
    %v4236 = vmax.f32 %v4172, 0.0
    %v4237 = vmax.f32 %v4173, 0.0
    %v4238 = vmax.f32 %v4174, 0.0
    %v4239 = vmax.f32 %v4175, 0.0
    %v4240 = vmax.f32 %v4176, 0.0
    %v4241 = vmax.f32 %v4177, 0.0
    %v4242 = vmax.f32 %v4178, 0.0
    %v4243 = vmax.f32 %v4179, 0.0
    %v4244 = vmax.f32 %v4180, 0.0
    %v4245 = vmax.f32 %v4181, 0.0
    %v4246 = vmax.f32 %v4182, 0.0
    %v4247 = vmax.f32 %v4183, 0.0
    %v4248 = vmax.f32 %v4184, 0.0
    %v4249 = vmax.f32 %v4185, 0.0
    %v4250 = vmax.f32 %v4186, 0.0
    %v4251 = vmax.f32 %v4187, 0.0
    %v4252 = vmax.f32 %v4188, 0.0
    %v4253 = vmax.f32 %v4189, 0.0
    %v4254 = vmax.f32 %v4190, 0.0
    %v4255 = vmax.f32 %v4191, 0.0
    %v4256 = vmax.f32 %v4192, 0.0
    %v4257 = vmax.f32 %v4193, 0.0
    %v4258 = vmax.f32 %v4194, 0.0
    %v4259 = vmax.f32 %v4195, 0.0
    %v4260 = vmax.f32 %v4196, 0.0
    %v4261 = vmax.f32 %v4197, 0.0
    %v4262 = vmax.f32 %v4198, 0.0
    %v4263 = vmax.f32 %v4199, 0.0
    %v4264 = vmax.f32 %v4200, 0.0
    %v4265 = vmax.f32 %v4201, 0.0
    %v4266 = vmax.f32 %v4202, 0.0
    %v4267 = vmax.f32 %v4203, 0.0
    %v4268 = vmax.f32 %v4204, 0.0
    %v4269 = vmax.f32 %v4205, 0.0
    %v4270 = vmax.f32 %v4206, 0.0
    %v4271 = vmax.f32 %v4207, 0.0
    %v4272 = vmax.f32 %v4208, 0.0
    %v4273 = vmax.f32 %v4209, 0.0
    %v4274 = vmax.f32 %v4210, 0.0
    %v4275 = vmax.f32 %v4211, 0.0
    %v4276 = vmax.f32 %v4212, 0.0
    %v4277 = vmax.f32 %v4213, 0.0
    %v4278 = vmax.f32 %v4214, 0.0
    %v4279 = vmax.f32 %v4215, 0.0
    %v4280 = vmax.f32 %v4216, 0.0
    %v4281 = vmax.f32 %v4217, 0.0
    %v4282 = vmax.f32 %v4218, 0.0
    %v4283 = vmax.f32 %v4219, 0.0
    %v4284 = vmax.f32 %v4220, 0.0
    %v4285 = vmax.f32 %v4221, 0.0
    %v4286 = vmax.f32 %v4222, 0.0
    %v4287 = vmax.f32 %v4223, 0.0
    %v4288 = vmax.f32 %v4224, 0.0
    %v4289 = vmax.f32 %v4225, 0.0
    %v4290 = vmax.f32 %v4226, 0.0
    %v4291 = vmax.f32 %v4227, 0.0
    %v4292 = vmax.f32 %v4228, 0.0
    %v4293 = vpack.c.bf16 %v4230, %v4229
    %v4294 = vpack.c.bf16 %v4232, %v4231
    %v4295 = vpack.c.bf16 %v4234, %v4233
    %v4296 = vpack.c.bf16 %v4236, %v4235
    %v4297 = vpack.c.bf16 %v4238, %v4237
    %v4298 = vpack.c.bf16 %v4240, %v4239
    %v4299 = vpack.c.bf16 %v4242, %v4241
    %v4300 = vpack.c.bf16 %v4244, %v4243
    %v4301 = vpack.c.bf16 %v4246, %v4245
    %v4302 = vpack.c.bf16 %v4248, %v4247
    %v4303 = vpack.c.bf16 %v4250, %v4249
    %v4304 = vpack.c.bf16 %v4252, %v4251
    %v4305 = vpack.c.bf16 %v4254, %v4253
    %v4306 = vpack.c.bf16 %v4256, %v4255
    %v4307 = vpack.c.bf16 %v4258, %v4257
    %v4308 = vpack.c.bf16 %v4260, %v4259
    %v4309 = vpack.c.bf16 %v4262, %v4261
    %v4310 = vpack.c.bf16 %v4264, %v4263
    %v4311 = vpack.c.bf16 %v4266, %v4265
    %v4312 = vpack.c.bf16 %v4268, %v4267
    %v4313 = vpack.c.bf16 %v4270, %v4269
    %v4314 = vpack.c.bf16 %v4272, %v4271
    %v4315 = vpack.c.bf16 %v4274, %v4273
    %v4316 = vpack.c.bf16 %v4276, %v4275
    %v4317 = vpack.c.bf16 %v4278, %v4277
    %v4318 = vpack.c.bf16 %v4280, %v4279
    %v4319 = vpack.c.bf16 %v4282, %v4281
    %v4320 = vpack.c.bf16 %v4284, %v4283
    %v4321 = vpack.c.bf16 %v4286, %v4285
    %v4322 = vpack.c.bf16 %v4288, %v4287
    %v4323 = vpack.c.bf16 %v4290, %v4289
    %v4324 = vpack.c.bf16 %v4292, %v4291
    %s4325 = smul.u32 4, 16
    %s4326 = smul.u32 %s4325, 2
    %s4327 = sshll.u32 %s4326, 4
    %4328 = dma.done %s153, %s4327
    %v4329 = vld [vmem:[#allocation3] sm:$0xff]
    %v4330 = vld [vmem:[#allocation3 + $0x8] sm:$0xff]
    %v4331 = vld [vmem:[#allocation3 + $0x10] sm:$0xff]
    %v4332 = vld [vmem:[#allocation3 + $0x18] sm:$0xff]
    %v4333 = vld [vmem:[#allocation3 + $0x20] sm:$0xff]
    %v4334 = vld [vmem:[#allocation3 + $0x28] sm:$0xff]
    %v4335 = vld [vmem:[#allocation3 + $0x30] sm:$0xff]
    %v4336 = vld [vmem:[#allocation3 + $0x38] sm:$0xff]
    %v4337 = vld [vmem:[#allocation3 + $0x40] sm:$0xff]
    %v4338 = vld [vmem:[#allocation3 + $0x48] sm:$0xff]
    %v4339 = vld [vmem:[#allocation3 + $0x50] sm:$0xff]
    %v4340 = vld [vmem:[#allocation3 + $0x58] sm:$0xff]
    %v4341 = vld [vmem:[#allocation3 + $0x60] sm:$0xff]
    %v4342 = vld [vmem:[#allocation3 + $0x68] sm:$0xff]
    %v4343 = vld [vmem:[#allocation3 + $0x70] sm:$0xff]
    %v4344 = vld [vmem:[#allocation3 + $0x78] sm:$0xff]
    %v4361 = vunpack.c.l.b16 %v4329
    %v4362 = vunpack.c.h.b16 %v4329
    %v4363 = vunpack.c.l.b16 %v4330
    %v4364 = vunpack.c.h.b16 %v4330
    %v4365 = vunpack.c.l.b16 %v4331
    %v4366 = vunpack.c.h.b16 %v4331
    %v4367 = vunpack.c.l.b16 %v4332
    %v4368 = vunpack.c.h.b16 %v4332
    %v4369 = vunpack.c.l.b16 %v4333
    %v4370 = vunpack.c.h.b16 %v4333
    %v4371 = vunpack.c.l.b16 %v4334
    %v4372 = vunpack.c.h.b16 %v4334
    %v4373 = vunpack.c.l.b16 %v4335
    %v4374 = vunpack.c.h.b16 %v4335
    %v4375 = vunpack.c.l.b16 %v4336
    %v4376 = vunpack.c.h.b16 %v4336
    %v4377 = vunpack.c.l.b16 %v4337
    %v4378 = vunpack.c.h.b16 %v4337
    %v4379 = vunpack.c.l.b16 %v4338
    %v4380 = vunpack.c.h.b16 %v4338
    %v4381 = vunpack.c.l.b16 %v4339
    %v4382 = vunpack.c.h.b16 %v4339
    %v4383 = vunpack.c.l.b16 %v4340
    %v4384 = vunpack.c.h.b16 %v4340
    %v4385 = vunpack.c.l.b16 %v4341
    %v4386 = vunpack.c.h.b16 %v4341
    %v4387 = vunpack.c.l.b16 %v4342
    %v4388 = vunpack.c.h.b16 %v4342
    %v4389 = vunpack.c.l.b16 %v4343
    %v4390 = vunpack.c.h.b16 %v4343
    %v4391 = vunpack.c.l.b16 %v4344
    %v4392 = vunpack.c.h.b16 %v4344
    %v4393 = vpack.c.b16 %v4363, %v4361
    %v4394 = vpack.c.b16 %v4364, %v4362
    %v4395 = vpack.c.b16 %v4367, %v4365
    %v4396 = vpack.c.b16 %v4368, %v4366
    %v4397 = vpack.c.b16 %v4371, %v4369
    %v4398 = vpack.c.b16 %v4372, %v4370
    %v4399 = vpack.c.b16 %v4375, %v4373
    %v4400 = vpack.c.b16 %v4376, %v4374
    %v4401 = vpack.c.b16 %v4379, %v4377
    %v4402 = vpack.c.b16 %v4380, %v4378
    %v4403 = vpack.c.b16 %v4383, %v4381
    %v4404 = vpack.c.b16 %v4384, %v4382
    %v4405 = vpack.c.b16 %v4387, %v4385
    %v4406 = vpack.c.b16 %v4388, %v4386
    %v4407 = vpack.c.b16 %v4391, %v4389
    %v4408 = vpack.c.b16 %v4392, %v4390
    %4425 = vmatprep.subr.bf16.mxu0 %v4408
    %4426 = vmatpush1.bf16.msra.mxu0 %v4407
    %4427 = vmatprep.subr.bf16.mxu0 %v4406
    %4428 = vmatpush1.bf16.msra.mxu0 %v4405
    %4429 = vmatprep.subr.bf16.mxu0 %v4404
    %4430 = vmatpush1.bf16.msra.mxu0 %v4403
    %4431 = vmatprep.subr.bf16.mxu0 %v4402
    %4432 = vmatpush1.bf16.msra.mxu0 %v4401
    %4433 = vmatprep.subr.bf16.mxu0 %v4400
    %4434 = vmatpush1.bf16.msra.mxu0 %v4399
    %4435 = vmatprep.subr.bf16.mxu0 %v4398
    %4436 = vmatpush1.bf16.msra.mxu0 %v4397
    %4437 = vmatprep.subr.bf16.mxu0 %v4396
    %4438 = vmatpush1.bf16.msra.mxu0 %v4395
    %4439 = vmatprep.subr.bf16.mxu0 %v4394
    %4440 = vmatpush1.bf16.msra.mxu0 %v4393
    %4441 = vmatprep.subr.bf16.mxu0 0
    %4442 = vmatpush2.bf16.msra.mxu0 0
    %4443 = vmatprep.subr.bf16.mxu0 0
    %4444 = vmatpush2.bf16.msra.mxu0 0
    %4445 = vmatprep.subr.bf16.mxu0 0
    %4446 = vmatpush2.bf16.msra.mxu0 0
    %4447 = vmatprep.subr.bf16.mxu0 0
    %4448 = vmatpush2.bf16.msra.mxu0 0
    %4449 = vmatprep.subr.bf16.mxu0 0
    %4450 = vmatpush2.bf16.msra.mxu0 0
    %4451 = vmatprep.subr.bf16.mxu0 0
    %4452 = vmatpush2.bf16.msra.mxu0 0
    %4453 = vmatprep.subr.bf16.mxu0 0
    %4454 = vmatpush2.bf16.msra.mxu0 0
    %4455 = vmatprep.subr.bf16.mxu0 0
    %4456 = vmatpush2.bf16.msra.mxu0 0
    %4457 = vmatprep.mubr.bf16.mxu0 0
    %4458 = vmatmul.mubr.bf16.gmra.mxu0 %v4293
    %v4459 = vpop.f32.mrf.mxu0
    %v4460 = vadd.f32 0.0, %v4459
    %v4461 = vpop.f32.mrf.mxu0
    %v4462 = vadd.f32 0.0, %v4461
    %v4463 = vpop.f32.mrf.mxu0
    %v4464 = vadd.f32 0.0, %v4463
    %v4465 = vpop.f32.mrf.mxu0
    %v4466 = vadd.f32 0.0, %v4465
    %4467 = vmatprep.mubr.bf16.mxu0 0
    %4468 = vmatmul.mubr.bf16.gmra.mxu0 %v4294
    %v4469 = vpop.f32.mrf.mxu0
    %v4470 = vadd.f32 0.0, %v4469
    %v4471 = vpop.f32.mrf.mxu0
    %v4472 = vadd.f32 0.0, %v4471
    %v4473 = vpop.f32.mrf.mxu0
    %v4474 = vadd.f32 0.0, %v4473
    %v4475 = vpop.f32.mrf.mxu0
    %v4476 = vadd.f32 0.0, %v4475
    %4477 = vmatprep.mubr.bf16.mxu0 0
    %4478 = vmatmul.mubr.bf16.gmra.mxu0 %v4295
    %v4479 = vpop.f32.mrf.mxu0
    %v4480 = vadd.f32 0.0, %v4479
    %v4481 = vpop.f32.mrf.mxu0
    %v4482 = vadd.f32 0.0, %v4481
    %v4483 = vpop.f32.mrf.mxu0
    %v4484 = vadd.f32 0.0, %v4483
    %v4485 = vpop.f32.mrf.mxu0
    %v4486 = vadd.f32 0.0, %v4485
    %4487 = vmatprep.mubr.bf16.mxu0 0
    %4488 = vmatmul.mubr.bf16.gmra.mxu0 %v4296
    %v4489 = vpop.f32.mrf.mxu0
    %v4490 = vadd.f32 0.0, %v4489
    %v4491 = vpop.f32.mrf.mxu0
    %v4492 = vadd.f32 0.0, %v4491
    %v4493 = vpop.f32.mrf.mxu0
    %v4494 = vadd.f32 0.0, %v4493
    %v4495 = vpop.f32.mrf.mxu0
    %v4496 = vadd.f32 0.0, %v4495
    %4497 = vmatprep.mubr.bf16.mxu0 0
    %4498 = vmatmul.mubr.bf16.gmra.mxu0 %v4297
    %v4499 = vpop.f32.mrf.mxu0
    %v4500 = vadd.f32 0.0, %v4499
    %v4501 = vpop.f32.mrf.mxu0
    %v4502 = vadd.f32 0.0, %v4501
    %v4503 = vpop.f32.mrf.mxu0
    %v4504 = vadd.f32 0.0, %v4503
    %v4505 = vpop.f32.mrf.mxu0
    %v4506 = vadd.f32 0.0, %v4505
    %4507 = vmatprep.mubr.bf16.mxu0 0
    %4508 = vmatmul.mubr.bf16.gmra.mxu0 %v4298
    %v4509 = vpop.f32.mrf.mxu0
    %v4510 = vadd.f32 0.0, %v4509
    %v4511 = vpop.f32.mrf.mxu0
    %v4512 = vadd.f32 0.0, %v4511
    %v4513 = vpop.f32.mrf.mxu0
    %v4514 = vadd.f32 0.0, %v4513
    %v4515 = vpop.f32.mrf.mxu0
    %v4516 = vadd.f32 0.0, %v4515
    %4517 = vmatprep.mubr.bf16.mxu0 0
    %4518 = vmatmul.mubr.bf16.gmra.mxu0 %v4299
    %v4519 = vpop.f32.mrf.mxu0
    %v4520 = vadd.f32 0.0, %v4519
    %v4521 = vpop.f32.mrf.mxu0
    %v4522 = vadd.f32 0.0, %v4521
    %v4523 = vpop.f32.mrf.mxu0
    %v4524 = vadd.f32 0.0, %v4523
    %v4525 = vpop.f32.mrf.mxu0
    %v4526 = vadd.f32 0.0, %v4525
    %4527 = vmatprep.mubr.bf16.mxu0 0
    %4528 = vmatmul.mubr.bf16.gmra.mxu0 %v4300
    %v4529 = vpop.f32.mrf.mxu0
    %v4530 = vadd.f32 0.0, %v4529
    %v4531 = vpop.f32.mrf.mxu0
    %v4532 = vadd.f32 0.0, %v4531
    %v4533 = vpop.f32.mrf.mxu0
    %v4534 = vadd.f32 0.0, %v4533
    %v4535 = vpop.f32.mrf.mxu0
    %v4536 = vadd.f32 0.0, %v4535
    %4537 = vmatprep.mubr.bf16.mxu0 0
    %4538 = vmatmul.mubr.bf16.gmra.mxu0 %v4301
    %v4539 = vpop.f32.mrf.mxu0
    %v4540 = vadd.f32 0.0, %v4539
    %v4541 = vpop.f32.mrf.mxu0
    %v4542 = vadd.f32 0.0, %v4541
    %v4543 = vpop.f32.mrf.mxu0
    %v4544 = vadd.f32 0.0, %v4543
    %v4545 = vpop.f32.mrf.mxu0
    %v4546 = vadd.f32 0.0, %v4545
    %4547 = vmatprep.mubr.bf16.mxu0 0
    %4548 = vmatmul.mubr.bf16.gmra.mxu0 %v4302
    %v4549 = vpop.f32.mrf.mxu0
    %v4550 = vadd.f32 0.0, %v4549
    %v4551 = vpop.f32.mrf.mxu0
    %v4552 = vadd.f32 0.0, %v4551
    %v4553 = vpop.f32.mrf.mxu0
    %v4554 = vadd.f32 0.0, %v4553
    %v4555 = vpop.f32.mrf.mxu0
    %v4556 = vadd.f32 0.0, %v4555
    %4557 = vmatprep.mubr.bf16.mxu0 0
    %4558 = vmatmul.mubr.bf16.gmra.mxu0 %v4303
    %v4559 = vpop.f32.mrf.mxu0
    %v4560 = vadd.f32 0.0, %v4559
    %v4561 = vpop.f32.mrf.mxu0
    %v4562 = vadd.f32 0.0, %v4561
    %v4563 = vpop.f32.mrf.mxu0
    %v4564 = vadd.f32 0.0, %v4563
    %v4565 = vpop.f32.mrf.mxu0
    %v4566 = vadd.f32 0.0, %v4565
    %4567 = vmatprep.mubr.bf16.mxu0 0
    %4568 = vmatmul.mubr.bf16.gmra.mxu0 %v4304
    %v4569 = vpop.f32.mrf.mxu0
    %v4570 = vadd.f32 0.0, %v4569
    %v4571 = vpop.f32.mrf.mxu0
    %v4572 = vadd.f32 0.0, %v4571
    %v4573 = vpop.f32.mrf.mxu0
    %v4574 = vadd.f32 0.0, %v4573
    %v4575 = vpop.f32.mrf.mxu0
    %v4576 = vadd.f32 0.0, %v4575
    %4577 = vmatprep.mubr.bf16.mxu0 0
    %4578 = vmatmul.mubr.bf16.gmra.mxu0 %v4305
    %v4579 = vpop.f32.mrf.mxu0
    %v4580 = vadd.f32 0.0, %v4579
    %v4581 = vpop.f32.mrf.mxu0
    %v4582 = vadd.f32 0.0, %v4581
    %v4583 = vpop.f32.mrf.mxu0
    %v4584 = vadd.f32 0.0, %v4583
    %v4585 = vpop.f32.mrf.mxu0
    %v4586 = vadd.f32 0.0, %v4585
    %4587 = vmatprep.mubr.bf16.mxu0 0
    %4588 = vmatmul.mubr.bf16.gmra.mxu0 %v4306
    %v4589 = vpop.f32.mrf.mxu0
    %v4590 = vadd.f32 0.0, %v4589
    %v4591 = vpop.f32.mrf.mxu0
    %v4592 = vadd.f32 0.0, %v4591
    %v4593 = vpop.f32.mrf.mxu0
    %v4594 = vadd.f32 0.0, %v4593
    %v4595 = vpop.f32.mrf.mxu0
    %v4596 = vadd.f32 0.0, %v4595
    %4597 = vmatprep.mubr.bf16.mxu0 0
    %4598 = vmatmul.mubr.bf16.gmra.mxu0 %v4307
    %v4599 = vpop.f32.mrf.mxu0
    %v4600 = vadd.f32 0.0, %v4599
    %v4601 = vpop.f32.mrf.mxu0
    %v4602 = vadd.f32 0.0, %v4601
    %v4603 = vpop.f32.mrf.mxu0
    %v4604 = vadd.f32 0.0, %v4603
    %v4605 = vpop.f32.mrf.mxu0
    %v4606 = vadd.f32 0.0, %v4605
    %4607 = vmatprep.mubr.bf16.mxu0 0
    %4608 = vmatmul.mubr.bf16.gmra.mxu0 %v4308
    %v4609 = vpop.f32.mrf.mxu0
    %v4610 = vadd.f32 0.0, %v4609
    %v4611 = vpop.f32.mrf.mxu0
    %v4612 = vadd.f32 0.0, %v4611
    %v4613 = vpop.f32.mrf.mxu0
    %v4614 = vadd.f32 0.0, %v4613
    %v4615 = vpop.f32.mrf.mxu0
    %v4616 = vadd.f32 0.0, %v4615
    %4617 = vmatprep.mubr.bf16.mxu0 0
    %4618 = vmatmul.mubr.bf16.gmra.mxu0 %v4309
    %v4619 = vpop.f32.mrf.mxu0
    %v4620 = vadd.f32 0.0, %v4619
    %v4621 = vpop.f32.mrf.mxu0
    %v4622 = vadd.f32 0.0, %v4621
    %v4623 = vpop.f32.mrf.mxu0
    %v4624 = vadd.f32 0.0, %v4623
    %v4625 = vpop.f32.mrf.mxu0
    %v4626 = vadd.f32 0.0, %v4625
    %4627 = vmatprep.mubr.bf16.mxu0 0
    %4628 = vmatmul.mubr.bf16.gmra.mxu0 %v4310
    %v4629 = vpop.f32.mrf.mxu0
    %v4630 = vadd.f32 0.0, %v4629
    %v4631 = vpop.f32.mrf.mxu0
    %v4632 = vadd.f32 0.0, %v4631
    %v4633 = vpop.f32.mrf.mxu0
    %v4634 = vadd.f32 0.0, %v4633
    %v4635 = vpop.f32.mrf.mxu0
    %v4636 = vadd.f32 0.0, %v4635
    %4637 = vmatprep.mubr.bf16.mxu0 0
    %4638 = vmatmul.mubr.bf16.gmra.mxu0 %v4311
    %v4639 = vpop.f32.mrf.mxu0
    %v4640 = vadd.f32 0.0, %v4639
    %v4641 = vpop.f32.mrf.mxu0
    %v4642 = vadd.f32 0.0, %v4641
    %v4643 = vpop.f32.mrf.mxu0
    %v4644 = vadd.f32 0.0, %v4643
    %v4645 = vpop.f32.mrf.mxu0
    %v4646 = vadd.f32 0.0, %v4645
    %4647 = vmatprep.mubr.bf16.mxu0 0
    %4648 = vmatmul.mubr.bf16.gmra.mxu0 %v4312
    %v4649 = vpop.f32.mrf.mxu0
    %v4650 = vadd.f32 0.0, %v4649
    %v4651 = vpop.f32.mrf.mxu0
    %v4652 = vadd.f32 0.0, %v4651
    %v4653 = vpop.f32.mrf.mxu0
    %v4654 = vadd.f32 0.0, %v4653
    %v4655 = vpop.f32.mrf.mxu0
    %v4656 = vadd.f32 0.0, %v4655
    %4657 = vmatprep.mubr.bf16.mxu0 0
    %4658 = vmatmul.mubr.bf16.gmra.mxu0 %v4313
    %v4659 = vpop.f32.mrf.mxu0
    %v4660 = vadd.f32 0.0, %v4659
    %v4661 = vpop.f32.mrf.mxu0
    %v4662 = vadd.f32 0.0, %v4661
    %v4663 = vpop.f32.mrf.mxu0
    %v4664 = vadd.f32 0.0, %v4663
    %v4665 = vpop.f32.mrf.mxu0
    %v4666 = vadd.f32 0.0, %v4665
    %4667 = vmatprep.mubr.bf16.mxu0 0
    %4668 = vmatmul.mubr.bf16.gmra.mxu0 %v4314
    %v4669 = vpop.f32.mrf.mxu0
    %v4670 = vadd.f32 0.0, %v4669
    %v4671 = vpop.f32.mrf.mxu0
    %v4672 = vadd.f32 0.0, %v4671
    %v4673 = vpop.f32.mrf.mxu0
    %v4674 = vadd.f32 0.0, %v4673
    %v4675 = vpop.f32.mrf.mxu0
    %v4676 = vadd.f32 0.0, %v4675
    %4677 = vmatprep.mubr.bf16.mxu0 0
    %4678 = vmatmul.mubr.bf16.gmra.mxu0 %v4315
    %v4679 = vpop.f32.mrf.mxu0
    %v4680 = vadd.f32 0.0, %v4679
    %v4681 = vpop.f32.mrf.mxu0
    %v4682 = vadd.f32 0.0, %v4681
    %v4683 = vpop.f32.mrf.mxu0
    %v4684 = vadd.f32 0.0, %v4683
    %v4685 = vpop.f32.mrf.mxu0
    %v4686 = vadd.f32 0.0, %v4685
    %4687 = vmatprep.mubr.bf16.mxu0 0
    %4688 = vmatmul.mubr.bf16.gmra.mxu0 %v4316
    %v4689 = vpop.f32.mrf.mxu0
    %v4690 = vadd.f32 0.0, %v4689
    %v4691 = vpop.f32.mrf.mxu0
    %v4692 = vadd.f32 0.0, %v4691
    %v4693 = vpop.f32.mrf.mxu0
    %v4694 = vadd.f32 0.0, %v4693
    %v4695 = vpop.f32.mrf.mxu0
    %v4696 = vadd.f32 0.0, %v4695
    %4697 = vmatprep.mubr.bf16.mxu0 0
    %4698 = vmatmul.mubr.bf16.gmra.mxu0 %v4317
    %v4699 = vpop.f32.mrf.mxu0
    %v4700 = vadd.f32 0.0, %v4699
    %v4701 = vpop.f32.mrf.mxu0
    %v4702 = vadd.f32 0.0, %v4701
    %v4703 = vpop.f32.mrf.mxu0
    %v4704 = vadd.f32 0.0, %v4703
    %v4705 = vpop.f32.mrf.mxu0
    %v4706 = vadd.f32 0.0, %v4705
    %4707 = vmatprep.mubr.bf16.mxu0 0
    %4708 = vmatmul.mubr.bf16.gmra.mxu0 %v4318
    %v4709 = vpop.f32.mrf.mxu0
    %v4710 = vadd.f32 0.0, %v4709
    %v4711 = vpop.f32.mrf.mxu0
    %v4712 = vadd.f32 0.0, %v4711
    %v4713 = vpop.f32.mrf.mxu0
    %v4714 = vadd.f32 0.0, %v4713
    %v4715 = vpop.f32.mrf.mxu0
    %v4716 = vadd.f32 0.0, %v4715
    %4717 = vmatprep.mubr.bf16.mxu0 0
    %4718 = vmatmul.mubr.bf16.gmra.mxu0 %v4319
    %v4719 = vpop.f32.mrf.mxu0
    %v4720 = vadd.f32 0.0, %v4719
    %v4721 = vpop.f32.mrf.mxu0
    %v4722 = vadd.f32 0.0, %v4721
    %v4723 = vpop.f32.mrf.mxu0
    %v4724 = vadd.f32 0.0, %v4723
    %v4725 = vpop.f32.mrf.mxu0
    %v4726 = vadd.f32 0.0, %v4725
    %4727 = vmatprep.mubr.bf16.mxu0 0
    %4728 = vmatmul.mubr.bf16.gmra.mxu0 %v4320
    %v4729 = vpop.f32.mrf.mxu0
    %v4730 = vadd.f32 0.0, %v4729
    %v4731 = vpop.f32.mrf.mxu0
    %v4732 = vadd.f32 0.0, %v4731
    %v4733 = vpop.f32.mrf.mxu0
    %v4734 = vadd.f32 0.0, %v4733
    %v4735 = vpop.f32.mrf.mxu0
    %v4736 = vadd.f32 0.0, %v4735
    %4737 = vmatprep.mubr.bf16.mxu0 0
    %4738 = vmatmul.mubr.bf16.gmra.mxu0 %v4321
    %v4739 = vpop.f32.mrf.mxu0
    %v4740 = vadd.f32 0.0, %v4739
    %v4741 = vpop.f32.mrf.mxu0
    %v4742 = vadd.f32 0.0, %v4741
    %v4743 = vpop.f32.mrf.mxu0
    %v4744 = vadd.f32 0.0, %v4743
    %v4745 = vpop.f32.mrf.mxu0
    %v4746 = vadd.f32 0.0, %v4745
    %4747 = vmatprep.mubr.bf16.mxu0 0
    %4748 = vmatmul.mubr.bf16.gmra.mxu0 %v4322
    %v4749 = vpop.f32.mrf.mxu0
    %v4750 = vadd.f32 0.0, %v4749
    %v4751 = vpop.f32.mrf.mxu0
    %v4752 = vadd.f32 0.0, %v4751
    %v4753 = vpop.f32.mrf.mxu0
    %v4754 = vadd.f32 0.0, %v4753
    %v4755 = vpop.f32.mrf.mxu0
    %v4756 = vadd.f32 0.0, %v4755
    %4757 = vmatprep.mubr.bf16.mxu0 0
    %4758 = vmatmul.mubr.bf16.gmra.mxu0 %v4323
    %v4759 = vpop.f32.mrf.mxu0
    %v4760 = vadd.f32 0.0, %v4759
    %v4761 = vpop.f32.mrf.mxu0
    %v4762 = vadd.f32 0.0, %v4761
    %v4763 = vpop.f32.mrf.mxu0
    %v4764 = vadd.f32 0.0, %v4763
    %v4765 = vpop.f32.mrf.mxu0
    %v4766 = vadd.f32 0.0, %v4765
    %4767 = vmatprep.mubr.bf16.mxu0 0
    %4768 = vmatmul.mubr.bf16.gmra.mxu0 %v4324
    %v4769 = vpop.f32.mrf.mxu0
    %v4770 = vadd.f32 0.0, %v4769
    %v4771 = vpop.f32.mrf.mxu0
    %v4772 = vadd.f32 0.0, %v4771
    %v4773 = vpop.f32.mrf.mxu0
    %v4774 = vadd.f32 0.0, %v4773
    %v4775 = vpop.f32.mrf.mxu0
    %v4776 = vadd.f32 0.0, %v4775
    %4777 = vdwg.mxu0
    %v4778 = vadd.f32 %v4460, %v4464
    %v4779 = vadd.f32 %v4778, %v4470
    %v4780 = vadd.f32 %v4779, %v4474
    %v4781 = vadd.f32 %v4780, %v4480
    %v4782 = vadd.f32 %v4781, %v4484
    %v4783 = vadd.f32 %v4782, %v4490
    %v4784 = vadd.f32 %v4783, %v4494
    %v4785 = vadd.f32 %v4784, %v4500
    %v4786 = vadd.f32 %v4785, %v4504
    %v4787 = vadd.f32 %v4786, %v4510
    %v4788 = vadd.f32 %v4787, %v4514
    %v4789 = vadd.f32 %v4788, %v4520
    %v4790 = vadd.f32 %v4789, %v4524
    %v4791 = vadd.f32 %v4790, %v4530
    %v4792 = vadd.f32 %v4791, %v4534
    %v4793 = vadd.f32 %v4792, %v4540
    %v4794 = vadd.f32 %v4793, %v4544
    %v4795 = vadd.f32 %v4794, %v4550
    %v4796 = vadd.f32 %v4795, %v4554
    %v4797 = vadd.f32 %v4796, %v4560
    %v4798 = vadd.f32 %v4797, %v4564
    %v4799 = vadd.f32 %v4798, %v4570
    %v4800 = vadd.f32 %v4799, %v4574
    %v4801 = vadd.f32 %v4800, %v4580
    %v4802 = vadd.f32 %v4801, %v4584
    %v4803 = vadd.f32 %v4802, %v4590
    %v4804 = vadd.f32 %v4803, %v4594
    %v4805 = vadd.f32 %v4804, %v4600
    %v4806 = vadd.f32 %v4805, %v4604
    %v4807 = vadd.f32 %v4806, %v4610
    %v4808 = vadd.f32 %v4807, %v4614
    %v4809 = vadd.f32 %v4808, %v4620
    %v4810 = vadd.f32 %v4809, %v4624
    %v4811 = vadd.f32 %v4810, %v4630
    %v4812 = vadd.f32 %v4811, %v4634
    %v4813 = vadd.f32 %v4812, %v4640
    %v4814 = vadd.f32 %v4813, %v4644
    %v4815 = vadd.f32 %v4814, %v4650
    %v4816 = vadd.f32 %v4815, %v4654
    %v4817 = vadd.f32 %v4816, %v4660
    %v4818 = vadd.f32 %v4817, %v4664
    %v4819 = vadd.f32 %v4818, %v4670
    %v4820 = vadd.f32 %v4819, %v4674
    %v4821 = vadd.f32 %v4820, %v4680
    %v4822 = vadd.f32 %v4821, %v4684
    %v4823 = vadd.f32 %v4822, %v4690
    %v4824 = vadd.f32 %v4823, %v4694
    %v4825 = vadd.f32 %v4824, %v4700
    %v4826 = vadd.f32 %v4825, %v4704
    %v4827 = vadd.f32 %v4826, %v4710
    %v4828 = vadd.f32 %v4827, %v4714
    %v4829 = vadd.f32 %v4828, %v4720
    %v4830 = vadd.f32 %v4829, %v4724
    %v4831 = vadd.f32 %v4830, %v4730
    %v4832 = vadd.f32 %v4831, %v4734
    %v4833 = vadd.f32 %v4832, %v4740
    %v4834 = vadd.f32 %v4833, %v4744
    %v4835 = vadd.f32 %v4834, %v4750
    %v4836 = vadd.f32 %v4835, %v4754
    %v4837 = vadd.f32 %v4836, %v4760
    %v4838 = vadd.f32 %v4837, %v4764
    %v4839 = vadd.f32 %v4838, %v4770
    %v4840 = vadd.f32 %v4839, %v4774
    %v4841 = vrot.slane %v4840, 4
    %v4842 = vadd.f32 %v4840, %v4841
    %v4843 = vrot.slane %v4842, 2
    %v4844 = vadd.f32 %v4842, %v4843
    %v4845 = vrot.slane %v4844, 1
    %v4846 = vadd.f32 %v4844, %v4845
    %v4847 = vadd.f32 %v4462, %v4466
    %v4848 = vadd.f32 %v4847, %v4472
    %v4849 = vadd.f32 %v4848, %v4476
    %v4850 = vadd.f32 %v4849, %v4482
    %v4851 = vadd.f32 %v4850, %v4486
    %v4852 = vadd.f32 %v4851, %v4492
    %v4853 = vadd.f32 %v4852, %v4496
    %v4854 = vadd.f32 %v4853, %v4502
    %v4855 = vadd.f32 %v4854, %v4506
    %v4856 = vadd.f32 %v4855, %v4512
    %v4857 = vadd.f32 %v4856, %v4516
    %v4858 = vadd.f32 %v4857, %v4522
    %v4859 = vadd.f32 %v4858, %v4526
    %v4860 = vadd.f32 %v4859, %v4532
    %v4861 = vadd.f32 %v4860, %v4536
    %v4862 = vadd.f32 %v4861, %v4542
    %v4863 = vadd.f32 %v4862, %v4546
    %v4864 = vadd.f32 %v4863, %v4552
    %v4865 = vadd.f32 %v4864, %v4556
    %v4866 = vadd.f32 %v4865, %v4562
    %v4867 = vadd.f32 %v4866, %v4566
    %v4868 = vadd.f32 %v4867, %v4572
    %v4869 = vadd.f32 %v4868, %v4576
    %v4870 = vadd.f32 %v4869, %v4582
    %v4871 = vadd.f32 %v4870, %v4586
    %v4872 = vadd.f32 %v4871, %v4592
    %v4873 = vadd.f32 %v4872, %v4596
    %v4874 = vadd.f32 %v4873, %v4602
    %v4875 = vadd.f32 %v4874, %v4606
    %v4876 = vadd.f32 %v4875, %v4612
    %v4877 = vadd.f32 %v4876, %v4616
    %v4878 = vadd.f32 %v4877, %v4622
    %v4879 = vadd.f32 %v4878, %v4626
    %v4880 = vadd.f32 %v4879, %v4632
    %v4881 = vadd.f32 %v4880, %v4636
    %v4882 = vadd.f32 %v4881, %v4642
    %v4883 = vadd.f32 %v4882, %v4646
    %v4884 = vadd.f32 %v4883, %v4652
    %v4885 = vadd.f32 %v4884, %v4656
    %v4886 = vadd.f32 %v4885, %v4662
    %v4887 = vadd.f32 %v4886, %v4666
    %v4888 = vadd.f32 %v4887, %v4672
    %v4889 = vadd.f32 %v4888, %v4676
    %v4890 = vadd.f32 %v4889, %v4682
    %v4891 = vadd.f32 %v4890, %v4686
    %v4892 = vadd.f32 %v4891, %v4692
    %v4893 = vadd.f32 %v4892, %v4696
    %v4894 = vadd.f32 %v4893, %v4702
    %v4895 = vadd.f32 %v4894, %v4706
    %v4896 = vadd.f32 %v4895, %v4712
    %v4897 = vadd.f32 %v4896, %v4716
    %v4898 = vadd.f32 %v4897, %v4722
    %v4899 = vadd.f32 %v4898, %v4726
    %v4900 = vadd.f32 %v4899, %v4732
    %v4901 = vadd.f32 %v4900, %v4736
    %v4902 = vadd.f32 %v4901, %v4742
    %v4903 = vadd.f32 %v4902, %v4746
    %v4904 = vadd.f32 %v4903, %v4752
    %v4905 = vadd.f32 %v4904, %v4756
    %v4906 = vadd.f32 %v4905, %v4762
    %v4907 = vadd.f32 %v4906, %v4766
    %v4908 = vadd.f32 %v4907, %v4772
    %v4909 = vadd.f32 %v4908, %v4776
    %v4910 = vrot.slane %v4909, 4
    %v4911 = vadd.f32 %v4909, %v4910
    %v4912 = vrot.slane %v4911, 2
    %v4913 = vadd.f32 %v4911, %v4912
    %v4914 = vrot.slane %v4913, 1
    %v4915 = vadd.f32 %v4913, %v4914
    %4917 = vrot.lane.b32.xlu0 %v4846, 64
    %v4918 = vpop.permute.xlu0 %4917
    %v4920 = vadd.f32 %v4846, %v4918
    %v4921 = vadd.f32 %v4920, %v4915
    %4923 = vrot.lane.b32.xlu0 %v4915, 64
    %v4924 = vpop.permute.xlu0 %4923
    %v4926 = vadd.f32 %v4921, %v4924
    %v4927 = vmul.f32 %v4460, %v4460
    %v4928 = vmul.f32 %v4462, %v4462
    %v4929 = vmul.f32 %v4464, %v4464
    %v4930 = vmul.f32 %v4466, %v4466
    %v4931 = vmul.f32 %v4470, %v4470
    %v4932 = vmul.f32 %v4472, %v4472
    %v4933 = vmul.f32 %v4474, %v4474
    %v4934 = vmul.f32 %v4476, %v4476
    %v4935 = vmul.f32 %v4480, %v4480
    %v4936 = vmul.f32 %v4482, %v4482
    %v4937 = vmul.f32 %v4484, %v4484
    %v4938 = vmul.f32 %v4486, %v4486
    %v4939 = vmul.f32 %v4490, %v4490
    %v4940 = vmul.f32 %v4492, %v4492
    %v4941 = vmul.f32 %v4494, %v4494
    %v4942 = vmul.f32 %v4496, %v4496
    %v4943 = vmul.f32 %v4500, %v4500
    %v4944 = vmul.f32 %v4502, %v4502
    %v4945 = vmul.f32 %v4504, %v4504
    %v4946 = vmul.f32 %v4506, %v4506
    %v4947 = vmul.f32 %v4510, %v4510
    %v4948 = vmul.f32 %v4512, %v4512
    %v4949 = vmul.f32 %v4514, %v4514
    %v4950 = vmul.f32 %v4516, %v4516
    %v4951 = vmul.f32 %v4520, %v4520
    %v4952 = vmul.f32 %v4522, %v4522
    %v4953 = vmul.f32 %v4524, %v4524
    %v4954 = vmul.f32 %v4526, %v4526
    %v4955 = vmul.f32 %v4530, %v4530
    %v4956 = vmul.f32 %v4532, %v4532
    %v4957 = vmul.f32 %v4534, %v4534
    %v4958 = vmul.f32 %v4536, %v4536
    %v4959 = vmul.f32 %v4540, %v4540
    %v4960 = vmul.f32 %v4542, %v4542
    %v4961 = vmul.f32 %v4544, %v4544
    %v4962 = vmul.f32 %v4546, %v4546
    %v4963 = vmul.f32 %v4550, %v4550
    %v4964 = vmul.f32 %v4552, %v4552
    %v4965 = vmul.f32 %v4554, %v4554
    %v4966 = vmul.f32 %v4556, %v4556
    %v4967 = vmul.f32 %v4560, %v4560
    %v4968 = vmul.f32 %v4562, %v4562
    %v4969 = vmul.f32 %v4564, %v4564
    %v4970 = vmul.f32 %v4566, %v4566
    %v4971 = vmul.f32 %v4570, %v4570
    %v4972 = vmul.f32 %v4572, %v4572
    %v4973 = vmul.f32 %v4574, %v4574
    %v4974 = vmul.f32 %v4576, %v4576
    %v4975 = vmul.f32 %v4580, %v4580
    %v4976 = vmul.f32 %v4582, %v4582
    %v4977 = vmul.f32 %v4584, %v4584
    %v4978 = vmul.f32 %v4586, %v4586
    %v4979 = vmul.f32 %v4590, %v4590
    %v4980 = vmul.f32 %v4592, %v4592
    %v4981 = vmul.f32 %v4594, %v4594
    %v4982 = vmul.f32 %v4596, %v4596
    %v4983 = vmul.f32 %v4600, %v4600
    %v4984 = vmul.f32 %v4602, %v4602
    %v4985 = vmul.f32 %v4604, %v4604
    %v4986 = vmul.f32 %v4606, %v4606
    %v4987 = vmul.f32 %v4610, %v4610
    %v4988 = vmul.f32 %v4612, %v4612
    %v4989 = vmul.f32 %v4614, %v4614
    %v4990 = vmul.f32 %v4616, %v4616
    %v4991 = vmul.f32 %v4620, %v4620
    %v4992 = vmul.f32 %v4622, %v4622
    %v4993 = vmul.f32 %v4624, %v4624
    %v4994 = vmul.f32 %v4626, %v4626
    %v4995 = vmul.f32 %v4630, %v4630
    %v4996 = vmul.f32 %v4632, %v4632
    %v4997 = vmul.f32 %v4634, %v4634
    %v4998 = vmul.f32 %v4636, %v4636
    %v4999 = vmul.f32 %v4640, %v4640
    %v5000 = vmul.f32 %v4642, %v4642
    %v5001 = vmul.f32 %v4644, %v4644
    %v5002 = vmul.f32 %v4646, %v4646
    %v5003 = vmul.f32 %v4650, %v4650
    %v5004 = vmul.f32 %v4652, %v4652
    %v5005 = vmul.f32 %v4654, %v4654
    %v5006 = vmul.f32 %v4656, %v4656
    %v5007 = vmul.f32 %v4660, %v4660
    %v5008 = vmul.f32 %v4662, %v4662
    %v5009 = vmul.f32 %v4664, %v4664
    %v5010 = vmul.f32 %v4666, %v4666
    %v5011 = vmul.f32 %v4670, %v4670
    %v5012 = vmul.f32 %v4672, %v4672
    %v5013 = vmul.f32 %v4674, %v4674
    %v5014 = vmul.f32 %v4676, %v4676
    %v5015 = vmul.f32 %v4680, %v4680
    %v5016 = vmul.f32 %v4682, %v4682
    %v5017 = vmul.f32 %v4684, %v4684
    %v5018 = vmul.f32 %v4686, %v4686
    %v5019 = vmul.f32 %v4690, %v4690
    %v5020 = vmul.f32 %v4692, %v4692
    %v5021 = vmul.f32 %v4694, %v4694
    %v5022 = vmul.f32 %v4696, %v4696
    %v5023 = vmul.f32 %v4700, %v4700
    %v5024 = vmul.f32 %v4702, %v4702
    %v5025 = vmul.f32 %v4704, %v4704
    %v5026 = vmul.f32 %v4706, %v4706
    %v5027 = vmul.f32 %v4710, %v4710
    %v5028 = vmul.f32 %v4712, %v4712
    %v5029 = vmul.f32 %v4714, %v4714
    %v5030 = vmul.f32 %v4716, %v4716
    %v5031 = vmul.f32 %v4720, %v4720
    %v5032 = vmul.f32 %v4722, %v4722
    %v5033 = vmul.f32 %v4724, %v4724
    %v5034 = vmul.f32 %v4726, %v4726
    %v5035 = vmul.f32 %v4730, %v4730
    %v5036 = vmul.f32 %v4732, %v4732
    %v5037 = vmul.f32 %v4734, %v4734
    %v5038 = vmul.f32 %v4736, %v4736
    %v5039 = vmul.f32 %v4740, %v4740
    %v5040 = vmul.f32 %v4742, %v4742
    %v5041 = vmul.f32 %v4744, %v4744
    %v5042 = vmul.f32 %v4746, %v4746
    %v5043 = vmul.f32 %v4750, %v4750
    %v5044 = vmul.f32 %v4752, %v4752
    %v5045 = vmul.f32 %v4754, %v4754
    %v5046 = vmul.f32 %v4756, %v4756
    %v5047 = vmul.f32 %v4760, %v4760
    %v5048 = vmul.f32 %v4762, %v4762
    %v5049 = vmul.f32 %v4764, %v4764
    %v5050 = vmul.f32 %v4766, %v4766
    %v5051 = vmul.f32 %v4770, %v4770
    %v5052 = vmul.f32 %v4772, %v4772
    %v5053 = vmul.f32 %v4774, %v4774
    %v5054 = vmul.f32 %v4776, %v4776
    %v5055 = vadd.f32 %v4927, %v4929
    %v5056 = vadd.f32 %v5055, %v4931
    %v5057 = vadd.f32 %v5056, %v4933
    %v5058 = vadd.f32 %v5057, %v4935
    %v5059 = vadd.f32 %v5058, %v4937
    %v5060 = vadd.f32 %v5059, %v4939
    %v5061 = vadd.f32 %v5060, %v4941
    %v5062 = vadd.f32 %v5061, %v4943
    %v5063 = vadd.f32 %v5062, %v4945
    %v5064 = vadd.f32 %v5063, %v4947
    %v5065 = vadd.f32 %v5064, %v4949
    %v5066 = vadd.f32 %v5065, %v4951
    %v5067 = vadd.f32 %v5066, %v4953
    %v5068 = vadd.f32 %v5067, %v4955
    %v5069 = vadd.f32 %v5068, %v4957
    %v5070 = vadd.f32 %v5069, %v4959
    %v5071 = vadd.f32 %v5070, %v4961
    %v5072 = vadd.f32 %v5071, %v4963
    %v5073 = vadd.f32 %v5072, %v4965
    %v5074 = vadd.f32 %v5073, %v4967
    %v5075 = vadd.f32 %v5074, %v4969
    %v5076 = vadd.f32 %v5075, %v4971
    %v5077 = vadd.f32 %v5076, %v4973
    %v5078 = vadd.f32 %v5077, %v4975
    %v5079 = vadd.f32 %v5078, %v4977
    %v5080 = vadd.f32 %v5079, %v4979
    %v5081 = vadd.f32 %v5080, %v4981
    %v5082 = vadd.f32 %v5081, %v4983
    %v5083 = vadd.f32 %v5082, %v4985
    %v5084 = vadd.f32 %v5083, %v4987
    %v5085 = vadd.f32 %v5084, %v4989
    %v5086 = vadd.f32 %v5085, %v4991
    %v5087 = vadd.f32 %v5086, %v4993
    %v5088 = vadd.f32 %v5087, %v4995
    %v5089 = vadd.f32 %v5088, %v4997
    %v5090 = vadd.f32 %v5089, %v4999
    %v5091 = vadd.f32 %v5090, %v5001
    %v5092 = vadd.f32 %v5091, %v5003
    %v5093 = vadd.f32 %v5092, %v5005
    %v5094 = vadd.f32 %v5093, %v5007
    %v5095 = vadd.f32 %v5094, %v5009
    %v5096 = vadd.f32 %v5095, %v5011
    %v5097 = vadd.f32 %v5096, %v5013
    %v5098 = vadd.f32 %v5097, %v5015
    %v5099 = vadd.f32 %v5098, %v5017
    %v5100 = vadd.f32 %v5099, %v5019
    %v5101 = vadd.f32 %v5100, %v5021
    %v5102 = vadd.f32 %v5101, %v5023
    %v5103 = vadd.f32 %v5102, %v5025
    %v5104 = vadd.f32 %v5103, %v5027
    %v5105 = vadd.f32 %v5104, %v5029
    %v5106 = vadd.f32 %v5105, %v5031
    %v5107 = vadd.f32 %v5106, %v5033
    %v5108 = vadd.f32 %v5107, %v5035
    %v5109 = vadd.f32 %v5108, %v5037
    %v5110 = vadd.f32 %v5109, %v5039
    %v5111 = vadd.f32 %v5110, %v5041
    %v5112 = vadd.f32 %v5111, %v5043
    %v5113 = vadd.f32 %v5112, %v5045
    %v5114 = vadd.f32 %v5113, %v5047
    %v5115 = vadd.f32 %v5114, %v5049
    %v5116 = vadd.f32 %v5115, %v5051
    %v5117 = vadd.f32 %v5116, %v5053
    %v5118 = vrot.slane %v5117, 4
    %v5119 = vadd.f32 %v5117, %v5118
    %v5120 = vrot.slane %v5119, 2
    %v5121 = vadd.f32 %v5119, %v5120
    %v5122 = vrot.slane %v5121, 1
    %v5123 = vadd.f32 %v5121, %v5122
    %v5124 = vadd.f32 %v4928, %v4930
    %v5125 = vadd.f32 %v5124, %v4932
    %v5126 = vadd.f32 %v5125, %v4934
    %v5127 = vadd.f32 %v5126, %v4936
    %v5128 = vadd.f32 %v5127, %v4938
    %v5129 = vadd.f32 %v5128, %v4940
    %v5130 = vadd.f32 %v5129, %v4942
    %v5131 = vadd.f32 %v5130, %v4944
    %v5132 = vadd.f32 %v5131, %v4946
    %v5133 = vadd.f32 %v5132, %v4948
    %v5134 = vadd.f32 %v5133, %v4950
    %v5135 = vadd.f32 %v5134, %v4952
    %v5136 = vadd.f32 %v5135, %v4954
    %v5137 = vadd.f32 %v5136, %v4956
    %v5138 = vadd.f32 %v5137, %v4958
    %v5139 = vadd.f32 %v5138, %v4960
    %v5140 = vadd.f32 %v5139, %v4962
    %v5141 = vadd.f32 %v5140, %v4964
    %v5142 = vadd.f32 %v5141, %v4966
    %v5143 = vadd.f32 %v5142, %v4968
    %v5144 = vadd.f32 %v5143, %v4970
    %v5145 = vadd.f32 %v5144, %v4972
    %v5146 = vadd.f32 %v5145, %v4974
    %v5147 = vadd.f32 %v5146, %v4976
    %v5148 = vadd.f32 %v5147, %v4978
    %v5149 = vadd.f32 %v5148, %v4980
    %v5150 = vadd.f32 %v5149, %v4982
    %v5151 = vadd.f32 %v5150, %v4984
    %v5152 = vadd.f32 %v5151, %v4986
    %v5153 = vadd.f32 %v5152, %v4988
    %v5154 = vadd.f32 %v5153, %v4990
    %v5155 = vadd.f32 %v5154, %v4992
    %v5156 = vadd.f32 %v5155, %v4994
    %v5157 = vadd.f32 %v5156, %v4996
    %v5158 = vadd.f32 %v5157, %v4998
    %v5159 = vadd.f32 %v5158, %v5000
    %v5160 = vadd.f32 %v5159, %v5002
    %v5161 = vadd.f32 %v5160, %v5004
    %v5162 = vadd.f32 %v5161, %v5006
    %v5163 = vadd.f32 %v5162, %v5008
    %v5164 = vadd.f32 %v5163, %v5010
    %v5165 = vadd.f32 %v5164, %v5012
    %v5166 = vadd.f32 %v5165, %v5014
    %v5167 = vadd.f32 %v5166, %v5016
    %v5168 = vadd.f32 %v5167, %v5018
    %v5169 = vadd.f32 %v5168, %v5020
    %v5170 = vadd.f32 %v5169, %v5022
    %v5171 = vadd.f32 %v5170, %v5024
    %v5172 = vadd.f32 %v5171, %v5026
    %v5173 = vadd.f32 %v5172, %v5028
    %v5174 = vadd.f32 %v5173, %v5030
    %v5175 = vadd.f32 %v5174, %v5032
    %v5176 = vadd.f32 %v5175, %v5034
    %v5177 = vadd.f32 %v5176, %v5036
    %v5178 = vadd.f32 %v5177, %v5038
    %v5179 = vadd.f32 %v5178, %v5040
    %v5180 = vadd.f32 %v5179, %v5042
    %v5181 = vadd.f32 %v5180, %v5044
    %v5182 = vadd.f32 %v5181, %v5046
    %v5183 = vadd.f32 %v5182, %v5048
    %v5184 = vadd.f32 %v5183, %v5050
    %v5185 = vadd.f32 %v5184, %v5052
    %v5186 = vadd.f32 %v5185, %v5054
    %v5187 = vrot.slane %v5186, 4
    %v5188 = vadd.f32 %v5186, %v5187
    %v5189 = vrot.slane %v5188, 2
    %v5190 = vadd.f32 %v5188, %v5189
    %v5191 = vrot.slane %v5190, 1
    %v5192 = vadd.f32 %v5190, %v5191
    %5194 = vrot.lane.b32.xlu0 %v5123, 64
    %v5195 = vpop.permute.xlu0 %5194
    %v5197 = vadd.f32 %v5123, %v5195
    %v5198 = vadd.f32 %v5197, %v5192
    %5200 = vrot.lane.b32.xlu0 %v5192, 64
    %v5201 = vpop.permute.xlu0 %5200
    %v5203 = vadd.f32 %v5198, %v5201
    %v5204 = vld [vmem:[#allocation16] sm:$0x1]
    %v5205 = vld [vmem:[#allocation17] sm:$0x1]
    %v5206 = vmul.f32 %v4926, 0.00048828125
    %v5207 = vmul.f32 %v5203, 0.00048828125
    %v5208 = vmul.f32 %v5206, %v5206
    %v5209 = vsub.f32 %v5207, %v5208
    %v5210 = vmax.f32 %v5209, 0.0
    %v5211 = vadd.f32 %v5210, 1e-05
    %v5212 = vrsqrt.pop %v5211
    %v5213 = vmul.f32 %v5204, %v5212
    %v5214 = vmul.f32 %v5206, %v5213
    %v5215 = vsub.f32 %v5205, %v5214
    %v5217 = vlaneseq
    %v5218 = vshrl.u32 %v5217, 7
    %v5219 = vsub.s32 0, %v5218
    %v5220 = vrot.slane %v5213, %v5219
    %5221 = vrot.lane.b32.xlu0 %v5220, 64
    %v5222 = vpop.permute.xlu0 %5221
    %v5224 = vsel %vm1009, %v5213, %v5222
    %v5225 = vlaneseq
    %v5226 = vshrl.u32 %v5225, 7
    %v5227 = vsub.s32 0, %v5226
    %v5228 = vrot.slane %v5224, %v5227
    %v5229 = vmul.f32 %v4460, %v5228
    %v5230 = vmul.f32 %v4462, %v5228
    %v5231 = vmul.f32 %v4464, %v5228
    %v5232 = vmul.f32 %v4466, %v5228
    %v5233 = vmul.f32 %v4470, %v5228
    %v5234 = vmul.f32 %v4472, %v5228
    %v5235 = vmul.f32 %v4474, %v5228
    %v5236 = vmul.f32 %v4476, %v5228
    %v5237 = vmul.f32 %v4480, %v5228
    %v5238 = vmul.f32 %v4482, %v5228
    %v5239 = vmul.f32 %v4484, %v5228
    %v5240 = vmul.f32 %v4486, %v5228
    %v5241 = vmul.f32 %v4490, %v5228
    %v5242 = vmul.f32 %v4492, %v5228
    %v5243 = vmul.f32 %v4494, %v5228
    %v5244 = vmul.f32 %v4496, %v5228
    %v5245 = vmul.f32 %v4500, %v5228
    %v5246 = vmul.f32 %v4502, %v5228
    %v5247 = vmul.f32 %v4504, %v5228
    %v5248 = vmul.f32 %v4506, %v5228
    %v5249 = vmul.f32 %v4510, %v5228
    %v5250 = vmul.f32 %v4512, %v5228
    %v5251 = vmul.f32 %v4514, %v5228
    %v5252 = vmul.f32 %v4516, %v5228
    %v5253 = vmul.f32 %v4520, %v5228
    %v5254 = vmul.f32 %v4522, %v5228
    %v5255 = vmul.f32 %v4524, %v5228
    %v5256 = vmul.f32 %v4526, %v5228
    %v5257 = vmul.f32 %v4530, %v5228
    %v5258 = vmul.f32 %v4532, %v5228
    %v5259 = vmul.f32 %v4534, %v5228
    %v5260 = vmul.f32 %v4536, %v5228
    %v5261 = vmul.f32 %v4540, %v5228
    %v5262 = vmul.f32 %v4542, %v5228
    %v5263 = vmul.f32 %v4544, %v5228
    %v5264 = vmul.f32 %v4546, %v5228
    %v5265 = vmul.f32 %v4550, %v5228
    %v5266 = vmul.f32 %v4552, %v5228
    %v5267 = vmul.f32 %v4554, %v5228
    %v5268 = vmul.f32 %v4556, %v5228
    %v5269 = vmul.f32 %v4560, %v5228
    %v5270 = vmul.f32 %v4562, %v5228
    %v5271 = vmul.f32 %v4564, %v5228
    %v5272 = vmul.f32 %v4566, %v5228
    %v5273 = vmul.f32 %v4570, %v5228
    %v5274 = vmul.f32 %v4572, %v5228
    %v5275 = vmul.f32 %v4574, %v5228
    %v5276 = vmul.f32 %v4576, %v5228
    %v5277 = vmul.f32 %v4580, %v5228
    %v5278 = vmul.f32 %v4582, %v5228
    %v5279 = vmul.f32 %v4584, %v5228
    %v5280 = vmul.f32 %v4586, %v5228
    %v5281 = vmul.f32 %v4590, %v5228
    %v5282 = vmul.f32 %v4592, %v5228
    %v5283 = vmul.f32 %v4594, %v5228
    %v5284 = vmul.f32 %v4596, %v5228
    %v5285 = vmul.f32 %v4600, %v5228
    %v5286 = vmul.f32 %v4602, %v5228
    %v5287 = vmul.f32 %v4604, %v5228
    %v5288 = vmul.f32 %v4606, %v5228
    %v5289 = vmul.f32 %v4610, %v5228
    %v5290 = vmul.f32 %v4612, %v5228
    %v5291 = vmul.f32 %v4614, %v5228
    %v5292 = vmul.f32 %v4616, %v5228
    %v5293 = vmul.f32 %v4620, %v5228
    %v5294 = vmul.f32 %v4622, %v5228
    %v5295 = vmul.f32 %v4624, %v5228
    %v5296 = vmul.f32 %v4626, %v5228
    %v5297 = vmul.f32 %v4630, %v5228
    %v5298 = vmul.f32 %v4632, %v5228
    %v5299 = vmul.f32 %v4634, %v5228
    %v5300 = vmul.f32 %v4636, %v5228
    %v5301 = vmul.f32 %v4640, %v5228
    %v5302 = vmul.f32 %v4642, %v5228
    %v5303 = vmul.f32 %v4644, %v5228
    %v5304 = vmul.f32 %v4646, %v5228
    %v5305 = vmul.f32 %v4650, %v5228
    %v5306 = vmul.f32 %v4652, %v5228
    %v5307 = vmul.f32 %v4654, %v5228
    %v5308 = vmul.f32 %v4656, %v5228
    %v5309 = vmul.f32 %v4660, %v5228
    %v5310 = vmul.f32 %v4662, %v5228
    %v5311 = vmul.f32 %v4664, %v5228
    %v5312 = vmul.f32 %v4666, %v5228
    %v5313 = vmul.f32 %v4670, %v5228
    %v5314 = vmul.f32 %v4672, %v5228
    %v5315 = vmul.f32 %v4674, %v5228
    %v5316 = vmul.f32 %v4676, %v5228
    %v5317 = vmul.f32 %v4680, %v5228
    %v5318 = vmul.f32 %v4682, %v5228
    %v5319 = vmul.f32 %v4684, %v5228
    %v5320 = vmul.f32 %v4686, %v5228
    %v5321 = vmul.f32 %v4690, %v5228
    %v5322 = vmul.f32 %v4692, %v5228
    %v5323 = vmul.f32 %v4694, %v5228
    %v5324 = vmul.f32 %v4696, %v5228
    %v5325 = vmul.f32 %v4700, %v5228
    %v5326 = vmul.f32 %v4702, %v5228
    %v5327 = vmul.f32 %v4704, %v5228
    %v5328 = vmul.f32 %v4706, %v5228
    %v5329 = vmul.f32 %v4710, %v5228
    %v5330 = vmul.f32 %v4712, %v5228
    %v5331 = vmul.f32 %v4714, %v5228
    %v5332 = vmul.f32 %v4716, %v5228
    %v5333 = vmul.f32 %v4720, %v5228
    %v5334 = vmul.f32 %v4722, %v5228
    %v5335 = vmul.f32 %v4724, %v5228
    %v5336 = vmul.f32 %v4726, %v5228
    %v5337 = vmul.f32 %v4730, %v5228
    %v5338 = vmul.f32 %v4732, %v5228
    %v5339 = vmul.f32 %v4734, %v5228
    %v5340 = vmul.f32 %v4736, %v5228
    %v5341 = vmul.f32 %v4740, %v5228
    %v5342 = vmul.f32 %v4742, %v5228
    %v5343 = vmul.f32 %v4744, %v5228
    %v5344 = vmul.f32 %v4746, %v5228
    %v5345 = vmul.f32 %v4750, %v5228
    %v5346 = vmul.f32 %v4752, %v5228
    %v5347 = vmul.f32 %v4754, %v5228
    %v5348 = vmul.f32 %v4756, %v5228
    %v5349 = vmul.f32 %v4760, %v5228
    %v5350 = vmul.f32 %v4762, %v5228
    %v5351 = vmul.f32 %v4764, %v5228
    %v5352 = vmul.f32 %v4766, %v5228
    %v5353 = vmul.f32 %v4770, %v5228
    %v5354 = vmul.f32 %v4772, %v5228
    %v5355 = vmul.f32 %v4774, %v5228
    %v5356 = vmul.f32 %v4776, %v5228
    %v5358 = vlaneseq
    %v5359 = vshrl.u32 %v5358, 7
    %v5360 = vsub.s32 0, %v5359
    %v5361 = vrot.slane %v5215, %v5360
    %5362 = vrot.lane.b32.xlu0 %v5361, 64
    %v5363 = vpop.permute.xlu0 %5362
    %v5365 = vsel %vm1009, %v5215, %v5363
    %v5366 = vlaneseq
    %v5367 = vshrl.u32 %v5366, 7
    %v5368 = vsub.s32 0, %v5367
    %v5369 = vrot.slane %v5365, %v5368
    %v5370 = vadd.f32 %v5229, %v5369
    %v5371 = vadd.f32 %v5230, %v5369
    %v5372 = vadd.f32 %v5231, %v5369
    %v5373 = vadd.f32 %v5232, %v5369
    %v5374 = vadd.f32 %v5233, %v5369
    %v5375 = vadd.f32 %v5234, %v5369
    %v5376 = vadd.f32 %v5235, %v5369
    %v5377 = vadd.f32 %v5236, %v5369
    %v5378 = vadd.f32 %v5237, %v5369
    %v5379 = vadd.f32 %v5238, %v5369
    %v5380 = vadd.f32 %v5239, %v5369
    %v5381 = vadd.f32 %v5240, %v5369
    %v5382 = vadd.f32 %v5241, %v5369
    %v5383 = vadd.f32 %v5242, %v5369
    %v5384 = vadd.f32 %v5243, %v5369
    %v5385 = vadd.f32 %v5244, %v5369
    %v5386 = vadd.f32 %v5245, %v5369
    %v5387 = vadd.f32 %v5246, %v5369
    %v5388 = vadd.f32 %v5247, %v5369
    %v5389 = vadd.f32 %v5248, %v5369
    %v5390 = vadd.f32 %v5249, %v5369
    %v5391 = vadd.f32 %v5250, %v5369
    %v5392 = vadd.f32 %v5251, %v5369
    %v5393 = vadd.f32 %v5252, %v5369
    %v5394 = vadd.f32 %v5253, %v5369
    %v5395 = vadd.f32 %v5254, %v5369
    %v5396 = vadd.f32 %v5255, %v5369
    %v5397 = vadd.f32 %v5256, %v5369
    %v5398 = vadd.f32 %v5257, %v5369
    %v5399 = vadd.f32 %v5258, %v5369
    %v5400 = vadd.f32 %v5259, %v5369
    %v5401 = vadd.f32 %v5260, %v5369
    %v5402 = vadd.f32 %v5261, %v5369
    %v5403 = vadd.f32 %v5262, %v5369
    %v5404 = vadd.f32 %v5263, %v5369
    %v5405 = vadd.f32 %v5264, %v5369
    %v5406 = vadd.f32 %v5265, %v5369
    %v5407 = vadd.f32 %v5266, %v5369
    %v5408 = vadd.f32 %v5267, %v5369
    %v5409 = vadd.f32 %v5268, %v5369
    %v5410 = vadd.f32 %v5269, %v5369
    %v5411 = vadd.f32 %v5270, %v5369
    %v5412 = vadd.f32 %v5271, %v5369
    %v5413 = vadd.f32 %v5272, %v5369
    %v5414 = vadd.f32 %v5273, %v5369
    %v5415 = vadd.f32 %v5274, %v5369
    %v5416 = vadd.f32 %v5275, %v5369
    %v5417 = vadd.f32 %v5276, %v5369
    %v5418 = vadd.f32 %v5277, %v5369
    %v5419 = vadd.f32 %v5278, %v5369
    %v5420 = vadd.f32 %v5279, %v5369
    %v5421 = vadd.f32 %v5280, %v5369
    %v5422 = vadd.f32 %v5281, %v5369
    %v5423 = vadd.f32 %v5282, %v5369
    %v5424 = vadd.f32 %v5283, %v5369
    %v5425 = vadd.f32 %v5284, %v5369
    %v5426 = vadd.f32 %v5285, %v5369
    %v5427 = vadd.f32 %v5286, %v5369
    %v5428 = vadd.f32 %v5287, %v5369
    %v5429 = vadd.f32 %v5288, %v5369
    %v5430 = vadd.f32 %v5289, %v5369
    %v5431 = vadd.f32 %v5290, %v5369
    %v5432 = vadd.f32 %v5291, %v5369
    %v5433 = vadd.f32 %v5292, %v5369
    %v5434 = vadd.f32 %v5293, %v5369
    %v5435 = vadd.f32 %v5294, %v5369
    %v5436 = vadd.f32 %v5295, %v5369
    %v5437 = vadd.f32 %v5296, %v5369
    %v5438 = vadd.f32 %v5297, %v5369
    %v5439 = vadd.f32 %v5298, %v5369
    %v5440 = vadd.f32 %v5299, %v5369
    %v5441 = vadd.f32 %v5300, %v5369
    %v5442 = vadd.f32 %v5301, %v5369
    %v5443 = vadd.f32 %v5302, %v5369
    %v5444 = vadd.f32 %v5303, %v5369
    %v5445 = vadd.f32 %v5304, %v5369
    %v5446 = vadd.f32 %v5305, %v5369
    %v5447 = vadd.f32 %v5306, %v5369
    %v5448 = vadd.f32 %v5307, %v5369
    %v5449 = vadd.f32 %v5308, %v5369
    %v5450 = vadd.f32 %v5309, %v5369
    %v5451 = vadd.f32 %v5310, %v5369
    %v5452 = vadd.f32 %v5311, %v5369
    %v5453 = vadd.f32 %v5312, %v5369
    %v5454 = vadd.f32 %v5313, %v5369
    %v5455 = vadd.f32 %v5314, %v5369
    %v5456 = vadd.f32 %v5315, %v5369
    %v5457 = vadd.f32 %v5316, %v5369
    %v5458 = vadd.f32 %v5317, %v5369
    %v5459 = vadd.f32 %v5318, %v5369
    %v5460 = vadd.f32 %v5319, %v5369
    %v5461 = vadd.f32 %v5320, %v5369
    %v5462 = vadd.f32 %v5321, %v5369
    %v5463 = vadd.f32 %v5322, %v5369
    %v5464 = vadd.f32 %v5323, %v5369
    %v5465 = vadd.f32 %v5324, %v5369
    %v5466 = vadd.f32 %v5325, %v5369
    %v5467 = vadd.f32 %v5326, %v5369
    %v5468 = vadd.f32 %v5327, %v5369
    %v5469 = vadd.f32 %v5328, %v5369
    %v5470 = vadd.f32 %v5329, %v5369
    %v5471 = vadd.f32 %v5330, %v5369
    %v5472 = vadd.f32 %v5331, %v5369
    %v5473 = vadd.f32 %v5332, %v5369
    %v5474 = vadd.f32 %v5333, %v5369
    %v5475 = vadd.f32 %v5334, %v5369
    %v5476 = vadd.f32 %v5335, %v5369
    %v5477 = vadd.f32 %v5336, %v5369
    %v5478 = vadd.f32 %v5337, %v5369
    %v5479 = vadd.f32 %v5338, %v5369
    %v5480 = vadd.f32 %v5339, %v5369
    %v5481 = vadd.f32 %v5340, %v5369
    %v5482 = vadd.f32 %v5341, %v5369
    %v5483 = vadd.f32 %v5342, %v5369
    %v5484 = vadd.f32 %v5343, %v5369
    %v5485 = vadd.f32 %v5344, %v5369
    %v5486 = vadd.f32 %v5345, %v5369
    %v5487 = vadd.f32 %v5346, %v5369
    %v5488 = vadd.f32 %v5347, %v5369
    %v5489 = vadd.f32 %v5348, %v5369
    %v5490 = vadd.f32 %v5349, %v5369
    %v5491 = vadd.f32 %v5350, %v5369
    %v5492 = vadd.f32 %v5351, %v5369
    %v5493 = vadd.f32 %v5352, %v5369
    %v5494 = vadd.f32 %v5353, %v5369
    %v5495 = vadd.f32 %v5354, %v5369
    %v5496 = vadd.f32 %v5355, %v5369
    %v5497 = vadd.f32 %v5356, %v5369
    %v5498 = vmax.f32 %v5370, 0.0
    %v5499 = vmax.f32 %v5371, 0.0
    %v5500 = vmax.f32 %v5372, 0.0
    %v5501 = vmax.f32 %v5373, 0.0
    %v5502 = vmax.f32 %v5374, 0.0
    %v5503 = vmax.f32 %v5375, 0.0
    %v5504 = vmax.f32 %v5376, 0.0
    %v5505 = vmax.f32 %v5377, 0.0
    %v5506 = vmax.f32 %v5378, 0.0
    %v5507 = vmax.f32 %v5379, 0.0
    %v5508 = vmax.f32 %v5380, 0.0
    %v5509 = vmax.f32 %v5381, 0.0
    %v5510 = vmax.f32 %v5382, 0.0
    %v5511 = vmax.f32 %v5383, 0.0
    %v5512 = vmax.f32 %v5384, 0.0
    %v5513 = vmax.f32 %v5385, 0.0
    %v5514 = vmax.f32 %v5386, 0.0
    %v5515 = vmax.f32 %v5387, 0.0
    %v5516 = vmax.f32 %v5388, 0.0
    %v5517 = vmax.f32 %v5389, 0.0
    %v5518 = vmax.f32 %v5390, 0.0
    %v5519 = vmax.f32 %v5391, 0.0
    %v5520 = vmax.f32 %v5392, 0.0
    %v5521 = vmax.f32 %v5393, 0.0
    %v5522 = vmax.f32 %v5394, 0.0
    %v5523 = vmax.f32 %v5395, 0.0
    %v5524 = vmax.f32 %v5396, 0.0
    %v5525 = vmax.f32 %v5397, 0.0
    %v5526 = vmax.f32 %v5398, 0.0
    %v5527 = vmax.f32 %v5399, 0.0
    %v5528 = vmax.f32 %v5400, 0.0
    %v5529 = vmax.f32 %v5401, 0.0
    %v5530 = vmax.f32 %v5402, 0.0
    %v5531 = vmax.f32 %v5403, 0.0
    %v5532 = vmax.f32 %v5404, 0.0
    %v5533 = vmax.f32 %v5405, 0.0
    %v5534 = vmax.f32 %v5406, 0.0
    %v5535 = vmax.f32 %v5407, 0.0
    %v5536 = vmax.f32 %v5408, 0.0
    %v5537 = vmax.f32 %v5409, 0.0
    %v5538 = vmax.f32 %v5410, 0.0
    %v5539 = vmax.f32 %v5411, 0.0
    %v5540 = vmax.f32 %v5412, 0.0
    %v5541 = vmax.f32 %v5413, 0.0
    %v5542 = vmax.f32 %v5414, 0.0
    %v5543 = vmax.f32 %v5415, 0.0
    %v5544 = vmax.f32 %v5416, 0.0
    %v5545 = vmax.f32 %v5417, 0.0
    %v5546 = vmax.f32 %v5418, 0.0
    %v5547 = vmax.f32 %v5419, 0.0
    %v5548 = vmax.f32 %v5420, 0.0
    %v5549 = vmax.f32 %v5421, 0.0
    %v5550 = vmax.f32 %v5422, 0.0
    %v5551 = vmax.f32 %v5423, 0.0
    %v5552 = vmax.f32 %v5424, 0.0
    %v5553 = vmax.f32 %v5425, 0.0
    %v5554 = vmax.f32 %v5426, 0.0
    %v5555 = vmax.f32 %v5427, 0.0
    %v5556 = vmax.f32 %v5428, 0.0
    %v5557 = vmax.f32 %v5429, 0.0
    %v5558 = vmax.f32 %v5430, 0.0
    %v5559 = vmax.f32 %v5431, 0.0
    %v5560 = vmax.f32 %v5432, 0.0
    %v5561 = vmax.f32 %v5433, 0.0
    %v5562 = vmax.f32 %v5434, 0.0
    %v5563 = vmax.f32 %v5435, 0.0
    %v5564 = vmax.f32 %v5436, 0.0
    %v5565 = vmax.f32 %v5437, 0.0
    %v5566 = vmax.f32 %v5438, 0.0
    %v5567 = vmax.f32 %v5439, 0.0
    %v5568 = vmax.f32 %v5440, 0.0
    %v5569 = vmax.f32 %v5441, 0.0
    %v5570 = vmax.f32 %v5442, 0.0
    %v5571 = vmax.f32 %v5443, 0.0
    %v5572 = vmax.f32 %v5444, 0.0
    %v5573 = vmax.f32 %v5445, 0.0
    %v5574 = vmax.f32 %v5446, 0.0
    %v5575 = vmax.f32 %v5447, 0.0
    %v5576 = vmax.f32 %v5448, 0.0
    %v5577 = vmax.f32 %v5449, 0.0
    %v5578 = vmax.f32 %v5450, 0.0
    %v5579 = vmax.f32 %v5451, 0.0
    %v5580 = vmax.f32 %v5452, 0.0
    %v5581 = vmax.f32 %v5453, 0.0
    %v5582 = vmax.f32 %v5454, 0.0
    %v5583 = vmax.f32 %v5455, 0.0
    %v5584 = vmax.f32 %v5456, 0.0
    %v5585 = vmax.f32 %v5457, 0.0
    %v5586 = vmax.f32 %v5458, 0.0
    %v5587 = vmax.f32 %v5459, 0.0
    %v5588 = vmax.f32 %v5460, 0.0
    %v5589 = vmax.f32 %v5461, 0.0
    %v5590 = vmax.f32 %v5462, 0.0
    %v5591 = vmax.f32 %v5463, 0.0
    %v5592 = vmax.f32 %v5464, 0.0
    %v5593 = vmax.f32 %v5465, 0.0
    %v5594 = vmax.f32 %v5466, 0.0
    %v5595 = vmax.f32 %v5467, 0.0
    %v5596 = vmax.f32 %v5468, 0.0
    %v5597 = vmax.f32 %v5469, 0.0
    %v5598 = vmax.f32 %v5470, 0.0
    %v5599 = vmax.f32 %v5471, 0.0
    %v5600 = vmax.f32 %v5472, 0.0
    %v5601 = vmax.f32 %v5473, 0.0
    %v5602 = vmax.f32 %v5474, 0.0
    %v5603 = vmax.f32 %v5475, 0.0
    %v5604 = vmax.f32 %v5476, 0.0
    %v5605 = vmax.f32 %v5477, 0.0
    %v5606 = vmax.f32 %v5478, 0.0
    %v5607 = vmax.f32 %v5479, 0.0
    %v5608 = vmax.f32 %v5480, 0.0
    %v5609 = vmax.f32 %v5481, 0.0
    %v5610 = vmax.f32 %v5482, 0.0
    %v5611 = vmax.f32 %v5483, 0.0
    %v5612 = vmax.f32 %v5484, 0.0
    %v5613 = vmax.f32 %v5485, 0.0
    %v5614 = vmax.f32 %v5486, 0.0
    %v5615 = vmax.f32 %v5487, 0.0
    %v5616 = vmax.f32 %v5488, 0.0
    %v5617 = vmax.f32 %v5489, 0.0
    %v5618 = vmax.f32 %v5490, 0.0
    %v5619 = vmax.f32 %v5491, 0.0
    %v5620 = vmax.f32 %v5492, 0.0
    %v5621 = vmax.f32 %v5493, 0.0
    %v5622 = vmax.f32 %v5494, 0.0
    %v5623 = vmax.f32 %v5495, 0.0
    %v5624 = vmax.f32 %v5496, 0.0
    %v5625 = vmax.f32 %v5497, 0.0
    %v5626 = vpack.c.bf16 %v5500, %v5498
    %v5627 = vpack.c.bf16 %v5501, %v5499
    %v5628 = vpack.c.bf16 %v5504, %v5502
    %v5629 = vpack.c.bf16 %v5505, %v5503
    %v5630 = vpack.c.bf16 %v5508, %v5506
    %v5631 = vpack.c.bf16 %v5509, %v5507
    %v5632 = vpack.c.bf16 %v5512, %v5510
    %v5633 = vpack.c.bf16 %v5513, %v5511
    %v5634 = vpack.c.bf16 %v5516, %v5514
    %v5635 = vpack.c.bf16 %v5517, %v5515
    %v5636 = vpack.c.bf16 %v5520, %v5518
    %v5637 = vpack.c.bf16 %v5521, %v5519
    %v5638 = vpack.c.bf16 %v5524, %v5522
    %v5639 = vpack.c.bf16 %v5525, %v5523
    %v5640 = vpack.c.bf16 %v5528, %v5526
    %v5641 = vpack.c.bf16 %v5529, %v5527
    %v5642 = vpack.c.bf16 %v5532, %v5530
    %v5643 = vpack.c.bf16 %v5533, %v5531
    %v5644 = vpack.c.bf16 %v5536, %v5534
    %v5645 = vpack.c.bf16 %v5537, %v5535
    %v5646 = vpack.c.bf16 %v5540, %v5538
    %v5647 = vpack.c.bf16 %v5541, %v5539
    %v5648 = vpack.c.bf16 %v5544, %v5542
    %v5649 = vpack.c.bf16 %v5545, %v5543
    %v5650 = vpack.c.bf16 %v5548, %v5546
    %v5651 = vpack.c.bf16 %v5549, %v5547
    %v5652 = vpack.c.bf16 %v5552, %v5550
    %v5653 = vpack.c.bf16 %v5553, %v5551
    %v5654 = vpack.c.bf16 %v5556, %v5554
    %v5655 = vpack.c.bf16 %v5557, %v5555
    %v5656 = vpack.c.bf16 %v5560, %v5558
    %v5657 = vpack.c.bf16 %v5561, %v5559
    %v5658 = vpack.c.bf16 %v5564, %v5562
    %v5659 = vpack.c.bf16 %v5565, %v5563
    %v5660 = vpack.c.bf16 %v5568, %v5566
    %v5661 = vpack.c.bf16 %v5569, %v5567
    %v5662 = vpack.c.bf16 %v5572, %v5570
    %v5663 = vpack.c.bf16 %v5573, %v5571
    %v5664 = vpack.c.bf16 %v5576, %v5574
    %v5665 = vpack.c.bf16 %v5577, %v5575
    %v5666 = vpack.c.bf16 %v5580, %v5578
    %v5667 = vpack.c.bf16 %v5581, %v5579
    %v5668 = vpack.c.bf16 %v5584, %v5582
    %v5669 = vpack.c.bf16 %v5585, %v5583
    %v5670 = vpack.c.bf16 %v5588, %v5586
    %v5671 = vpack.c.bf16 %v5589, %v5587
    %v5672 = vpack.c.bf16 %v5592, %v5590
    %v5673 = vpack.c.bf16 %v5593, %v5591
    %v5674 = vpack.c.bf16 %v5596, %v5594
    %v5675 = vpack.c.bf16 %v5597, %v5595
    %v5676 = vpack.c.bf16 %v5600, %v5598
    %v5677 = vpack.c.bf16 %v5601, %v5599
    %v5678 = vpack.c.bf16 %v5604, %v5602
    %v5679 = vpack.c.bf16 %v5605, %v5603
    %v5680 = vpack.c.bf16 %v5608, %v5606
    %v5681 = vpack.c.bf16 %v5609, %v5607
    %v5682 = vpack.c.bf16 %v5612, %v5610
    %v5683 = vpack.c.bf16 %v5613, %v5611
    %v5684 = vpack.c.bf16 %v5616, %v5614
    %v5685 = vpack.c.bf16 %v5617, %v5615
    %v5686 = vpack.c.bf16 %v5620, %v5618
    %v5687 = vpack.c.bf16 %v5621, %v5619
    %v5688 = vpack.c.bf16 %v5624, %v5622
    %v5689 = vpack.c.bf16 %v5625, %v5623
    %s5690 = smul.u32 %s3245, 1
    %s5691 = sshll.u32 %s5690, 4
    %5692 = dma.done %s165, %s5691
    %v5693 = vld [vmem:[#allocation4] sm:$0xf]
    %v5694 = vld [vmem:[#allocation4 + $0x4] sm:$0xf]
    %v5695 = vld [vmem:[#allocation4 + $0x8] sm:$0xf]
    %v5696 = vld [vmem:[#allocation4 + $0xc] sm:$0xf]
    %v5697 = vld [vmem:[#allocation4 + $0x10] sm:$0xf]
    %v5698 = vld [vmem:[#allocation4 + $0x14] sm:$0xf]
    %v5699 = vld [vmem:[#allocation4 + $0x18] sm:$0xf]
    %v5700 = vld [vmem:[#allocation4 + $0x1c] sm:$0xf]
    %v5701 = vld [vmem:[#allocation4 + $0x20] sm:$0xf]
    %v5702 = vld [vmem:[#allocation4 + $0x24] sm:$0xf]
    %v5703 = vld [vmem:[#allocation4 + $0x28] sm:$0xf]
    %v5704 = vld [vmem:[#allocation4 + $0x2c] sm:$0xf]
    %v5705 = vld [vmem:[#allocation4 + $0x30] sm:$0xf]
    %v5706 = vld [vmem:[#allocation4 + $0x34] sm:$0xf]
    %v5707 = vld [vmem:[#allocation4 + $0x38] sm:$0xf]
    %v5708 = vld [vmem:[#allocation4 + $0x3c] sm:$0xf]
    %v5709 = vld [vmem:[#allocation4 + $0x40] sm:$0xf]
    %v5710 = vld [vmem:[#allocation4 + $0x44] sm:$0xf]
    %v5711 = vld [vmem:[#allocation4 + $0x48] sm:$0xf]
    %v5712 = vld [vmem:[#allocation4 + $0x4c] sm:$0xf]
    %v5713 = vld [vmem:[#allocation4 + $0x50] sm:$0xf]
    %v5714 = vld [vmem:[#allocation4 + $0x54] sm:$0xf]
    %v5715 = vld [vmem:[#allocation4 + $0x58] sm:$0xf]
    %v5716 = vld [vmem:[#allocation4 + $0x5c] sm:$0xf]
    %v5717 = vld [vmem:[#allocation4 + $0x60] sm:$0xf]
    %v5718 = vld [vmem:[#allocation4 + $0x64] sm:$0xf]
    %v5719 = vld [vmem:[#allocation4 + $0x68] sm:$0xf]
    %v5720 = vld [vmem:[#allocation4 + $0x6c] sm:$0xf]
    %v5721 = vld [vmem:[#allocation4 + $0x70] sm:$0xf]
    %v5722 = vld [vmem:[#allocation4 + $0x74] sm:$0xf]
    %v5723 = vld [vmem:[#allocation4 + $0x78] sm:$0xf]
    %v5724 = vld [vmem:[#allocation4 + $0x7c] sm:$0xf]
    %v5725 = vld [vmem:[#allocation19] sm:$0x1]
    %v5727 = vlaneseq
    %v5728 = vshrl.u32 %v5727, 7
    %v5729 = vsub.s32 0, %v5728
    %v5730 = vrot.slane %v5725, %v5729
    %v5764 = vunpack.c.l.b16 %v5693
    %v5765 = vunpack.c.l.b16 %v5694
    %v5766 = vunpack.c.l.b16 %v5695
    %v5767 = vunpack.c.l.b16 %v5696
    %v5768 = vunpack.c.l.b16 %v5697
    %v5769 = vunpack.c.l.b16 %v5698
    %v5770 = vunpack.c.l.b16 %v5699
    %v5771 = vunpack.c.l.b16 %v5700
    %v5772 = vunpack.c.l.b16 %v5701
    %v5773 = vunpack.c.l.b16 %v5702
    %v5774 = vunpack.c.l.b16 %v5703
    %v5775 = vunpack.c.l.b16 %v5704
    %v5776 = vunpack.c.l.b16 %v5705
    %v5777 = vunpack.c.l.b16 %v5706
    %v5778 = vunpack.c.l.b16 %v5707
    %v5779 = vunpack.c.l.b16 %v5708
    %v5780 = vunpack.c.l.b16 %v5709
    %v5781 = vunpack.c.l.b16 %v5710
    %v5782 = vunpack.c.l.b16 %v5711
    %v5783 = vunpack.c.l.b16 %v5712
    %v5784 = vunpack.c.l.b16 %v5713
    %v5785 = vunpack.c.l.b16 %v5714
    %v5786 = vunpack.c.l.b16 %v5715
    %v5787 = vunpack.c.l.b16 %v5716
    %v5788 = vunpack.c.l.b16 %v5717
    %v5789 = vunpack.c.l.b16 %v5718
    %v5790 = vunpack.c.l.b16 %v5719
    %v5791 = vunpack.c.l.b16 %v5720
    %v5792 = vunpack.c.l.b16 %v5721
    %v5793 = vunpack.c.l.b16 %v5722
    %v5794 = vunpack.c.l.b16 %v5723
    %v5795 = vunpack.c.l.b16 %v5724
    %v5796 = vpack.c.b16 %v5765, %v5764
    %v5797 = vpack.c.b16 %v5767, %v5766
    %v5798 = vpack.c.b16 %v5769, %v5768
    %v5799 = vpack.c.b16 %v5771, %v5770
    %v5800 = vpack.c.b16 %v5773, %v5772
    %v5801 = vpack.c.b16 %v5775, %v5774
    %v5802 = vpack.c.b16 %v5777, %v5776
    %v5803 = vpack.c.b16 %v5779, %v5778
    %v5804 = vpack.c.b16 %v5781, %v5780
    %v5805 = vpack.c.b16 %v5783, %v5782
    %v5806 = vpack.c.b16 %v5785, %v5784
    %v5807 = vpack.c.b16 %v5787, %v5786
    %v5808 = vpack.c.b16 %v5789, %v5788
    %v5809 = vpack.c.b16 %v5791, %v5790
    %v5810 = vpack.c.b16 %v5793, %v5792
    %v5811 = vpack.c.b16 %v5795, %v5794
    %5828 = vmatprep.subr.bf16.mxu0 0
    %5829 = vmatpush1.bf16.msra.mxu0 %v5803
    %5830 = vmatprep.subr.bf16.mxu0 0
    %5831 = vmatpush1.bf16.msra.mxu0 %v5802
    %5832 = vmatprep.subr.bf16.mxu0 0
    %5833 = vmatpush1.bf16.msra.mxu0 %v5801
    %5834 = vmatprep.subr.bf16.mxu0 0
    %5835 = vmatpush1.bf16.msra.mxu0 %v5800
    %5836 = vmatprep.subr.bf16.mxu0 0
    %5837 = vmatpush1.bf16.msra.mxu0 %v5799
    %5838 = vmatprep.subr.bf16.mxu0 0
    %5839 = vmatpush1.bf16.msra.mxu0 %v5798
    %5840 = vmatprep.subr.bf16.mxu0 0
    %5841 = vmatpush1.bf16.msra.mxu0 %v5797
    %5842 = vmatprep.subr.bf16.mxu0 0
    %5843 = vmatpush1.bf16.msra.mxu0 %v5796
    %5844 = vmatprep.subr.bf16.mxu0 0
    %5845 = vmatpush2.bf16.msra.mxu0 %v5811
    %5846 = vmatprep.subr.bf16.mxu0 0
    %5847 = vmatpush2.bf16.msra.mxu0 %v5810
    %5848 = vmatprep.subr.bf16.mxu0 0
    %5849 = vmatpush2.bf16.msra.mxu0 %v5809
    %5850 = vmatprep.subr.bf16.mxu0 0
    %5851 = vmatpush2.bf16.msra.mxu0 %v5808
    %5852 = vmatprep.subr.bf16.mxu0 0
    %5853 = vmatpush2.bf16.msra.mxu0 %v5807
    %5854 = vmatprep.subr.bf16.mxu0 0
    %5855 = vmatpush2.bf16.msra.mxu0 %v5806
    %5856 = vmatprep.subr.bf16.mxu0 0
    %5857 = vmatpush2.bf16.msra.mxu0 %v5805
    %5858 = vmatprep.subr.bf16.mxu0 0
    %5859 = vmatpush2.bf16.msra.mxu0 %v5804
    %5860 = vmatprep.mubr.bf16.mxu0 %v5627
    %5861 = vmatmul.mubr.bf16.gmra.mxu0 %v5626
    %v5862 = vpop.f32.mrf.mxu0
    %v5863 = vadd.f32 %v5730, %v5862
    %v5864 = vpop.f32.mrf.mxu0
    %v5865 = vpop.f32.mrf.mxu0
    %v5866 = vadd.f32 %v5730, %v5865
    %v5867 = vpop.f32.mrf.mxu0
    %5868 = vmatprep.mubr.bf16.mxu0 %v5629
    %5869 = vmatmul.mubr.bf16.gmra.mxu0 %v5628
    %v5870 = vpop.f32.mrf.mxu0
    %v5871 = vadd.f32 %v5730, %v5870
    %v5872 = vpop.f32.mrf.mxu0
    %v5873 = vpop.f32.mrf.mxu0
    %v5874 = vadd.f32 %v5730, %v5873
    %v5875 = vpop.f32.mrf.mxu0
    %5876 = vmatprep.mubr.bf16.mxu0 %v5631
    %5877 = vmatmul.mubr.bf16.gmra.mxu0 %v5630
    %v5878 = vpop.f32.mrf.mxu0
    %v5879 = vadd.f32 %v5730, %v5878
    %v5880 = vpop.f32.mrf.mxu0
    %v5881 = vpop.f32.mrf.mxu0
    %v5882 = vadd.f32 %v5730, %v5881
    %v5883 = vpop.f32.mrf.mxu0
    %5884 = vmatprep.mubr.bf16.mxu0 %v5633
    %5885 = vmatmul.mubr.bf16.gmra.mxu0 %v5632
    %v5886 = vpop.f32.mrf.mxu0
    %v5887 = vadd.f32 %v5730, %v5886
    %v5888 = vpop.f32.mrf.mxu0
    %v5889 = vpop.f32.mrf.mxu0
    %v5890 = vadd.f32 %v5730, %v5889
    %v5891 = vpop.f32.mrf.mxu0
    %5892 = vmatprep.mubr.bf16.mxu0 %v5635
    %5893 = vmatmul.mubr.bf16.gmra.mxu0 %v5634
    %v5894 = vpop.f32.mrf.mxu0
    %v5895 = vadd.f32 %v5730, %v5894
    %v5896 = vpop.f32.mrf.mxu0
    %v5897 = vpop.f32.mrf.mxu0
    %v5898 = vadd.f32 %v5730, %v5897
    %v5899 = vpop.f32.mrf.mxu0
    %5900 = vmatprep.mubr.bf16.mxu0 %v5637
    %5901 = vmatmul.mubr.bf16.gmra.mxu0 %v5636
    %v5902 = vpop.f32.mrf.mxu0
    %v5903 = vadd.f32 %v5730, %v5902
    %v5904 = vpop.f32.mrf.mxu0
    %v5905 = vpop.f32.mrf.mxu0
    %v5906 = vadd.f32 %v5730, %v5905
    %v5907 = vpop.f32.mrf.mxu0
    %5908 = vmatprep.mubr.bf16.mxu0 %v5639
    %5909 = vmatmul.mubr.bf16.gmra.mxu0 %v5638
    %v5910 = vpop.f32.mrf.mxu0
    %v5911 = vadd.f32 %v5730, %v5910
    %v5912 = vpop.f32.mrf.mxu0
    %v5913 = vpop.f32.mrf.mxu0
    %v5914 = vadd.f32 %v5730, %v5913
    %v5915 = vpop.f32.mrf.mxu0
    %5916 = vmatprep.mubr.bf16.mxu0 %v5641
    %5917 = vmatmul.mubr.bf16.gmra.mxu0 %v5640
    %v5918 = vpop.f32.mrf.mxu0
    %v5919 = vadd.f32 %v5730, %v5918
    %v5920 = vpop.f32.mrf.mxu0
    %v5921 = vpop.f32.mrf.mxu0
    %v5922 = vadd.f32 %v5730, %v5921
    %v5923 = vpop.f32.mrf.mxu0
    %5924 = vmatprep.mubr.bf16.mxu0 %v5643
    %5925 = vmatmul.mubr.bf16.gmra.mxu0 %v5642
    %v5926 = vpop.f32.mrf.mxu0
    %v5927 = vadd.f32 %v5730, %v5926
    %v5928 = vpop.f32.mrf.mxu0
    %v5929 = vpop.f32.mrf.mxu0
    %v5930 = vadd.f32 %v5730, %v5929
    %v5931 = vpop.f32.mrf.mxu0
    %5932 = vmatprep.mubr.bf16.mxu0 %v5645
    %5933 = vmatmul.mubr.bf16.gmra.mxu0 %v5644
    %v5934 = vpop.f32.mrf.mxu0
    %v5935 = vadd.f32 %v5730, %v5934
    %v5936 = vpop.f32.mrf.mxu0
    %v5937 = vpop.f32.mrf.mxu0
    %v5938 = vadd.f32 %v5730, %v5937
    %v5939 = vpop.f32.mrf.mxu0
    %5940 = vmatprep.mubr.bf16.mxu0 %v5647
    %5941 = vmatmul.mubr.bf16.gmra.mxu0 %v5646
    %v5942 = vpop.f32.mrf.mxu0
    %v5943 = vadd.f32 %v5730, %v5942
    %v5944 = vpop.f32.mrf.mxu0
    %v5945 = vpop.f32.mrf.mxu0
    %v5946 = vadd.f32 %v5730, %v5945
    %v5947 = vpop.f32.mrf.mxu0
    %5948 = vmatprep.mubr.bf16.mxu0 %v5649
    %5949 = vmatmul.mubr.bf16.gmra.mxu0 %v5648
    %v5950 = vpop.f32.mrf.mxu0
    %v5951 = vadd.f32 %v5730, %v5950
    %v5952 = vpop.f32.mrf.mxu0
    %v5953 = vpop.f32.mrf.mxu0
    %v5954 = vadd.f32 %v5730, %v5953
    %v5955 = vpop.f32.mrf.mxu0
    %5956 = vmatprep.mubr.bf16.mxu0 %v5651
    %5957 = vmatmul.mubr.bf16.gmra.mxu0 %v5650
    %v5958 = vpop.f32.mrf.mxu0
    %v5959 = vadd.f32 %v5730, %v5958
    %v5960 = vpop.f32.mrf.mxu0
    %v5961 = vpop.f32.mrf.mxu0
    %v5962 = vadd.f32 %v5730, %v5961
    %v5963 = vpop.f32.mrf.mxu0
    %5964 = vmatprep.mubr.bf16.mxu0 %v5653
    %5965 = vmatmul.mubr.bf16.gmra.mxu0 %v5652
    %v5966 = vpop.f32.mrf.mxu0
    %v5967 = vadd.f32 %v5730, %v5966
    %v5968 = vpop.f32.mrf.mxu0
    %v5969 = vpop.f32.mrf.mxu0
    %v5970 = vadd.f32 %v5730, %v5969
    %v5971 = vpop.f32.mrf.mxu0
    %5972 = vmatprep.mubr.bf16.mxu0 %v5655
    %5973 = vmatmul.mubr.bf16.gmra.mxu0 %v5654
    %v5974 = vpop.f32.mrf.mxu0
    %v5975 = vadd.f32 %v5730, %v5974
    %v5976 = vpop.f32.mrf.mxu0
    %v5977 = vpop.f32.mrf.mxu0
    %v5978 = vadd.f32 %v5730, %v5977
    %v5979 = vpop.f32.mrf.mxu0
    %5980 = vmatprep.mubr.bf16.mxu0 %v5657
    %5981 = vmatmul.mubr.bf16.gmra.mxu0 %v5656
    %v5982 = vpop.f32.mrf.mxu0
    %v5983 = vadd.f32 %v5730, %v5982
    %v5984 = vpop.f32.mrf.mxu0
    %v5985 = vpop.f32.mrf.mxu0
    %v5986 = vadd.f32 %v5730, %v5985
    %v5987 = vpop.f32.mrf.mxu0
    %5988 = vmatprep.mubr.bf16.mxu0 %v5659
    %5989 = vmatmul.mubr.bf16.gmra.mxu0 %v5658
    %v5990 = vpop.f32.mrf.mxu0
    %v5991 = vadd.f32 %v5730, %v5990
    %v5992 = vpop.f32.mrf.mxu0
    %v5993 = vpop.f32.mrf.mxu0
    %v5994 = vadd.f32 %v5730, %v5993
    %v5995 = vpop.f32.mrf.mxu0
    %5996 = vmatprep.mubr.bf16.mxu0 %v5661
    %5997 = vmatmul.mubr.bf16.gmra.mxu0 %v5660
    %v5998 = vpop.f32.mrf.mxu0
    %v5999 = vadd.f32 %v5730, %v5998
    %v6000 = vpop.f32.mrf.mxu0
    %v6001 = vpop.f32.mrf.mxu0
    %v6002 = vadd.f32 %v5730, %v6001
    %v6003 = vpop.f32.mrf.mxu0
    %6004 = vmatprep.mubr.bf16.mxu0 %v5663
    %6005 = vmatmul.mubr.bf16.gmra.mxu0 %v5662
    %v6006 = vpop.f32.mrf.mxu0
    %v6007 = vadd.f32 %v5730, %v6006
    %v6008 = vpop.f32.mrf.mxu0
    %v6009 = vpop.f32.mrf.mxu0
    %v6010 = vadd.f32 %v5730, %v6009
    %v6011 = vpop.f32.mrf.mxu0
    %6012 = vmatprep.mubr.bf16.mxu0 %v5665
    %6013 = vmatmul.mubr.bf16.gmra.mxu0 %v5664
    %v6014 = vpop.f32.mrf.mxu0
    %v6015 = vadd.f32 %v5730, %v6014
    %v6016 = vpop.f32.mrf.mxu0
    %v6017 = vpop.f32.mrf.mxu0
    %v6018 = vadd.f32 %v5730, %v6017
    %v6019 = vpop.f32.mrf.mxu0
    %6020 = vmatprep.mubr.bf16.mxu0 %v5667
    %6021 = vmatmul.mubr.bf16.gmra.mxu0 %v5666
    %v6022 = vpop.f32.mrf.mxu0
    %v6023 = vadd.f32 %v5730, %v6022
    %v6024 = vpop.f32.mrf.mxu0
    %v6025 = vpop.f32.mrf.mxu0
    %v6026 = vadd.f32 %v5730, %v6025
    %v6027 = vpop.f32.mrf.mxu0
    %6028 = vmatprep.mubr.bf16.mxu0 %v5669
    %6029 = vmatmul.mubr.bf16.gmra.mxu0 %v5668
    %v6030 = vpop.f32.mrf.mxu0
    %v6031 = vadd.f32 %v5730, %v6030
    %v6032 = vpop.f32.mrf.mxu0
    %v6033 = vpop.f32.mrf.mxu0
    %v6034 = vadd.f32 %v5730, %v6033
    %v6035 = vpop.f32.mrf.mxu0
    %6036 = vmatprep.mubr.bf16.mxu0 %v5671
    %6037 = vmatmul.mubr.bf16.gmra.mxu0 %v5670
    %v6038 = vpop.f32.mrf.mxu0
    %v6039 = vadd.f32 %v5730, %v6038
    %v6040 = vpop.f32.mrf.mxu0
    %v6041 = vpop.f32.mrf.mxu0
    %v6042 = vadd.f32 %v5730, %v6041
    %v6043 = vpop.f32.mrf.mxu0
    %6044 = vmatprep.mubr.bf16.mxu0 %v5673
    %6045 = vmatmul.mubr.bf16.gmra.mxu0 %v5672
    %v6046 = vpop.f32.mrf.mxu0
    %v6047 = vadd.f32 %v5730, %v6046
    %v6048 = vpop.f32.mrf.mxu0
    %v6049 = vpop.f32.mrf.mxu0
    %v6050 = vadd.f32 %v5730, %v6049
    %v6051 = vpop.f32.mrf.mxu0
    %6052 = vmatprep.mubr.bf16.mxu0 %v5675
    %6053 = vmatmul.mubr.bf16.gmra.mxu0 %v5674
    %v6054 = vpop.f32.mrf.mxu0
    %v6055 = vadd.f32 %v5730, %v6054
    %v6056 = vpop.f32.mrf.mxu0
    %v6057 = vpop.f32.mrf.mxu0
    %v6058 = vadd.f32 %v5730, %v6057
    %v6059 = vpop.f32.mrf.mxu0
    %6060 = vmatprep.mubr.bf16.mxu0 %v5677
    %6061 = vmatmul.mubr.bf16.gmra.mxu0 %v5676
    %v6062 = vpop.f32.mrf.mxu0
    %v6063 = vadd.f32 %v5730, %v6062
    %v6064 = vpop.f32.mrf.mxu0
    %v6065 = vpop.f32.mrf.mxu0
    %v6066 = vadd.f32 %v5730, %v6065
    %v6067 = vpop.f32.mrf.mxu0
    %6068 = vmatprep.mubr.bf16.mxu0 %v5679
    %6069 = vmatmul.mubr.bf16.gmra.mxu0 %v5678
    %v6070 = vpop.f32.mrf.mxu0
    %v6071 = vadd.f32 %v5730, %v6070
    %v6072 = vpop.f32.mrf.mxu0
    %v6073 = vpop.f32.mrf.mxu0
    %v6074 = vadd.f32 %v5730, %v6073
    %v6075 = vpop.f32.mrf.mxu0
    %6076 = vmatprep.mubr.bf16.mxu0 %v5681
    %6077 = vmatmul.mubr.bf16.gmra.mxu0 %v5680
    %v6078 = vpop.f32.mrf.mxu0
    %v6079 = vadd.f32 %v5730, %v6078
    %v6080 = vpop.f32.mrf.mxu0
    %v6081 = vpop.f32.mrf.mxu0
    %v6082 = vadd.f32 %v5730, %v6081
    %v6083 = vpop.f32.mrf.mxu0
    %6084 = vmatprep.mubr.bf16.mxu0 %v5683
    %6085 = vmatmul.mubr.bf16.gmra.mxu0 %v5682
    %v6086 = vpop.f32.mrf.mxu0
    %v6087 = vadd.f32 %v5730, %v6086
    %v6088 = vpop.f32.mrf.mxu0
    %v6089 = vpop.f32.mrf.mxu0
    %v6090 = vadd.f32 %v5730, %v6089
    %v6091 = vpop.f32.mrf.mxu0
    %6092 = vmatprep.mubr.bf16.mxu0 %v5685
    %6093 = vmatmul.mubr.bf16.gmra.mxu0 %v5684
    %v6094 = vpop.f32.mrf.mxu0
    %v6095 = vadd.f32 %v5730, %v6094
    %v6096 = vpop.f32.mrf.mxu0
    %v6097 = vpop.f32.mrf.mxu0
    %v6098 = vadd.f32 %v5730, %v6097
    %v6099 = vpop.f32.mrf.mxu0
    %6100 = vmatprep.mubr.bf16.mxu0 %v5687
    %6101 = vmatmul.mubr.bf16.gmra.mxu0 %v5686
    %v6102 = vpop.f32.mrf.mxu0
    %v6103 = vadd.f32 %v5730, %v6102
    %v6104 = vpop.f32.mrf.mxu0
    %v6105 = vpop.f32.mrf.mxu0
    %v6106 = vadd.f32 %v5730, %v6105
    %v6107 = vpop.f32.mrf.mxu0
    %6108 = vmatprep.mubr.bf16.mxu0 %v5689
    %6109 = vmatmul.mubr.bf16.gmra.mxu0 %v5688
    %v6110 = vpop.f32.mrf.mxu0
    %v6111 = vadd.f32 %v5730, %v6110
    %v6112 = vpop.f32.mrf.mxu0
    %v6113 = vpop.f32.mrf.mxu0
    %v6114 = vadd.f32 %v5730, %v6113
    %v6115 = vpop.f32.mrf.mxu0
    %6116 = vdwg.mxu0
    %6133 = vrot.lane.b32.xlu0 %v5927, 64
    %v6134 = vpop.permute.xlu0 %6133
    %6135 = vrot.lane.b32.xlu0 %v5930, 64
    %v6136 = vpop.permute.xlu0 %6135
    %6137 = vrot.lane.b32.xlu0 %v5935, 64
    %v6138 = vpop.permute.xlu0 %6137
    %6139 = vrot.lane.b32.xlu0 %v5938, 64
    %v6140 = vpop.permute.xlu0 %6139
    %6141 = vrot.lane.b32.xlu0 %v5943, 64
    %v6142 = vpop.permute.xlu0 %6141
    %6143 = vrot.lane.b32.xlu0 %v5946, 64
    %v6144 = vpop.permute.xlu0 %6143
    %6145 = vrot.lane.b32.xlu0 %v5951, 64
    %v6146 = vpop.permute.xlu0 %6145
    %6147 = vrot.lane.b32.xlu0 %v5954, 64
    %v6148 = vpop.permute.xlu0 %6147
    %6149 = vrot.lane.b32.xlu0 %v5959, 64
    %v6150 = vpop.permute.xlu0 %6149
    %6151 = vrot.lane.b32.xlu0 %v5962, 64
    %v6152 = vpop.permute.xlu0 %6151
    %6153 = vrot.lane.b32.xlu0 %v5967, 64
    %v6154 = vpop.permute.xlu0 %6153
    %6155 = vrot.lane.b32.xlu0 %v5970, 64
    %v6156 = vpop.permute.xlu0 %6155
    %6157 = vrot.lane.b32.xlu0 %v5975, 64
    %v6158 = vpop.permute.xlu0 %6157
    %6159 = vrot.lane.b32.xlu0 %v5978, 64
    %v6160 = vpop.permute.xlu0 %6159
    %6161 = vrot.lane.b32.xlu0 %v5983, 64
    %v6162 = vpop.permute.xlu0 %6161
    %6163 = vrot.lane.b32.xlu0 %v5986, 64
    %v6164 = vpop.permute.xlu0 %6163
    %6197 = vrot.lane.b32.xlu0 %v6055, 64
    %v6198 = vpop.permute.xlu0 %6197
    %6199 = vrot.lane.b32.xlu0 %v6058, 64
    %v6200 = vpop.permute.xlu0 %6199
    %6201 = vrot.lane.b32.xlu0 %v6063, 64
    %v6202 = vpop.permute.xlu0 %6201
    %6203 = vrot.lane.b32.xlu0 %v6066, 64
    %v6204 = vpop.permute.xlu0 %6203
    %6205 = vrot.lane.b32.xlu0 %v6071, 64
    %v6206 = vpop.permute.xlu0 %6205
    %6207 = vrot.lane.b32.xlu0 %v6074, 64
    %v6208 = vpop.permute.xlu0 %6207
    %6209 = vrot.lane.b32.xlu0 %v6079, 64
    %v6210 = vpop.permute.xlu0 %6209
    %6211 = vrot.lane.b32.xlu0 %v6082, 64
    %v6212 = vpop.permute.xlu0 %6211
    %6213 = vrot.lane.b32.xlu0 %v6087, 64
    %v6214 = vpop.permute.xlu0 %6213
    %6215 = vrot.lane.b32.xlu0 %v6090, 64
    %v6216 = vpop.permute.xlu0 %6215
    %6217 = vrot.lane.b32.xlu0 %v6095, 64
    %v6218 = vpop.permute.xlu0 %6217
    %6219 = vrot.lane.b32.xlu0 %v6098, 64
    %v6220 = vpop.permute.xlu0 %6219
    %6221 = vrot.lane.b32.xlu0 %v6103, 64
    %v6222 = vpop.permute.xlu0 %6221
    %6223 = vrot.lane.b32.xlu0 %v6106, 64
    %v6224 = vpop.permute.xlu0 %6223
    %6225 = vrot.lane.b32.xlu0 %v6111, 64
    %v6226 = vpop.permute.xlu0 %6225
    %6227 = vrot.lane.b32.xlu0 %v6114, 64
    %v6228 = vpop.permute.xlu0 %6227
    %v6245 = vsel %vm1009, %v5863, %v6134
    %v6246 = vsel %vm1009, %v5866, %v6136
    %v6247 = vsel %vm1009, %v5871, %v6138
    %v6248 = vsel %vm1009, %v5874, %v6140
    %v6249 = vsel %vm1009, %v5879, %v6142
    %v6250 = vsel %vm1009, %v5882, %v6144
    %v6251 = vsel %vm1009, %v5887, %v6146
    %v6252 = vsel %vm1009, %v5890, %v6148
    %v6253 = vsel %vm1009, %v5895, %v6150
    %v6254 = vsel %vm1009, %v5898, %v6152
    %v6255 = vsel %vm1009, %v5903, %v6154
    %v6256 = vsel %vm1009, %v5906, %v6156
    %v6257 = vsel %vm1009, %v5911, %v6158
    %v6258 = vsel %vm1009, %v5914, %v6160
    %v6259 = vsel %vm1009, %v5919, %v6162
    %v6260 = vsel %vm1009, %v5922, %v6164
    %v6261 = vsel %vm1009, %v5991, %v6198
    %v6262 = vsel %vm1009, %v5994, %v6200
    %v6263 = vsel %vm1009, %v5999, %v6202
    %v6264 = vsel %vm1009, %v6002, %v6204
    %v6265 = vsel %vm1009, %v6007, %v6206
    %v6266 = vsel %vm1009, %v6010, %v6208
    %v6267 = vsel %vm1009, %v6015, %v6210
    %v6268 = vsel %vm1009, %v6018, %v6212
    %v6269 = vsel %vm1009, %v6023, %v6214
    %v6270 = vsel %vm1009, %v6026, %v6216
    %v6271 = vsel %vm1009, %v6031, %v6218
    %v6272 = vsel %vm1009, %v6034, %v6220
    %v6273 = vsel %vm1009, %v6039, %v6222
    %v6274 = vsel %vm1009, %v6042, %v6224
    %v6275 = vsel %vm1009, %v6047, %v6226
    %v6276 = vsel %vm1009, %v6050, %v6228
    %v6277 = vtanh.pop %v6245
    %v6278 = vtanh.pop %v6261
    %v6279 = vtanh.pop %v6246
    %v6280 = vtanh.pop %v6262
    %v6281 = vtanh.pop %v6247
    %v6282 = vtanh.pop %v6263
    %v6283 = vtanh.pop %v6248
    %v6284 = vtanh.pop %v6264
    %v6285 = vtanh.pop %v6249
    %v6286 = vtanh.pop %v6265
    %v6287 = vtanh.pop %v6250
    %v6288 = vtanh.pop %v6266
    %v6289 = vtanh.pop %v6251
    %v6290 = vtanh.pop %v6267
    %v6291 = vtanh.pop %v6252
    %v6292 = vtanh.pop %v6268
    %v6293 = vtanh.pop %v6253
    %v6294 = vtanh.pop %v6269
    %v6295 = vtanh.pop %v6254
    %v6296 = vtanh.pop %v6270
    %v6297 = vtanh.pop %v6255
    %v6298 = vtanh.pop %v6271
    %v6299 = vtanh.pop %v6256
    %v6300 = vtanh.pop %v6272
    %v6301 = vtanh.pop %v6257
    %v6302 = vtanh.pop %v6273
    %v6303 = vtanh.pop %v6258
    %v6304 = vtanh.pop %v6274
    %v6305 = vtanh.pop %v6259
    %v6306 = vtanh.pop %v6275
    %v6307 = vtanh.pop %v6260
    %v6308 = vtanh.pop %v6276
    %v6309 = vpack.c.bf16 %v6279, %v6277
    %v6310 = vpack.c.bf16 %v6280, %v6278
    %v6311 = vpack.c.bf16 %v6283, %v6281
    %v6312 = vpack.c.bf16 %v6284, %v6282
    %v6313 = vpack.c.bf16 %v6287, %v6285
    %v6314 = vpack.c.bf16 %v6288, %v6286
    %v6315 = vpack.c.bf16 %v6291, %v6289
    %v6316 = vpack.c.bf16 %v6292, %v6290
    %v6317 = vpack.c.bf16 %v6295, %v6293
    %v6318 = vpack.c.bf16 %v6296, %v6294
    %v6319 = vpack.c.bf16 %v6299, %v6297
    %v6320 = vpack.c.bf16 %v6300, %v6298
    %v6321 = vpack.c.bf16 %v6303, %v6301
    %v6322 = vpack.c.bf16 %v6304, %v6302
    %v6323 = vpack.c.bf16 %v6307, %v6305
    %v6324 = vpack.c.bf16 %v6308, %v6306
    %v6341 = vunpack.c.l.b16 %v6309
    %v6342 = vunpack.c.l.b16 %v6310
    %v6343 = vunpack.c.h.b16 %v6309
    %v6344 = vunpack.c.h.b16 %v6310
    %v6345 = vunpack.c.l.b16 %v6311
    %v6346 = vunpack.c.l.b16 %v6312
    %v6347 = vunpack.c.h.b16 %v6311
    %v6348 = vunpack.c.h.b16 %v6312
    %v6349 = vunpack.c.l.b16 %v6313
    %v6350 = vunpack.c.l.b16 %v6314
    %v6351 = vunpack.c.h.b16 %v6313
    %v6352 = vunpack.c.h.b16 %v6314
    %v6353 = vunpack.c.l.b16 %v6315
    %v6354 = vunpack.c.l.b16 %v6316
    %v6355 = vunpack.c.h.b16 %v6315
    %v6356 = vunpack.c.h.b16 %v6316
    %v6357 = vunpack.c.l.b16 %v6317
    %v6358 = vunpack.c.l.b16 %v6318
    %v6359 = vunpack.c.h.b16 %v6317
    %v6360 = vunpack.c.h.b16 %v6318
    %v6361 = vunpack.c.l.b16 %v6319
    %v6362 = vunpack.c.l.b16 %v6320
    %v6363 = vunpack.c.h.b16 %v6319
    %v6364 = vunpack.c.h.b16 %v6320
    %v6365 = vunpack.c.l.b16 %v6321
    %v6366 = vunpack.c.l.b16 %v6322
    %v6367 = vunpack.c.h.b16 %v6321
    %v6368 = vunpack.c.h.b16 %v6322
    %v6369 = vunpack.c.l.b16 %v6323
    %v6370 = vunpack.c.l.b16 %v6324
    %v6371 = vunpack.c.h.b16 %v6323
    %v6372 = vunpack.c.h.b16 %v6324
    %v6373 = vpack.c.b16 %v6342, %v6341
    %v6374 = vpack.c.b16 %v6344, %v6343
    %v6375 = vpack.c.b16 %v6346, %v6345
    %v6376 = vpack.c.b16 %v6348, %v6347
    %v6377 = vpack.c.b16 %v6350, %v6349
    %v6378 = vpack.c.b16 %v6352, %v6351
    %v6379 = vpack.c.b16 %v6354, %v6353
    %v6380 = vpack.c.b16 %v6356, %v6355
    %v6381 = vpack.c.b16 %v6358, %v6357
    %v6382 = vpack.c.b16 %v6360, %v6359
    %v6383 = vpack.c.b16 %v6362, %v6361
    %v6384 = vpack.c.b16 %v6364, %v6363
    %v6385 = vpack.c.b16 %v6366, %v6365
    %v6386 = vpack.c.b16 %v6368, %v6367
    %v6387 = vpack.c.b16 %v6370, %v6369
    %v6388 = vpack.c.b16 %v6372, %v6371
    %6405 = vst [vmem:[%s12] sm:$0xff] %v6373
    %6406 = vst [vmem:[%s12 + $0x8] sm:$0xff] %v6374
    %6407 = vst [vmem:[%s12 + $0x10] sm:$0xff] %v6375
    %6408 = vst [vmem:[%s12 + $0x18] sm:$0xff] %v6376
    %6409 = vst [vmem:[%s12 + $0x20] sm:$0xff] %v6377
    %6410 = vst [vmem:[%s12 + $0x28] sm:$0xff] %v6378
    %6411 = vst [vmem:[%s12 + $0x30] sm:$0xff] %v6379
    %6412 = vst [vmem:[%s12 + $0x38] sm:$0xff] %v6380
    %6413 = vst [vmem:[%s12 + $0x40] sm:$0xff] %v6381
    %6414 = vst [vmem:[%s12 + $0x48] sm:$0xff] %v6382
    %6415 = vst [vmem:[%s12 + $0x50] sm:$0xff] %v6383
    %6416 = vst [vmem:[%s12 + $0x58] sm:$0xff] %v6384
    %6417 = vst [vmem:[%s12 + $0x60] sm:$0xff] %v6385
    %6418 = vst [vmem:[%s12 + $0x68] sm:$0xff] %v6386
    %6419 = vst [vmem:[%s12 + $0x70] sm:$0xff] %v6387
    %6420 = vst [vmem:[%s12 + $0x78] sm:$0xff] %v6388
    // Predicated region
    $region116: #{generator_forward.1} parent=1 // pred_check
      _
    $region117: #{generator_forward.1} parent=1 // pred_check_branch
      %6422 = sbr.rel (0) target = $region119
    $region118: #{generator_forward.1} parent=1 // pred_region
      _
    $region119: #{generator_forward.1} parent=1 // pred_fallthru
      _
    // Predicated region
    $region120: #{generator_forward.1} parent=1 // pred_check
      _
    $region121: #{generator_forward.1} parent=1 // pred_check_branch
      %6424 = sbr.rel (0) target = $region123
    $region122: #{generator_forward.1} parent=1 // pred_region
      _
    $region123: #{generator_forward.1} parent=1 // pred_fallthru
      _
    %6425 = vsyncpa [#allocation7], 1
    %6426 = vsyncpa [#allocation9], 1
    %6427 = vsyncpa [#allocation12], 1
    %6428 = vsyncpa [#allocation15], 1
    %6429 = vsyncpa [#allocation18], 1
  %6430 = vsyncmov [#allocation5]
  %s6431 = vpop.sfrf %6430
  %p6432 = scmp.eq.s32.totalorder %s6431, 0
  %p6433 = pneg %p6432
  %6435 = shalt.err (%p6433)
  %s6436 = scalar_lea.sflag [#allocation5], 1
  %6437 = vsyncmov %s6436
  %s6438 = vpop.sfrf %6437
  %p6439 = scmp.eq.s32.totalorder %s6438, 0
  %p6440 = pneg %p6439
  %6442 = shalt.err (%p6440)
  %s6443 = scalar_lea.sflag [#allocation5], 2
  %6444 = vsyncmov %s6443
  %s6445 = vpop.sfrf %6444
  %p6446 = scmp.eq.s32.totalorder %s6445, 0
  %p6447 = pneg %p6446
  %6449 = shalt.err (%p6447)

</llo_original>
